<compile_context>
chip_gen: v6e
topology: v6e:2x2x1
jax: 0.10.0
libtpu: 0.0.40
codegen_flags: <defaults>
</compile_context>

<pallas_src>
import jax
import jax.numpy as jnp
from jax.experimental import pallas as pl
from jax.experimental.pallas import tpu as pltpu

_SQRT_HALF = 0.7071067811865476


def _erf_approx(x, recip):
    # Abramowitz & Stegun 7.1.26, max abs error ~1.5e-7 (elementwise only).
    a1, a2, a3, a4, a5 = (0.254829592, -0.284496736, 1.421413741,
                          -1.453152027, 1.061405429)
    p = 0.3275911
    ax = jnp.abs(x)
    t = recip(1.0 + p * ax)
    poly = ((((a5 * t + a4) * t + a3) * t + a2) * t + a1) * t
    y = 1.0 - poly * jnp.exp(-ax * ax)
    return jnp.where(x < 0.0, -y, y)


def _apply_act(h, act, *, in_kernel):
    if in_kernel:
        recip = lambda v: pl.reciprocal(v, approx=True)   # EUP slot
    else:
        recip = lambda v: 1.0 / v
    if act == "gelu":                       # F.gelu (erf form), poly-approximated
        return 0.5 * h * (1.0 + _erf_approx(h * _SQRT_HALF, recip))
    if act == "relu":
        return jnp.maximum(h, 0.0)
    if act == "swish":                      # x * sigmoid(x)
        return h * recip(1.0 + jnp.exp(-h))
    raise ValueError(f"unsupported act: {act}")


def _build_kernel(*, ksize, batch, padl, padr, tile_m, n_f_tiles, act,
                  compute_dtype):
    """Kernel for grid (time-tile, filter-tile); filter-tile is the reduction axis."""
    padl_rows = padl * batch
    padr_rows = padr * batch
    last_f = n_f_tiles - 1

    def assemble_taps(x_ref, halo_ref, xtaps_ref):
        # Build the K time-shifted LHS operands once per time tile; the per-f-tile
        # matmuls then read sublane-aligned slabs xtaps_ref[k].
        xm = x_ref[...].astype(compute_dtype)                 # (tile_m, H)
        halo = halo_ref[0].astype(compute_dtype)              # ((K-1)*B, H)
        parts = []
        if padl_rows:
            parts.append(halo[:padl_rows])
        parts.append(xm)
        if padr_rows:
            parts.append(halo[padl_rows:padl_rows + padr_rows])
        xwin = parts[0] if len(parts) == 1 else jnp.concatenate(parts, axis=0)
        for k in range(ksize):
            xtaps_ref[k] = xwin[k * batch:k * batch + tile_m]

    def conv_ffn(x_ref, w1_ref, b1_ref, w2_ref, xtaps_ref):
        # Conv1d as K accumulating MXU matmuls (no (tile_m, K*H) im2col buffer).
        if ksize == 1:
            h = jnp.dot(x_ref[...].astype(compute_dtype), w1_ref[0],
                        preferred_element_type=jnp.float32)
        else:
            h = jnp.dot(xtaps_ref[0], w1_ref[0],
                        preferred_element_type=jnp.float32)
            for k in range(1, ksize):
                h = h + jnp.dot(xtaps_ref[k], w1_ref[k],
                                preferred_element_type=jnp.float32)
        h = h + b1_ref[...]                  # K**-0.5 scale pre-folded into w1/b1
        h = _apply_act(h, act, in_kernel=True)
        # TODO(synk): training-mode dropout (stateful PRNG mask) not implemented;
        # eval mode => identity.
        return jnp.dot(h.astype(compute_dtype), w2_ref[...],
                       preferred_element_type=jnp.float32)    # (tile_m, H) f32

    if ksize > 1 and n_f_tiles > 1:
        def kernel(x_ref, halo_ref, w1_ref, b1_ref, w2_ref, b2_ref, out_ref,
                   xtaps_ref, acc_ref):
            f = pl.program_id(1)

            @pl.when(f == 0)
            def _():
                assemble_taps(x_ref, halo_ref, xtaps_ref)
                acc_ref[...] = jnp.zeros_like(acc_ref)

            acc_ref[...] = acc_ref[...] + conv_ffn(x_ref, w1_ref, b1_ref, w2_ref,
                                                   xtaps_ref)

            @pl.when(f == last_f)
            def _():
                out_ref[...] = (acc_ref[...] + b2_ref[...]).astype(out_ref.dtype)

    elif ksize > 1:
        def kernel(x_ref, halo_ref, w1_ref, b1_ref, w2_ref, b2_ref, out_ref,
                   xtaps_ref):
            assemble_taps(x_ref, halo_ref, xtaps_ref)
            y = conv_ffn(x_ref, w1_ref, b1_ref, w2_ref, xtaps_ref)
            out_ref[...] = (y + b2_ref[...]).astype(out_ref.dtype)

    elif n_f_tiles > 1:
        def kernel(x_ref, w1_ref, b1_ref, w2_ref, b2_ref, out_ref, acc_ref):
            f = pl.program_id(1)

            @pl.when(f == 0)
            def _():
                acc_ref[...] = jnp.zeros_like(acc_ref)

            acc_ref[...] = acc_ref[...] + conv_ffn(x_ref, w1_ref, b1_ref, w2_ref,
                                                   None)

            @pl.when(f == last_f)
            def _():
                out_ref[...] = (acc_ref[...] + b2_ref[...]).astype(out_ref.dtype)

    else:
        def kernel(x_ref, w1_ref, b1_ref, w2_ref, b2_ref, out_ref):
            y = conv_ffn(x_ref, w1_ref, b1_ref, w2_ref, None)
            out_ref[...] = (y + b2_ref[...]).astype(out_ref.dtype)

    return kernel


def _pick_tile_t(T, B):
    divs = [d for d in range(1, T + 1) if T % d == 0]
    al16 = [d for d in divs if (d * B) % 16 == 0]          # bf16 sublane alignment
    al8 = [d for d in divs if (d * B) % 8 == 0]
    cands = al16 or al8 or [T]
    # Smallest tile whose matmul M dim (tile_t*B) reaches the 256-wide MXU:
    # high utilization on v6e/v7x, max parallel grid steps (megacore / dual-TC),
    # bounded VMEM (important on v7x's 64 MiB).  v5e's 128-wide MXU is already
    # saturated at M=256, so the same choice is fine there.
    big = [d for d in cands if d * B >= 256]
    return min(big) if big else max(cands)


def _vmem_estimate(*, tile_m, tile_f, K, B, H, x_bytes, c_bytes, o_bytes):
    est = 2 * tile_m * H * x_bytes                       # x blocks (double-buffered)
    est += 2 * tile_m * H * o_bytes                      # out blocks
    est += 2 * (K * H * tile_f + tile_f * H) * c_bytes   # w1 + w2 (2 buffers each)
    est += 2 * (tile_f + H) * 4                          # b1 + b2
    if K > 1:
        est += 2 * (K - 1) * B * H * c_bytes             # halo blocks
        est += K * tile_m * H * c_bytes                  # tap scratch
        est += (tile_m + (K - 1) * B) * H * c_bytes      # window assembly temp
    est += tile_m * H * 4                                # f-accumulator scratch
    est += tile_m * tile_f * (4 + c_bytes)               # h (f32) + bf16 copy
    est += tile_m * H * 4                                # y (f32)
    return est


def transformer_ffn_forward(x_tbh, params, *, kernel_size=1, padding="SAME",
                            act="gelu", dropout=0.0,
                            compute_dtype=jnp.bfloat16, tile_t=None, tile_f=None,
                            out_dtype=None):
    """x_tbh: (T, B, hidden).  params = (w1, b1, w2, b2) in PyTorch layouts:
       w1 (filter, hidden, K), b1 (filter,), w2 (hidden, filter), b2 (hidden,)."""
    del dropout  # eval mode: F.dropout(training=False) is the identity
    w1, b1, w2, b2 = params
    filt, hid, K = w1.shape
    assert K == kernel_size
    T, B, H = x_tbh.shape
    assert H == hid
    if out_dtype is None:
        out_dtype = x_tbh.dtype

    if padding == "SAME":
        assert K % 2 == 1, "SAME padding requires an odd kernel_size"
        padl = padr = K // 2
    elif padding == "LEFT":
        padl, padr = K - 1, 0
    else:
        raise ValueError(f"unsupported padding: {padding}")

    # ---- fold the K**-0.5 post-conv scale into the conv weight & bias ----
    scale = float(K) ** -0.5
    w1_eff = (jnp.transpose(w1, (2, 1, 0)) * scale).astype(compute_dtype)  # (K,H,F)
    b1_eff = (b1.astype(jnp.float32) * scale).reshape(1, filt)
    w2_eff = jnp.transpose(w2).astype(compute_dtype)                       # (F,H)
    b2_eff = b2.astype(jnp.float32).reshape(1, H)

    # ---- (T,B,H) -> (T*B,H) is a FREE reshape: no wrapper transpose / pad ----
    x_rows = x_tbh.reshape(T * B, H)

    # ---- time tiling: matmul M dim = tile_t * B ----
    if tile_t is None:
        tile_t = _pick_tile_t(T, B)
    assert T % tile_t == 0, "tile_t must divide T"
    tile_m = tile_t * B
    nt = T // tile_t
    assert tile_m % 8 == 0 or nt == 1, "tile_t*B must be a multiple of 8"

    # ---- halo: (K-1) time rows per tile, tiny, auto-pipelined like x ----
    inputs = [x_rows]
    if K > 1:
        t_starts = jnp.arange(nt) * tile_t
        left_idx = t_starts[:, None] - padl + jnp.arange(padl)[None, :]
        if padr > 0:
            right_idx = t_starts[:, None] + tile_t + jnp.arange(padr)[None, :]
            idx = jnp.concatenate([left_idx, right_idx], axis=1)        # (nt, K-1)
        else:
            idx = left_idx
        valid = (idx >= 0) & (idx < T)
        halo = jnp.take(x_tbh, jnp.clip(idx, 0, T - 1), axis=0)         # (nt,K-1,B,H)
        halo = jnp.where(valid[:, :, None, None], halo, 0)
        halo = halo.reshape(nt, (K - 1) * B, H).astype(compute_dtype)
        inputs.append(halo)
    inputs += [w1_eff, b1_eff, w2_eff, b2_eff]

    # ---- filter tiling (reduction axis) so the working set fits VMEM ----
    x_bytes = jnp.dtype(x_rows.dtype).itemsize
    c_bytes = jnp.dtype(compute_dtype).itemsize
    o_bytes = jnp.dtype(out_dtype).itemsize
    try:
        vmem_cap = int(pltpu.get_tpu_info().vmem_capacity_bytes)
    except Exception:
        vmem_cap = 64 * 1024 * 1024                                     # v7x floor
    budget = int(vmem_cap * 0.55)

    def est_for(tf):
        return _vmem_estimate(tile_m=tile_m, tile_f=tf, K=K, B=B, H=H,
                              x_bytes=x_bytes, c_bytes=c_bytes, o_bytes=o_bytes)

    if tile_f is None:
        cands = sorted({filt} | {d for d in range(128, filt, 128) if filt % d == 0},
                       reverse=True)
        tile_f = next((c for c in cands if est_for(c) <= budget), cands[-1])
    assert filt % tile_f == 0, "tile_f must divide filter_size"
    nf = filt // tile_f

    est = est_for(tile_f)
    if est > int(vmem_cap * 0.9):
        raise ValueError(
            f"FFN tile does not fit VMEM (~{est >> 20} MiB needed, "
            f"{vmem_cap >> 20} MiB available); reduce tile_t / tile_f.")
    vmem_limit = max(32 << 20, int(est * 1.35))
    vmem_limit = max(min(vmem_limit, int(vmem_cap * 0.9)), est)

    # ---- specs (lane-dense: last dim of every block is the full channel dim) ----
    in_specs = [pl.BlockSpec((tile_m, H), lambda t, f: (t, 0))]
    if K > 1:
        in_specs.append(pl.BlockSpec((1, (K - 1) * B, H), lambda t, f: (t, 0, 0)))
    in_specs += [
        pl.BlockSpec((K, H, tile_f), lambda t, f: (0, 0, f)),   # conv taps
        pl.BlockSpec((1, tile_f), lambda t, f: (0, f)),         # conv bias
        pl.BlockSpec((tile_f, H), lambda t, f: (f, 0)),         # ffn_2 weight
        pl.BlockSpec((1, H), lambda t, f: (0, 0)),              # ffn_2 bias
    ]
    out_spec = pl.BlockSpec((tile_m, H), lambda t, f: (t, 0))

    scratch_shapes = []
    if K > 1:
        scratch_shapes.append(pltpu.VMEM((K, tile_m, H), compute_dtype))
    if nf > 1:
        scratch_shapes.append(pltpu.VMEM((tile_m, H), jnp.float32))

    kernel = _build_kernel(ksize=K, batch=B, padl=padl, padr=padr, tile_m=tile_m,
                           n_f_tiles=nf, act=act, compute_dtype=compute_dtype)

    flops = 2 * T * B * (K * H * filt + filt * H)
    transcendentals = T * B * filt if act in ("gelu", "swish") else 0
    weight_bytes = (K * H * filt + filt * H) * c_bytes + (filt + H) * 4
    bytes_accessed = (T * B * H * (x_bytes + o_bytes)
                      + weight_bytes * (nt if nf > 1 else 1))

    out = pl.pallas_call(
        kernel,
        out_shape=jax.ShapeDtypeStruct((T * B, H), out_dtype),
        grid=(nt, nf),
        in_specs=in_specs,
        out_specs=out_spec,
        scratch_shapes=scratch_shapes,
        compiler_params=pltpu.CompilerParams(
            dimension_semantics=("parallel", "arbitrary"),
            vmem_limit_bytes=vmem_limit),
        cost_estimate=pl.CostEstimate(flops=flops,
                                      transcendentals=transcendentals,
                                      bytes_accessed=bytes_accessed),
    )(*inputs)

    return out.reshape(T, B, H)


def _reference(x_tbh, params, *, kernel_size, padding, act, compute_dtype):
    """Pure-JAX reference with the same folding / casts as the kernel."""
    w1, b1, w2, b2 = params
    filt, H, K = w1.shape
    T, B, _ = x_tbh.shape
    assert K == kernel_size
    if padding == "SAME":
        padl, padr = K // 2, K // 2
    else:
        padl, padr = K - 1, 0
    scale = float(K) ** -0.5
    x = x_tbh.astype(jnp.float32)
    xp = jnp.pad(x, ((padl, padr), (0, 0), (0, 0)))
    w1t = (jnp.transpose(w1, (2, 1, 0)) * scale).astype(compute_dtype)     # (K,H,F)
    h = jnp.zeros((T, B, filt), jnp.float32)
    for k in range(K):
        h = h + jnp.einsum("tbh,hf->tbf", xp[k:k + T].astype(compute_dtype),
                           w1t[k], preferred_element_type=jnp.float32)
    h = h + (b1.astype(jnp.float32) * scale)[None, None, :]
    h = _apply_act(h, act, in_kernel=False)
    y = jnp.einsum("tbf,fh->tbh", h.astype(compute_dtype),
                   jnp.transpose(w2).astype(compute_dtype),
                   preferred_element_type=jnp.float32)
    return y + b2.astype(jnp.float32)[None, None, :]


def _make_params(key, hidden, filt, ksize):
    ka, kb, kc = jax.random.split(key, 3)
    fan_in = hidden * ksize
    bound = (1.0 / fan_in) ** 0.5
    w1 = jax.random.uniform(ka, (filt, hidden, ksize), jnp.float32, -bound, bound)
    b1 = jax.random.uniform(kb, (filt,), jnp.float32, -bound, bound)
    lim = (6.0 / (hidden + filt)) ** 0.5                  # xavier_uniform
    w2 = jax.random.uniform(kc, (hidden, filt), jnp.float32, -lim, lim)
    b2 = jnp.zeros((hidden,), jnp.float32)                # nn.init.constant_(0.)
    return (w1, b1, w2, b2)


if __name__ == "__main__":
    T, B, HID, FILT = 256, 2, 128, 256

    key = jax.random.PRNGKey(0)
    kx, kp = jax.random.split(key)
    x = jax.random.normal(kx, (T, B, HID), jnp.float32)

    configs = [
        dict(kernel_size=3, padding="SAME", act="gelu",
             compute_dtype=jnp.bfloat16, tol=2e-2),
        dict(kernel_size=5, padding="LEFT", act="relu",
             compute_dtype=jnp.bfloat16, tol=2e-2),
        dict(kernel_size=1, padding="SAME", act="swish",
             compute_dtype=jnp.float32, tol=1e-2),
    ]

    for i, cfg in enumerate(configs):
        cfg = dict(cfg)
        tol = cfg.pop("tol")
        params = _make_params(jax.random.fold_in(kp, i), HID, FILT,
                              cfg["kernel_size"])
        out = transformer_ffn_forward(x, params, **cfg)
        out = jax.block_until_ready(out)
        ref = _reference(x, params, **cfg)
        assert out.shape == (T, B, HID)
        err = float(jnp.max(jnp.abs(out - ref)))
        assert bool(jnp.allclose(out, ref, atol=tol, rtol=tol)), (cfg, err)

    print("KERNEL_OK")
</pallas_src>

<mosaic_0001>
module attributes {stable_mosaic.version = 11 : i64} {
  func.func @kernel(%arg0: i32, %arg1: i32, %arg2: memref<256x128xf32, #tpu.memory_space<vmem>>, %arg3: memref<1x4x128xbf16, #tpu.memory_space<vmem>>, %arg4: memref<3x128x256xbf16, #tpu.memory_space<vmem>>, %arg5: memref<1x256xf32, #tpu.memory_space<vmem>>, %arg6: memref<256x128xbf16, #tpu.memory_space<vmem>>, %arg7: memref<1x128xf32, #tpu.memory_space<vmem>>, %arg8: memref<256x128xf32, #tpu.memory_space<vmem>>, %arg9: memref<3x256x128xbf16, #tpu.memory_space<vmem>>) attributes {dimension_semantics = [#tpu.dimension_semantics<parallel>, #tpu.dimension_semantics<arbitrary>], iteration_bounds = array<i64: 2, 1>, scalar_prefetch = 0 : i64, scratch_operands = 1 : i64, tpu.core_type = #tpu.core_type<tc>, window_params = [{transform_indices = @transform_0, window_bounds = array<i64: 256, 128>}, {transform_indices = @transform_1, window_bounds = array<i64: 1, 4, 128>}, {transform_indices = @transform_2, window_bounds = array<i64: 3, 128, 256>}, {transform_indices = @transform_3, window_bounds = array<i64: 1, 256>}, {transform_indices = @transform_4, window_bounds = array<i64: 256, 128>}, {pipeline_mode = #tpu.pipeline_mode<synchronous>, transform_indices = @transform_5, window_bounds = array<i64: 1, 128>}, {transform_indices = @transform_6, window_bounds = array<i64: 256, 128>}]} {
    %c0 = arith.constant 0 : index
    %c0_0 = arith.constant 0 : index
    %0 = vector.load %arg2[%c0, %c0_0] : memref<256x128xf32, #tpu.memory_space<vmem>>, vector<256x128xf32>
    %1 = arith.truncf %0 : vector<256x128xf32> to vector<256x128xbf16>
    %c0_1 = arith.constant 0 : index
    %c0_2 = arith.constant 0 : index
    %c0_3 = arith.constant 0 : index
    %2 = vector.load %arg3[%c0_1, %c0_2, %c0_3] : memref<1x4x128xbf16, #tpu.memory_space<vmem>>, vector<1x4x128xbf16>
    %3 = vector.shape_cast %2 : vector<1x4x128xbf16> to vector<4x128xbf16>
    %4 = vector.extract_strided_slice %3 {offsets = [0, 0], sizes = [2, 128], strides = [1, 1]} : vector<4x128xbf16> to vector<2x128xbf16>
    %5 = vector.extract_strided_slice %3 {offsets = [2, 0], sizes = [2, 128], strides = [1, 1]} : vector<4x128xbf16> to vector<2x128xbf16>
    %6 = tpu.concatenate %4, %1, %5 in 0 : vector<2x128xbf16>, vector<256x128xbf16>, vector<2x128xbf16> -> vector<260x128xbf16>
    %7 = vector.extract_strided_slice %6 {offsets = [0, 0], sizes = [256, 128], strides = [1, 1]} : vector<260x128xbf16> to vector<256x128xbf16>
    %c0_4 = arith.constant 0 : index
    %c0_5 = arith.constant 0 : index
    %c0_6 = arith.constant 0 : index
    %8 = vector.load %arg9[%c0_4, %c0_5, %c0_6] : memref<3x256x128xbf16, #tpu.memory_space<vmem>>, vector<1x256x128xbf16>
    %9 = vector.shape_cast %8 : vector<1x256x128xbf16> to vector<256x128xbf16>
    %10 = vector.shape_cast %7 : vector<256x128xbf16> to vector<1x256x128xbf16>
    tpu.vector_store %arg9[%c0_4, %c0_5, %c0_6], %10 {strides = array<i32>} : memref<3x256x128xbf16, #tpu.memory_space<vmem>>, vector<1x256x128xbf16>,
    %11 = vector.extract_strided_slice %6 {offsets = [2, 0], sizes = [256, 128], strides = [1, 1]} : vector<260x128xbf16> to vector<256x128xbf16>
    %c1 = arith.constant 1 : index
    %c0_7 = arith.constant 0 : index
    %c0_8 = arith.constant 0 : index
    %12 = vector.load %arg9[%c1, %c0_7, %c0_8] : memref<3x256x128xbf16, #tpu.memory_space<vmem>>, vector<1x256x128xbf16>
    %13 = vector.shape_cast %12 : vector<1x256x128xbf16> to vector<256x128xbf16>
    %14 = vector.shape_cast %11 : vector<256x128xbf16> to vector<1x256x128xbf16>
    tpu.vector_store %arg9[%c1, %c0_7, %c0_8], %14 {strides = array<i32>} : memref<3x256x128xbf16, #tpu.memory_space<vmem>>, vector<1x256x128xbf16>,
    %15 = vector.extract_strided_slice %6 {offsets = [4, 0], sizes = [256, 128], strides = [1, 1]} : vector<260x128xbf16> to vector<256x128xbf16>
    %c2 = arith.constant 2 : index
    %c0_9 = arith.constant 0 : index
    %c0_10 = arith.constant 0 : index
    %16 = vector.load %arg9[%c2, %c0_9, %c0_10] : memref<3x256x128xbf16, #tpu.memory_space<vmem>>, vector<1x256x128xbf16>
    %17 = vector.shape_cast %16 : vector<1x256x128xbf16> to vector<256x128xbf16>
    %18 = vector.shape_cast %15 : vector<256x128xbf16> to vector<1x256x128xbf16>
    tpu.vector_store %arg9[%c2, %c0_9, %c0_10], %18 {strides = array<i32>} : memref<3x256x128xbf16, #tpu.memory_space<vmem>>, vector<1x256x128xbf16>,
    %c0_11 = arith.constant 0 : index
    %c0_12 = arith.constant 0 : index
    %c0_13 = arith.constant 0 : index
    %19 = vector.load %arg9[%c0_11, %c0_12, %c0_13] : memref<3x256x128xbf16, #tpu.memory_space<vmem>>, vector<1x256x128xbf16>
    %20 = vector.shape_cast %19 : vector<1x256x128xbf16> to vector<256x128xbf16>
    %c0_14 = arith.constant 0 : index
    %c0_15 = arith.constant 0 : index
    %c0_16 = arith.constant 0 : index
    %21 = vector.load %arg4[%c0_14, %c0_15, %c0_16] : memref<3x128x256xbf16, #tpu.memory_space<vmem>>, vector<1x128x256xbf16>
    %22 = vector.shape_cast %21 : vector<1x128x256xbf16> to vector<128x256xbf16>
    %cst = arith.constant dense<0.000000e+00> : vector<256x256xf32>
    %23 = tpu.matmul %20, %22, %cst {dimension_numbers = #tpu.dot_dimension_numbers<[1], [0], [0], [1], [0, 0, 1, 1], [], []>} : vector<256x128xbf16>, vector<128x256xbf16>, vector<256x256xf32> -> vector<256x256xf32>
    %c1_17 = arith.constant 1 : index
    %c0_18 = arith.constant 0 : index
    %c0_19 = arith.constant 0 : index
    %24 = vector.load %arg9[%c1_17, %c0_18, %c0_19] : memref<3x256x128xbf16, #tpu.memory_space<vmem>>, vector<1x256x128xbf16>
    %25 = vector.shape_cast %24 : vector<1x256x128xbf16> to vector<256x128xbf16>
    %c1_20 = arith.constant 1 : index
    %c0_21 = arith.constant 0 : index
    %c0_22 = arith.constant 0 : index
    %26 = vector.load %arg4[%c1_20, %c0_21, %c0_22] : memref<3x128x256xbf16, #tpu.memory_space<vmem>>, vector<1x128x256xbf16>
    %27 = vector.shape_cast %26 : vector<1x128x256xbf16> to vector<128x256xbf16>
    %cst_23 = arith.constant dense<0.000000e+00> : vector<256x256xf32>
    %28 = tpu.matmul %25, %27, %cst_23 {dimension_numbers = #tpu.dot_dimension_numbers<[1], [0], [0], [1], [0, 0, 1, 1], [], []>} : vector<256x128xbf16>, vector<128x256xbf16>, vector<256x256xf32> -> vector<256x256xf32>
    %29 = arith.addf %23, %28 : vector<256x256xf32>
    %c2_24 = arith.constant 2 : index
    %c0_25 = arith.constant 0 : index
    %c0_26 = arith.constant 0 : index
    %30 = vector.load %arg9[%c2_24, %c0_25, %c0_26] : memref<3x256x128xbf16, #tpu.memory_space<vmem>>, vector<1x256x128xbf16>
    %31 = vector.shape_cast %30 : vector<1x256x128xbf16> to vector<256x128xbf16>
    %c2_27 = arith.constant 2 : index
    %c0_28 = arith.constant 0 : index
    %c0_29 = arith.constant 0 : index
    %32 = vector.load %arg4[%c2_27, %c0_28, %c0_29] : memref<3x128x256xbf16, #tpu.memory_space<vmem>>, vector<1x128x256xbf16>
    %33 = vector.shape_cast %32 : vector<1x128x256xbf16> to vector<128x256xbf16>
    %cst_30 = arith.constant dense<0.000000e+00> : vector<256x256xf32>
    %34 = tpu.matmul %31, %33, %cst_30 {dimension_numbers = #tpu.dot_dimension_numbers<[1], [0], [0], [1], [0, 0, 1, 1], [], []>} : vector<256x128xbf16>, vector<128x256xbf16>, vector<256x256xf32> -> vector<256x256xf32>
    %35 = arith.addf %29, %34 : vector<256x256xf32>
    %c0_31 = arith.constant 0 : index
    %c0_32 = arith.constant 0 : index
    %36 = vector.load %arg5[%c0_31, %c0_32] : memref<1x256xf32, #tpu.memory_space<vmem>>, vector<1x256xf32>
    %37 = vector.broadcast %36 : vector<1x256xf32> to vector<256x256xf32>
    %38 = arith.addf %35, %37 : vector<256x256xf32>
    %cst_33 = arith.constant 5.000000e-01 : f32
    %39 = vector.broadcast %cst_33 : f32 to vector<256x256xf32>
    %40 = arith.mulf %39, %38 : vector<256x256xf32>
    %cst_34 = arith.constant 0.707106769 : f32
    %41 = vector.broadcast %cst_34 : f32 to vector<256x256xf32>
    %42 = arith.mulf %38, %41 : vector<256x256xf32>
    %43 = math.absf %42 : vector<256x256xf32>
    %cst_35 = arith.constant 0.327591091 : f32
    %44 = vector.broadcast %cst_35 : f32 to vector<256x256xf32>
    %45 = arith.mulf %44, %43 : vector<256x256xf32>
    %cst_36 = arith.constant 1.000000e+00 : f32
    %46 = vector.broadcast %cst_36 : f32 to vector<256x256xf32>
    %47 = arith.addf %46, %45 : vector<256x256xf32>
    %48 = tpu.reciprocal %47 {approx = true} : vector<256x256xf32> -> vector<256x256xf32>
    %cst_37 = arith.constant 1.06140542 : f32
    %49 = vector.broadcast %cst_37 : f32 to vector<256x256xf32>
    %50 = arith.mulf %49, %48 : vector<256x256xf32>
    %cst_38 = arith.constant -1.45315206 : f32
    %51 = vector.broadcast %cst_38 : f32 to vector<256x256xf32>
    %52 = arith.addf %50, %51 : vector<256x256xf32>
    %53 = arith.mulf %52, %48 : vector<256x256xf32>
    %cst_39 = arith.constant 1.42141378 : f32
    %54 = vector.broadcast %cst_39 : f32 to vector<256x256xf32>
    %55 = arith.addf %53, %54 : vector<256x256xf32>
    %56 = arith.mulf %55, %48 : vector<256x256xf32>
    %cst_40 = arith.constant -0.284496725 : f32
    %57 = vector.broadcast %cst_40 : f32 to vector<256x256xf32>
    %58 = arith.addf %56, %57 : vector<256x256xf32>
    %59 = arith.mulf %58, %48 : vector<256x256xf32>
    %cst_41 = arith.constant 0.254829586 : f32
    %60 = vector.broadcast %cst_41 : f32 to vector<256x256xf32>
    %61 = arith.addf %59, %60 : vector<256x256xf32>
    %62 = arith.mulf %61, %48 : vector<256x256xf32>
    %cst_42 = arith.constant 0.000000e+00 : f32
    %63 = vector.broadcast %cst_42 : f32 to vector<256x256xf32>
    %64 = arith.subf %63, %43 : vector<256x256xf32>
    %65 = arith.mulf %64, %43 : vector<256x256xf32>
    %66 = math.exp %65 : vector<256x256xf32>
    %67 = arith.mulf %62, %66 : vector<256x256xf32>
    %cst_43 = arith.constant 1.000000e+00 : f32
    %68 = vector.broadcast %cst_43 : f32 to vector<256x256xf32>
    %69 = arith.subf %68, %67 : vector<256x256xf32>
    %cst_44 = arith.constant 0.000000e+00 : f32
    %70 = vector.broadcast %cst_44 : f32 to vector<256x256xf32>
    %71 = arith.cmpf olt, %42, %70 : vector<256x256xf32>
    %cst_45 = arith.constant 0.000000e+00 : f32
    %72 = vector.broadcast %cst_45 : f32 to vector<256x256xf32>
    %73 = arith.subf %72, %69 : vector<256x256xf32>
    %74 = arith.select %71, %73, %69 : vector<256x256xi1>, vector<256x256xf32>
    %cst_46 = arith.constant 1.000000e+00 : f32
    %75 = vector.broadcast %cst_46 : f32 to vector<256x256xf32>
    %76 = arith.addf %75, %74 : vector<256x256xf32>
    %77 = arith.mulf %40, %76 : vector<256x256xf32>
    %78 = arith.truncf %77 : vector<256x256xf32> to vector<256x256xbf16>
    %c0_47 = arith.constant 0 : index
    %c0_48 = arith.constant 0 : index
    %79 = vector.load %arg6[%c0_47, %c0_48] : memref<256x128xbf16, #tpu.memory_space<vmem>>, vector<256x128xbf16>
    %cst_49 = arith.constant dense<0.000000e+00> : vector<256x128xf32>
    %80 = tpu.matmul %78, %79, %cst_49 {dimension_numbers = #tpu.dot_dimension_numbers<[1], [0], [0], [1], [0, 0, 1, 1], [], []>} : vector<256x256xbf16>, vector<256x128xbf16>, vector<256x128xf32> -> vector<256x128xf32>
    %c0_50 = arith.constant 0 : index
    %c0_51 = arith.constant 0 : index
    %81 = vector.load %arg7[%c0_50, %c0_51] : memref<1x128xf32, #tpu.memory_space<vmem>>, vector<1x128xf32>
    %82 = vector.broadcast %81 : vector<1x128xf32> to vector<256x128xf32>
    %83 = arith.addf %80, %82 : vector<256x128xf32>
    %c0_52 = arith.constant 0 : index
    %c0_53 = arith.constant 0 : index
    %84 = vector.load %arg8[%c0_52, %c0_53] : memref<256x128xf32, #tpu.memory_space<vmem>>, vector<256x128xf32>
    tpu.vector_store %arg8[%c0_52, %c0_53], %83 {strides = array<i32>} : memref<256x128xf32, #tpu.memory_space<vmem>>, vector<256x128xf32>,
    return
  }
  func.func @transform_0(%arg0: i32, %arg1: i32) -> (i32, i32) {
    %c0_i32 = arith.constant 0 : i32
    %c0_i32_0 = arith.constant 0 : i32
    return %arg0, %c0_i32 : i32, i32
  }
  func.func @transform_1(%arg0: i32, %arg1: i32) -> (i32, i32, i32) {
    %c0_i32 = arith.constant 0 : i32
    %c0_i32_0 = arith.constant 0 : i32
    %c0_i32_1 = arith.constant 0 : i32
    return %arg0, %c0_i32, %c0_i32_0 : i32, i32, i32
  }
  func.func @transform_2(%arg0: i32, %arg1: i32) -> (i32, i32, i32) {
    %c0_i32 = arith.constant 0 : i32
    %c0_i32_0 = arith.constant 0 : i32
    %c0_i32_1 = arith.constant 0 : i32
    return %c0_i32, %c0_i32_0, %arg1 : i32, i32, i32
  }
  func.func @transform_3(%arg0: i32, %arg1: i32) -> (i32, i32) {
    %c0_i32 = arith.constant 0 : i32
    %c0_i32_0 = arith.constant 0 : i32
    return %c0_i32, %arg1 : i32, i32
  }
  func.func @transform_4(%arg0: i32, %arg1: i32) -> (i32, i32) {
    %c0_i32 = arith.constant 0 : i32
    %c0_i32_0 = arith.constant 0 : i32
    return %arg1, %c0_i32 : i32, i32
  }
  func.func @transform_5(%arg0: i32, %arg1: i32) -> (i32, i32) {
    %c0_i32 = arith.constant 0 : i32
    %c0_i32_0 = arith.constant 0 : i32
    %c0_i32_1 = arith.constant 0 : i32
    return %c0_i32, %c0_i32_0 : i32, i32
  }
  func.func @transform_6(%arg0: i32, %arg1: i32) -> (i32, i32) {
    %c0_i32 = arith.constant 0 : i32
    %c0_i32_0 = arith.constant 0 : i32
    return %arg0, %c0_i32 : i32, i32
  }
}

</mosaic_0001>

<llo_original>
// kernel: tpu_custom_call.1
$region0: #{tpu_custom_call.1}
  #allocation0 [shape = 'u32[]', space=smem, size = 0x4, offset = 0x4, fixed_abs, tag = 'smem constant byte address 0x4 - core index']
  #allocation1 [shape = 'u32[144,128]{1,0:T(1,128)}', space=vmem, size = 0x12000, scoped, tag = 'internal scratch']
  #allocation2 [shape = 'bf16[3,256,128]{2,1,0:T(8,128)(2,1)}', space=vmem, size = 0x30000, scoped, tag = 'scratch operand']
  %s0 = inlined_call_operand.hbm [shape: f32[512,128], index: 0, kind: input, shape index: {}]
  %s1 = inlined_call_operand.hbm [shape: bf16[2,4,128], index: 1, kind: input, shape index: {}]
  %s2 = inlined_call_operand.hbm [shape: bf16[3,128,256], index: 2, kind: input, shape index: {}]
  %s3 = inlined_call_operand.vmem [shape: f32[1,256], index: 3, kind: input, shape index: {}]
  %s4 = inlined_call_operand.hbm [shape: bf16[256,128], index: 4, kind: input, shape index: {}]
  %s5 = inlined_call_operand.vmem [shape: f32[1,128], index: 5, kind: input, shape index: {}]
  %s6 = inlined_call_operand.hbm [shape: f32[512,128], index: 6, kind: output, shape index: {}]
  %s7 = sld [smem:[#allocation0]]
  $region73: #{tpu_custom_call.1} parent=0
    _
  %s9 = ssub.s32 1, %s7
  %s10 = scalar_select 0, %s9, %s7
  $region1: #{tpu_custom_call.1} parent=0
    #allocation3 [shape = 'u8[262144]{0}', space=vmem, size = 0x40000, scoped, tag = 'input window, operand 0']
    #allocation4 [shape = 's32[2]{0}', space=sflag, size = 0x8, scoped, tag = 'scoped memory for tpu_custom_call.1']
    #allocation5 [shape = 's32[2]{0}', space=sflag, size = 0x8, scoped, tag = 'scoped memory for tpu_custom_call.1']
    #allocation6 [shape = 'u8[2048]{0}', space=vmem, size = 0x800, scoped, tag = 'input window, operand 1']
    #allocation7 [shape = 's32[2]{0}', space=sflag, size = 0x8, scoped, tag = 'scoped memory for tpu_custom_call.1']
    #allocation8 [shape = 'u8[196608]{0}', space=vmem, size = 0x30000, scoped, tag = 'input window, operand 2, single buffered']
    #allocation9 [shape = 'u8[65536]{0}', space=vmem, size = 0x10000, scoped, tag = 'input window, operand 4, single buffered']
    #allocation10 [shape = 's32[1]{0}', space=sflag, size = 0x4, scoped, tag = 'scoped memory for tpu_custom_call.1']
    #allocation11 [shape = 'u8[262144]{0}', space=vmem, size = 0x40000, scoped, tag = 'output window, operand 0']
    %11 = vsyncpa [#allocation4], 0
    %s12 = scalar_lea.sflag [#allocation4], 1
    %13 = vsyncpa %s12, 0
    %14 = vsyncpa [#allocation7], 0
    %s15 = scalar_lea.sflag [#allocation7], 1
    %16 = vsyncpa %s15, 0
    %17 = vsyncpa [#allocation10], 0
    %18 = vsyncpa [#allocation5], 0
    %s19 = scalar_lea.sflag [#allocation5], 1
    %20 = vsyncpa %s19, 0
    loop: start=0, step=1, limit=4
    $region2: #{tpu_custom_call.1} parent=1 // loop_pre_header
      _
    $region3: #{tpu_custom_call.1} parent=1 // loop_header
      %s22 = sphi 0, %s26
      %p23 = scmp.ge.s32.totalorder %s22, 4
      %s29 = sphi 0, %s41
      %s30 = sphi 0, %s37
      %s31 = sphi 0, %s29
      %s32 = sphi 0, %s30
      %s33 = sphi 0, %s31
      %s34 = sphi 0, %s32
      %s44 = sphi 0, %s46
      %s47 = sphi 0, %s44
      %s48 = sphi 0, %s47
      %s64 = sphi 0, %s48
      %s70 = sphi 0, %s72
      %s73 = sphi 0, %s70
      %s74 = sphi 0, %s73
      %s90 = sphi 0, %s74
      %s96 = sphi 0, %s98
      %s99 = sphi 0, %s96
      %s100 = sphi 0, %s99
      %s116 = sphi 0, %s100
      %s122 = sphi 0, %s124
      %s125 = sphi 0, %s122
      %s126 = sphi 0, %s125
      %s142 = sphi 0, %s126
      %s148 = sphi 0, %s150
      %s151 = sphi 0, %s148
      %s152 = sphi 0, %s151
      %s168 = sphi 0, %s152
      %s172 = sphi 0, %s172
      %s174 = sphi 0, %s172
      %s175 = sphi 0, %s174
      %s189 = sphi 0, %s175
      %s195 = sphi 0, %s197
      %s198 = sphi 0, %s195
      %s199 = sphi 0, %s198
      %s215 = sphi 0, %s199
    $region4: #{tpu_custom_call.1} parent=1 // loop_header_branch
      %25 = sbr.rel (%p23) target = $region8
    $region5: #{tpu_custom_call.1} parent=1 // loop_body
      %s27 = ssub.s32 %s22, 1
      %s28 = ssub.s32 %s22, 2
      %s35 = sadd.s32 1, %s30
      %p36 = scmp.ge.s32.totalorder %s35, 1
      %s37 = scalar_select %p36, 0, %s35
      %s38 = sadd.s32 1, %s29
      %s39 = scalar_select %p36, %s38, %s29
      %p40 = scmp.ge.s32.totalorder %s39, 2
      %s41 = scalar_select %p40, 0, %s39
      %s42 = ssub.s32 %s29, %s41
      %p43 = scmp.eq.s32.totalorder %s42, 0
      %s45 = sadd.s32 %s44, 1
      %s46 = scalar_select %p43, %s44, %s45
      %p49 = pneg %p43
      %p50 = scmp.eq.s32.totalorder %s22, 1
      %p51 = por %p49, %p50
      %p52 = scmp.ne.s32.totalorder %s44, %s47
      %p53 = scmp.eq.s32.totalorder %s22, 0
      %p54 = por %p52, %p53
      %p55 = scmp.ne.s32.totalorder %s44, %s47
      %p56 = scmp.eq.s32.totalorder %s27, 1
      %p57 = por %p55, %p56
      %p58 = scmp.ne.s32.totalorder %s47, %s48
      %p59 = scmp.eq.s32.totalorder %s27, 0
      %p60 = por %p58, %p59
      %p61 = scmp.ne.s32.totalorder %s47, %s48
      %p62 = scmp.eq.s32.totalorder %s28, 1
      %p63 = por %p61, %p62
      %p65 = scmp.ne.s32.totalorder %s48, %s64
      %p66 = scmp.eq.s32.totalorder %s28, 0
      %p67 = por %p65, %p66
      %s68 = ssub.s32 %s29, %s41
      %p69 = scmp.eq.s32.totalorder %s68, 0
      %s71 = sadd.s32 %s70, 1
      %s72 = scalar_select %p69, %s70, %s71
      %p75 = pneg %p69
      %p76 = scmp.eq.s32.totalorder %s22, 1
      %p77 = por %p75, %p76
      %p78 = scmp.ne.s32.totalorder %s70, %s73
      %p79 = scmp.eq.s32.totalorder %s22, 0
      %p80 = por %p78, %p79
      %p81 = scmp.ne.s32.totalorder %s70, %s73
      %p82 = scmp.eq.s32.totalorder %s27, 1
      %p83 = por %p81, %p82
      %p84 = scmp.ne.s32.totalorder %s73, %s74
      %p85 = scmp.eq.s32.totalorder %s27, 0
      %p86 = por %p84, %p85
      %p87 = scmp.ne.s32.totalorder %s73, %s74
      %p88 = scmp.eq.s32.totalorder %s28, 1
      %p89 = por %p87, %p88
      %p91 = scmp.ne.s32.totalorder %s74, %s90
      %p92 = scmp.eq.s32.totalorder %s28, 0
      %p93 = por %p91, %p92
      %s94 = ssub.s32 %s30, %s37
      %p95 = scmp.eq.s32.totalorder %s94, 0
      %s97 = sadd.s32 %s96, 1
      %s98 = scalar_select %p95, %s96, %s97
      %p101 = pneg %p95
      %p102 = scmp.eq.s32.totalorder %s22, 1
      %p103 = por %p101, %p102
      %p104 = scmp.ne.s32.totalorder %s96, %s99
      %p105 = scmp.eq.s32.totalorder %s22, 0
      %p106 = por %p104, %p105
      %p107 = scmp.ne.s32.totalorder %s96, %s99
      %p108 = scmp.eq.s32.totalorder %s27, 1
      %p109 = por %p107, %p108
      %p110 = scmp.ne.s32.totalorder %s99, %s100
      %p111 = scmp.eq.s32.totalorder %s27, 0
      %p112 = por %p110, %p111
      %p113 = scmp.ne.s32.totalorder %s99, %s100
      %p114 = scmp.eq.s32.totalorder %s28, 1
      %p115 = por %p113, %p114
      %p117 = scmp.ne.s32.totalorder %s100, %s116
      %p118 = scmp.eq.s32.totalorder %s28, 0
      %p119 = por %p117, %p118
      %s120 = ssub.s32 %s30, %s37
      %p121 = scmp.eq.s32.totalorder %s120, 0
      %s123 = sadd.s32 %s122, 1
      %s124 = scalar_select %p121, %s122, %s123
      %p127 = pneg %p121
      %p128 = scmp.eq.s32.totalorder %s22, 1
      %p129 = por %p127, %p128
      %p130 = scmp.ne.s32.totalorder %s122, %s125
      %p131 = scmp.eq.s32.totalorder %s22, 0
      %p132 = por %p130, %p131
      %p133 = scmp.ne.s32.totalorder %s122, %s125
      %p134 = scmp.eq.s32.totalorder %s27, 1
      %p135 = por %p133, %p134
      %p136 = scmp.ne.s32.totalorder %s125, %s126
      %p137 = scmp.eq.s32.totalorder %s27, 0
      %p138 = por %p136, %p137
      %p139 = scmp.ne.s32.totalorder %s125, %s126
      %p140 = scmp.eq.s32.totalorder %s28, 1
      %p141 = por %p139, %p140
      %p143 = scmp.ne.s32.totalorder %s126, %s142
      %p144 = scmp.eq.s32.totalorder %s28, 0
      %p145 = por %p143, %p144
      %s146 = ssub.s32 %s30, %s37
      %p147 = scmp.eq.s32.totalorder %s146, 0
      %s149 = sadd.s32 %s148, 1
      %s150 = scalar_select %p147, %s148, %s149
      %p153 = pneg %p147
      %p154 = scmp.eq.s32.totalorder %s22, 1
      %p155 = por %p153, %p154
      %p156 = scmp.ne.s32.totalorder %s148, %s151
      %p157 = scmp.eq.s32.totalorder %s22, 0
      %p158 = por %p156, %p157
      %p159 = scmp.ne.s32.totalorder %s148, %s151
      %p160 = scmp.eq.s32.totalorder %s27, 1
      %p161 = por %p159, %p160
      %p162 = scmp.ne.s32.totalorder %s151, %s152
      %p163 = scmp.eq.s32.totalorder %s27, 0
      %p164 = por %p162, %p163
      %p165 = scmp.ne.s32.totalorder %s151, %s152
      %p166 = scmp.eq.s32.totalorder %s28, 1
      %p167 = por %p165, %p166
      %p169 = scmp.ne.s32.totalorder %s152, %s168
      %p170 = scmp.eq.s32.totalorder %s28, 0
      %p171 = por %p169, %p170
      %s173 = sadd.s32 %s172, 1
      %p176 = scmp.eq.s32.totalorder %s22, 1
      %p177 = scmp.ne.s32.totalorder %s172, %s174
      %p178 = scmp.eq.s32.totalorder %s22, 0
      %p179 = por %p177, %p178
      %p180 = scmp.ne.s32.totalorder %s172, %s174
      %p181 = scmp.eq.s32.totalorder %s27, 1
      %p182 = por %p180, %p181
      %p183 = scmp.ne.s32.totalorder %s174, %s175
      %p184 = scmp.eq.s32.totalorder %s27, 0
      %p185 = por %p183, %p184
      %p186 = scmp.ne.s32.totalorder %s174, %s175
      %p187 = scmp.eq.s32.totalorder %s28, 1
      %p188 = por %p186, %p187
      %p190 = scmp.ne.s32.totalorder %s175, %s189
      %p191 = scmp.eq.s32.totalorder %s28, 0
      %p192 = por %p190, %p191
      %s193 = ssub.s32 %s29, %s41
      %p194 = scmp.eq.s32.totalorder %s193, 0
      %s196 = sadd.s32 %s195, 1
      %s197 = scalar_select %p194, %s195, %s196
      %p200 = pneg %p194
      %p201 = scmp.eq.s32.totalorder %s22, 1
      %p202 = por %p200, %p201
      %p203 = scmp.ne.s32.totalorder %s195, %s198
      %p204 = scmp.eq.s32.totalorder %s22, 0
      %p205 = por %p203, %p204
      %p206 = scmp.ne.s32.totalorder %s195, %s198
      %p207 = scmp.eq.s32.totalorder %s27, 1
      %p208 = por %p206, %p207
      %p209 = scmp.ne.s32.totalorder %s198, %s199
      %p210 = scmp.eq.s32.totalorder %s27, 0
      %p211 = por %p209, %p210
      %p212 = scmp.ne.s32.totalorder %s198, %s199
      %p213 = scmp.eq.s32.totalorder %s28, 1
      %p214 = por %p212, %p213
      %p216 = scmp.ne.s32.totalorder %s199, %s215
      %p217 = scmp.eq.s32.totalorder %s28, 0
      %p218 = por %p216, %p217
      %p219 = scmp.le.s32.totalorder 1, %s22
      %p220 = scmp.lt.s32.totalorder %s22, 3
      %p221 = pnand %p219, %p220
      %p222 = pneg %p221
      // Predicated region
      $region9: #{tpu_custom_call.1} parent=5 // pred_check
        _
      $region10: #{tpu_custom_call.1} parent=5 // pred_check_branch
        %224 = sbr.rel (%p221) target = $region12
      $region11: #{tpu_custom_call.1} parent=5 // pred_region
        %s225 = ssub.s32 %s22, 1
        // Predicated region
        $region13: #{tpu_custom_call.1} parent=11 // pred_check
          %p226 = pneg %p112
        $region14: #{tpu_custom_call.1} parent=11 // pred_check_branch
          %228 = sbr.rel (%p226) target = $region16
        $region15: #{tpu_custom_call.1} parent=11 // pred_region
          %s229 = smul.u32 2, %s32
          %s231 = ssub.s32 6144, 6144
          %232 = vsyncadd [#allocation7], %s231
          %s233 = smul.addr %s229, 64
          %s234 = scalar_lea.hbm %s2, %s233
          %s235 = sshll.u32 [#allocation8], 4
          %s236 = int_to_ptr.vmem [resolvable:$true] %s235
          %241 = dma.hbm_to_vmem [thread:$0]  %s234, 6144, %s236, [#allocation7], 128, 128, 8
        $region16: #{tpu_custom_call.1} parent=11 // pred_fallthru
          _
        // Predicated region
        $region17: #{tpu_custom_call.1} parent=11 // pred_check
          %p242 = pneg %p138
        $region18: #{tpu_custom_call.1} parent=11 // pred_check_branch
          %244 = sbr.rel (%p242) target = $region20
        $region19: #{tpu_custom_call.1} parent=11 // pred_region
          %s245 = smul.u32 2, %s32
          %p246 = scmp.lt.s32.totalorder %s245, 1
          %s247 = scalar_select %p246, %s245, 1
          %s248 = scalar_lea.vmem %s3, %s247
          %s249 = smul.u32 2, %s32
        $region20: #{tpu_custom_call.1} parent=11 // pred_fallthru
          _
        // Predicated region
        $region21: #{tpu_custom_call.1} parent=11 // pred_check
          %p250 = pneg %p164
        $region22: #{tpu_custom_call.1} parent=11 // pred_check_branch
          %252 = sbr.rel (%p250) target = $region24
        $region23: #{tpu_custom_call.1} parent=11 // pred_region
          %s253 = smul.u32 32, %s32
          %s255 = ssub.s32 2048, 2048
          %256 = vsyncadd [#allocation10], %s255
          %s257 = smul.addr %s253, 64
          %s258 = scalar_lea.hbm %s4, %s257
          %s259 = sshll.u32 [#allocation9], 4
          %s260 = int_to_ptr.vmem [resolvable:$true] %s259
          %265 = dma.hbm_to_vmem [thread:$0]  %s258, 2048, %s260, [#allocation10], 64, 64, 4
        $region24: #{tpu_custom_call.1} parent=11 // pred_fallthru
          _
        // Predicated region
        $region25: #{tpu_custom_call.1} parent=11 // pred_check
          %p266 = pneg %p185
        $region26: #{tpu_custom_call.1} parent=11 // pred_check_branch
          %268 = sbr.rel (%p266) target = $region28
        $region27: #{tpu_custom_call.1} parent=11 // pred_region
          _
        $region28: #{tpu_custom_call.1} parent=11 // pred_fallthru
          _
      $region12: #{tpu_custom_call.1} parent=5 // pred_fallthru
        _
      %p269 = scmp.lt.s32.totalorder %s22, 2
      // Predicated region
      $region29: #{tpu_custom_call.1} parent=5 // pred_check
        %p270 = pneg %p269
      $region30: #{tpu_custom_call.1} parent=5 // pred_check_branch
        %272 = sbr.rel (%p270) target = $region32
      $region31: #{tpu_custom_call.1} parent=5 // pred_region
        // Predicated region
        $region33: #{tpu_custom_call.1} parent=31 // pred_check
          %p273 = pneg %p54
        $region34: #{tpu_custom_call.1} parent=31 // pred_check_branch
          %275 = sbr.rel (%p273) target = $region36
        $region35: #{tpu_custom_call.1} parent=31 // pred_region
          %s276 = sand.u32 %s44, 1
          %s277 = scalar_lea.sflag [#allocation4], %s276
          %s278 = sand.u32 %s44, 1
          %s279 = smul.addr %s278, 256
          %s280 = scalar_lea.vmem [#allocation3], %s279
          %s281 = smul.u32 32, %s29
          %s283 = ssub.s32 4096, 4096
          %284 = vsyncadd %s277, %s283
          %s285 = smul.addr %s281, 128
          %s286 = scalar_lea.hbm %s0, %s285
          %s287 = sshll.u32 %s280, 4
          %s288 = int_to_ptr.vmem [resolvable:$true] %s287
          %293 = dma.hbm_to_vmem [thread:$0]  %s286, 4096, %s288, %s277, 128, 128, 8
        $region36: #{tpu_custom_call.1} parent=31 // pred_fallthru
          _
        // Predicated region
        $region37: #{tpu_custom_call.1} parent=31 // pred_check
          %p294 = pneg %p80
        $region38: #{tpu_custom_call.1} parent=31 // pred_check_branch
          %296 = sbr.rel (%p294) target = $region40
        $region39: #{tpu_custom_call.1} parent=31 // pred_region
          %s297 = sand.u32 %s22, 1
          %s298 = scalar_lea.sflag [#allocation7], %s297
          %s299 = sand.u32 %s70, 1
          %s300 = smul.addr %s299, 2
          %s301 = scalar_lea.vmem [#allocation6], %s300
          %s303 = ssub.s32 32, 32
          %304 = vsyncadd %s298, %s303
          %s305 = smul.addr %s29, 32
          %s306 = scalar_lea.hbm %s1, %s305
          %s308 = sshll.u32 %s301, 4
          %s309 = int_to_ptr.vmem [resolvable:$true] %s308
          %311 = dma.hbm_to_vmem [thread:$0]  %s306, 32, %s309, %s298
        $region40: #{tpu_custom_call.1} parent=31 // pred_fallthru
          _
      $region32: #{tpu_custom_call.1} parent=5 // pred_fallthru
        _
      %p312 = scmp.le.s32.totalorder 1, %s22
      %p313 = scmp.lt.s32.totalorder %s22, 3
      %p314 = pnand %p312, %p313
      %p315 = pneg %p314
      // Predicated region
      $region41: #{tpu_custom_call.1} parent=5 // pred_check
        _
      $region42: #{tpu_custom_call.1} parent=5 // pred_check_branch
        %317 = sbr.rel (%p314) target = $region44
      $region43: #{tpu_custom_call.1} parent=5 // pred_region
        %s318 = ssub.s32 %s22, 1
        %s319 = sand.u32 %s47, 1
        %s320 = scalar_lea.sflag [#allocation4], %s319
        %s321 = sand.u32 %s47, 1
        %s322 = smul.addr %s321, 256
        %s323 = scalar_lea.vmem [#allocation3], %s322
        // Predicated region
        $region45: #{tpu_custom_call.1} parent=43 // pred_check
          %p324 = pneg %p60
        $region46: #{tpu_custom_call.1} parent=43 // pred_check_branch
          %326 = sbr.rel (%p324) target = $region48
        $region47: #{tpu_custom_call.1} parent=43 // pred_region
          %327 = dma.done %s320, 4096
        $region48: #{tpu_custom_call.1} parent=43 // pred_fallthru
          _
        %s328 = sand.u32 %s27, 1
        %s329 = scalar_lea.sflag [#allocation7], %s328
        %s330 = sand.u32 %s73, 1
        %s331 = smul.addr %s330, 2
        %s332 = scalar_lea.vmem [#allocation6], %s331
        // Predicated region
        $region49: #{tpu_custom_call.1} parent=43 // pred_check
          %p333 = pneg %p86
        $region50: #{tpu_custom_call.1} parent=43 // pred_check_branch
          %335 = sbr.rel (%p333) target = $region52
        $region51: #{tpu_custom_call.1} parent=43 // pred_region
          %336 = dma.done %s329, 32
        $region52: #{tpu_custom_call.1} parent=43 // pred_fallthru
          _
        // Predicated region
        $region53: #{tpu_custom_call.1} parent=43 // pred_check
          %p337 = pneg %p112
        $region54: #{tpu_custom_call.1} parent=43 // pred_check_branch
          %339 = sbr.rel (%p337) target = $region56
        $region55: #{tpu_custom_call.1} parent=43 // pred_region
          %340 = dma.done [#allocation7], 6144
        $region56: #{tpu_custom_call.1} parent=43 // pred_fallthru
          _
        // Predicated region
        $region57: #{tpu_custom_call.1} parent=43 // pred_check
          %p341 = pneg %p164
        $region58: #{tpu_custom_call.1} parent=43 // pred_check_branch
          %343 = sbr.rel (%p341) target = $region60
        $region59: #{tpu_custom_call.1} parent=43 // pred_region
          %344 = dma.done [#allocation10], 2048
        $region60: #{tpu_custom_call.1} parent=43 // pred_fallthru
          _
        %s345 = sand.u32 %s47, 1
        %s346 = scalar_lea.sflag [#allocation4], %s345
        %s347 = sand.u32 %s47, 1
        %s348 = smul.addr %s347, 256
        %s349 = scalar_lea.vmem [#allocation3], %s348
        %p350 = pneg %p60
        %p351 = pneg %p57
        %s352 = sand.u32 %s27, 1
        %s353 = scalar_lea.sflag [#allocation7], %s352
        %s354 = sand.u32 %s73, 1
        %s355 = smul.addr %s354, 2
        %s356 = scalar_lea.vmem [#allocation6], %s355
        %p357 = pneg %p86
        %p358 = pneg %p83
        %p359 = pneg %p112
        %p360 = pneg %p109
        %s361 = smul.u32 2, %s32
        %p362 = scmp.lt.s32.totalorder %s361, 1
        %s363 = scalar_select %p362, %s361, 1
        %s364 = scalar_lea.vmem %s3, %s363
        %p365 = pneg %p138
        %p366 = pneg %p135
        %p367 = pneg %p164
        %p368 = pneg %p161
        %p369 = pneg %p185
        %p370 = pneg %p182
        %p371 = pneg %p211
        %p372 = pneg %p208
        %s373 = sand.u32 %s198, 1
        %s374 = scalar_lea.sflag [#allocation5], %s373
        %s375 = sand.u32 %s198, 1
        %s376 = smul.addr %s375, 256
        %s377 = scalar_lea.vmem [#allocation11], %s376
        %s378 = smul.u32 32, %s31
        %s379 = smul.u32 2, %s32
        %s380 = smul.u32 2, %s32
        %p381 = scmp.lt.s32.totalorder %s380, 1
        %s382 = scalar_select %p381, %s380, 1
        %s383 = scalar_lea.vmem %s3, %s382
        %s384 = smul.u32 2, %s32
        %s385 = smul.u32 32, %s32
        %s386 = smul.u32 32, %s31
        %v388 = vld [vmem:[%s323] sm:$0xff]
        %v389 = vld [vmem:[%s323 + $0x8] sm:$0xff]
        %v390 = vld [vmem:[%s323 + $0x10] sm:$0xff]
        %v391 = vld [vmem:[%s323 + $0x18] sm:$0xff]
        %v392 = vld [vmem:[%s323 + $0x20] sm:$0xff]
        %v393 = vld [vmem:[%s323 + $0x28] sm:$0xff]
        %v394 = vld [vmem:[%s323 + $0x30] sm:$0xff]
        %v395 = vld [vmem:[%s323 + $0x38] sm:$0xff]
        %v396 = vld [vmem:[%s323 + $0x40] sm:$0xff]
        %v397 = vld [vmem:[%s323 + $0x48] sm:$0xff]
        %v398 = vld [vmem:[%s323 + $0x50] sm:$0xff]
        %v399 = vld [vmem:[%s323 + $0x58] sm:$0xff]
        %v400 = vld [vmem:[%s323 + $0x60] sm:$0xff]
        %v401 = vld [vmem:[%s323 + $0x68] sm:$0xff]
        %v402 = vld [vmem:[%s323 + $0x70] sm:$0xff]
        %v403 = vld [vmem:[%s323 + $0x78] sm:$0xff]
        %v404 = vld [vmem:[%s323 + $0x80] sm:$0xff]
        %v405 = vld [vmem:[%s323 + $0x88] sm:$0xff]
        %v406 = vld [vmem:[%s323 + $0x90] sm:$0xff]
        %v407 = vld [vmem:[%s323 + $0x98] sm:$0xff]
        %v408 = vld [vmem:[%s323 + $0xa0] sm:$0xff]
        %v409 = vld [vmem:[%s323 + $0xa8] sm:$0xff]
        %v410 = vld [vmem:[%s323 + $0xb0] sm:$0xff]
        %v411 = vld [vmem:[%s323 + $0xb8] sm:$0xff]
        %v412 = vld [vmem:[%s323 + $0xc0] sm:$0xff]
        %v413 = vld [vmem:[%s323 + $0xc8] sm:$0xff]
        %v414 = vld [vmem:[%s323 + $0xd0] sm:$0xff]
        %v415 = vld [vmem:[%s323 + $0xd8] sm:$0xff]
        %v416 = vld [vmem:[%s323 + $0xe0] sm:$0xff]
        %v417 = vld [vmem:[%s323 + $0xe8] sm:$0xff]
        %v418 = vld [vmem:[%s323 + $0xf0] sm:$0xff]
        %v419 = vld [vmem:[%s323 + $0xf8] sm:$0xff]
        %v420 = vpack.c.bf16 %v389, %v388
        %v421 = vpack.c.bf16 %v391, %v390
        %v422 = vpack.c.bf16 %v393, %v392
        %v423 = vpack.c.bf16 %v395, %v394
        %v424 = vpack.c.bf16 %v397, %v396
        %v425 = vpack.c.bf16 %v399, %v398
        %v426 = vpack.c.bf16 %v401, %v400
        %v427 = vpack.c.bf16 %v403, %v402
        %v428 = vpack.c.bf16 %v405, %v404
        %v429 = vpack.c.bf16 %v407, %v406
        %v430 = vpack.c.bf16 %v409, %v408
        %v431 = vpack.c.bf16 %v411, %v410
        %v432 = vpack.c.bf16 %v413, %v412
        %v433 = vpack.c.bf16 %v415, %v414
        %v434 = vpack.c.bf16 %v417, %v416
        %v435 = vpack.c.bf16 %v419, %v418
        %v436 = vld [vmem:[%s332] sm:$0x3]
        %vm453 = vcmask 1040384
        %v454 = vrot.slane %v420, 7
        %v455 = vrot.slane %v421, 7
        %v456 = vsel %vm453, %v454, %v455
        %v457 = vrot.slane %v422, 7
        %v458 = vsel %vm453, %v455, %v457
        %v459 = vrot.slane %v423, 7
        %v460 = vsel %vm453, %v457, %v459
        %v461 = vrot.slane %v424, 7
        %v462 = vsel %vm453, %v459, %v461
        %v463 = vrot.slane %v425, 7
        %v464 = vsel %vm453, %v461, %v463
        %v465 = vrot.slane %v426, 7
        %v466 = vsel %vm453, %v463, %v465
        %v467 = vrot.slane %v427, 7
        %v468 = vsel %vm453, %v465, %v467
        %v469 = vrot.slane %v428, 7
        %v470 = vsel %vm453, %v467, %v469
        %v471 = vrot.slane %v429, 7
        %v472 = vsel %vm453, %v469, %v471
        %v473 = vrot.slane %v430, 7
        %v474 = vsel %vm453, %v471, %v473
        %v475 = vrot.slane %v431, 7
        %v476 = vsel %vm453, %v473, %v475
        %v477 = vrot.slane %v432, 7
        %v478 = vsel %vm453, %v475, %v477
        %v479 = vrot.slane %v433, 7
        %v480 = vsel %vm453, %v477, %v479
        %v481 = vrot.slane %v434, 7
        %v482 = vsel %vm453, %v479, %v481
        %v483 = vrot.slane %v435, 7
        %v484 = vsel %vm453, %v481, %v483
        %vm485 = vcmask 1040384
        %v488 = vsel %vm485, %v436, %v454
        %v490 = vsel %vm485, %v483, %v436
        %v492 = vunpack.c.l.b16 %v488
        %v493 = vunpack.c.h.b16 %v488
        %v494 = vunpack.c.l.b16 %v456
        %v495 = vunpack.c.h.b16 %v456
        %v496 = vunpack.c.l.b16 %v458
        %v497 = vunpack.c.h.b16 %v458
        %v498 = vunpack.c.l.b16 %v460
        %v499 = vunpack.c.h.b16 %v460
        %v500 = vunpack.c.l.b16 %v462
        %v501 = vunpack.c.h.b16 %v462
        %v502 = vunpack.c.l.b16 %v464
        %v503 = vunpack.c.h.b16 %v464
        %v504 = vunpack.c.l.b16 %v466
        %v505 = vunpack.c.h.b16 %v466
        %v506 = vunpack.c.l.b16 %v468
        %v507 = vunpack.c.h.b16 %v468
        %v508 = vunpack.c.l.b16 %v470
        %v509 = vunpack.c.h.b16 %v470
        %v510 = vunpack.c.l.b16 %v472
        %v511 = vunpack.c.h.b16 %v472
        %v512 = vunpack.c.l.b16 %v474
        %v513 = vunpack.c.h.b16 %v474
        %v514 = vunpack.c.l.b16 %v476
        %v515 = vunpack.c.h.b16 %v476
        %v516 = vunpack.c.l.b16 %v478
        %v517 = vunpack.c.h.b16 %v478
        %v518 = vunpack.c.l.b16 %v480
        %v519 = vunpack.c.h.b16 %v480
        %v520 = vunpack.c.l.b16 %v482
        %v521 = vunpack.c.h.b16 %v482
        %v522 = vunpack.c.l.b16 %v484
        %v523 = vunpack.c.h.b16 %v484
        %v524 = vpack.c.b16 %v492, %v492
        %v525 = vpack.c.b16 %v493, %v493
        %v526 = vpack.c.b16 %v494, %v494
        %v527 = vpack.c.b16 %v495, %v495
        %v528 = vpack.c.b16 %v496, %v496
        %v529 = vpack.c.b16 %v497, %v497
        %v530 = vpack.c.b16 %v498, %v498
        %v531 = vpack.c.b16 %v499, %v499
        %v532 = vpack.c.b16 %v500, %v500
        %v533 = vpack.c.b16 %v501, %v501
        %v534 = vpack.c.b16 %v502, %v502
        %v535 = vpack.c.b16 %v503, %v503
        %v536 = vpack.c.b16 %v504, %v504
        %v537 = vpack.c.b16 %v505, %v505
        %v538 = vpack.c.b16 %v506, %v506
        %v539 = vpack.c.b16 %v507, %v507
        %v540 = vpack.c.b16 %v508, %v508
        %v541 = vpack.c.b16 %v509, %v509
        %v542 = vpack.c.b16 %v510, %v510
        %v543 = vpack.c.b16 %v511, %v511
        %v544 = vpack.c.b16 %v512, %v512
        %v545 = vpack.c.b16 %v513, %v513
        %v546 = vpack.c.b16 %v514, %v514
        %v547 = vpack.c.b16 %v515, %v515
        %v548 = vpack.c.b16 %v516, %v516
        %v549 = vpack.c.b16 %v517, %v517
        %v550 = vpack.c.b16 %v518, %v518
        %v551 = vpack.c.b16 %v519, %v519
        %v552 = vpack.c.b16 %v520, %v520
        %v553 = vpack.c.b16 %v521, %v521
        %v554 = vpack.c.b16 %v522, %v522
        %v555 = vpack.c.b16 %v523, %v523
        %588 = vst [vmem:[#allocation2] sm:$0xf] %v524
        %589 = vst [vmem:[#allocation2 + $0x4] sm:$0xf] %v525
        %590 = vst [vmem:[#allocation2 + $0x8] sm:$0xf] %v526
        %591 = vst [vmem:[#allocation2 + $0xc] sm:$0xf] %v527
        %592 = vst [vmem:[#allocation2 + $0x10] sm:$0xf] %v528
        %593 = vst [vmem:[#allocation2 + $0x14] sm:$0xf] %v529
        %594 = vst [vmem:[#allocation2 + $0x18] sm:$0xf] %v530
        %595 = vst [vmem:[#allocation2 + $0x1c] sm:$0xf] %v531
        %596 = vst [vmem:[#allocation2 + $0x20] sm:$0xf] %v532
        %597 = vst [vmem:[#allocation2 + $0x24] sm:$0xf] %v533
        %598 = vst [vmem:[#allocation2 + $0x28] sm:$0xf] %v534
        %599 = vst [vmem:[#allocation2 + $0x2c] sm:$0xf] %v535
        %600 = vst [vmem:[#allocation2 + $0x30] sm:$0xf] %v536
        %601 = vst [vmem:[#allocation2 + $0x34] sm:$0xf] %v537
        %602 = vst [vmem:[#allocation2 + $0x38] sm:$0xf] %v538
        %603 = vst [vmem:[#allocation2 + $0x3c] sm:$0xf] %v539
        %604 = vst [vmem:[#allocation2 + $0x40] sm:$0xf] %v540
        %605 = vst [vmem:[#allocation2 + $0x44] sm:$0xf] %v541
        %606 = vst [vmem:[#allocation2 + $0x48] sm:$0xf] %v542
        %607 = vst [vmem:[#allocation2 + $0x4c] sm:$0xf] %v543
        %608 = vst [vmem:[#allocation2 + $0x50] sm:$0xf] %v544
        %609 = vst [vmem:[#allocation2 + $0x54] sm:$0xf] %v545
        %610 = vst [vmem:[#allocation2 + $0x58] sm:$0xf] %v546
        %611 = vst [vmem:[#allocation2 + $0x5c] sm:$0xf] %v547
        %612 = vst [vmem:[#allocation2 + $0x60] sm:$0xf] %v548
        %613 = vst [vmem:[#allocation2 + $0x64] sm:$0xf] %v549
        %614 = vst [vmem:[#allocation2 + $0x68] sm:$0xf] %v550
        %615 = vst [vmem:[#allocation2 + $0x6c] sm:$0xf] %v551
        %616 = vst [vmem:[#allocation2 + $0x70] sm:$0xf] %v552
        %617 = vst [vmem:[#allocation2 + $0x74] sm:$0xf] %v553
        %618 = vst [vmem:[#allocation2 + $0x78] sm:$0xf] %v554
        %619 = vst [vmem:[#allocation2 + $0x7c] sm:$0xf] %v555
        %v621 = vunpack.c.l.b16 %v490
        %v622 = vpack.c.b16 %v621, %v621
        %vm623 = vcmask 1042432
        %vm624 = vcmask 1046532
        %vm625 = vmor %vm623, %vm624
        %v626 = vrot.slane %v524, 5
        %v627 = vrot.slane %v626, 4
        %v628 = vrot.slane %v525, 5
        %v629 = vsel %vm625, %v627, %v628
        %v630 = vrot.slane %v628, 4
        %v631 = vrot.slane %v526, 5
        %v632 = vsel %vm625, %v630, %v631
        %v633 = vrot.slane %v631, 4
        %v634 = vrot.slane %v527, 5
        %v635 = vsel %vm625, %v633, %v634
        %v636 = vrot.slane %v634, 4
        %v637 = vrot.slane %v528, 5
        %v638 = vsel %vm625, %v636, %v637
        %v639 = vrot.slane %v637, 4
        %v640 = vrot.slane %v529, 5
        %v641 = vsel %vm625, %v639, %v640
        %v642 = vrot.slane %v640, 4
        %v643 = vrot.slane %v530, 5
        %v644 = vsel %vm625, %v642, %v643
        %v645 = vrot.slane %v643, 4
        %v646 = vrot.slane %v531, 5
        %v647 = vsel %vm625, %v645, %v646
        %v648 = vrot.slane %v646, 4
        %v649 = vrot.slane %v532, 5
        %v650 = vsel %vm625, %v648, %v649
        %v651 = vrot.slane %v649, 4
        %v652 = vrot.slane %v533, 5
        %v653 = vsel %vm625, %v651, %v652
        %v654 = vrot.slane %v652, 4
        %v655 = vrot.slane %v534, 5
        %v656 = vsel %vm625, %v654, %v655
        %v657 = vrot.slane %v655, 4
        %v658 = vrot.slane %v535, 5
        %v659 = vsel %vm625, %v657, %v658
        %v660 = vrot.slane %v658, 4
        %v661 = vrot.slane %v536, 5
        %v662 = vsel %vm625, %v660, %v661
        %v663 = vrot.slane %v661, 4
        %v664 = vrot.slane %v537, 5
        %v665 = vsel %vm625, %v663, %v664
        %v666 = vrot.slane %v664, 4
        %v667 = vrot.slane %v538, 5
        %v668 = vsel %vm625, %v666, %v667
        %v669 = vrot.slane %v667, 4
        %v670 = vrot.slane %v539, 5
        %v671 = vsel %vm625, %v669, %v670
        %v672 = vrot.slane %v670, 4
        %v673 = vrot.slane %v540, 5
        %v674 = vsel %vm625, %v672, %v673
        %v675 = vrot.slane %v673, 4
        %v676 = vrot.slane %v541, 5
        %v677 = vsel %vm625, %v675, %v676
        %v678 = vrot.slane %v676, 4
        %v679 = vrot.slane %v542, 5
        %v680 = vsel %vm625, %v678, %v679
        %v681 = vrot.slane %v679, 4
        %v682 = vrot.slane %v543, 5
        %v683 = vsel %vm625, %v681, %v682
        %v684 = vrot.slane %v682, 4
        %v685 = vrot.slane %v544, 5
        %v686 = vsel %vm625, %v684, %v685
        %v687 = vrot.slane %v685, 4
        %v688 = vrot.slane %v545, 5
        %v689 = vsel %vm625, %v687, %v688
        %v690 = vrot.slane %v688, 4
        %v691 = vrot.slane %v546, 5
        %v692 = vsel %vm625, %v690, %v691
        %v693 = vrot.slane %v691, 4
        %v694 = vrot.slane %v547, 5
        %v695 = vsel %vm625, %v693, %v694
        %v696 = vrot.slane %v694, 4
        %v697 = vrot.slane %v548, 5
        %v698 = vsel %vm625, %v696, %v697
        %v699 = vrot.slane %v697, 4
        %v700 = vrot.slane %v549, 5
        %v701 = vsel %vm625, %v699, %v700
        %v702 = vrot.slane %v700, 4
        %v703 = vrot.slane %v550, 5
        %v704 = vsel %vm625, %v702, %v703
        %v705 = vrot.slane %v703, 4
        %v706 = vrot.slane %v551, 5
        %v707 = vsel %vm625, %v705, %v706
        %v708 = vrot.slane %v706, 4
        %v709 = vrot.slane %v552, 5
        %v710 = vsel %vm625, %v708, %v709
        %v711 = vrot.slane %v709, 4
        %v712 = vrot.slane %v553, 5
        %v713 = vsel %vm625, %v711, %v712
        %v714 = vrot.slane %v712, 4
        %v715 = vrot.slane %v554, 5
        %v716 = vsel %vm625, %v714, %v715
        %v717 = vrot.slane %v715, 4
        %v718 = vrot.slane %v555, 5
        %v719 = vsel %vm625, %v717, %v718
        %v720 = vrot.slane %v718, 4
        %v721 = vrot.slane %v622, 5
        %v722 = vsel %vm625, %v720, %v721
        %s755 = scalar_lea.vmem [#allocation2], 128
        %756 = vst [vmem:[%s755] sm:$0xf] %v629
        %757 = vst [vmem:[%s755 + $0x4] sm:$0xf] %v632
        %758 = vst [vmem:[%s755 + $0x8] sm:$0xf] %v635
        %759 = vst [vmem:[%s755 + $0xc] sm:$0xf] %v638
        %760 = vst [vmem:[%s755 + $0x10] sm:$0xf] %v641
        %761 = vst [vmem:[%s755 + $0x14] sm:$0xf] %v644
        %762 = vst [vmem:[%s755 + $0x18] sm:$0xf] %v647
        %763 = vst [vmem:[%s755 + $0x1c] sm:$0xf] %v650
        %764 = vst [vmem:[%s755 + $0x20] sm:$0xf] %v653
        %765 = vst [vmem:[%s755 + $0x24] sm:$0xf] %v656
        %766 = vst [vmem:[%s755 + $0x28] sm:$0xf] %v659
        %767 = vst [vmem:[%s755 + $0x2c] sm:$0xf] %v662
        %768 = vst [vmem:[%s755 + $0x30] sm:$0xf] %v665
        %769 = vst [vmem:[%s755 + $0x34] sm:$0xf] %v668
        %770 = vst [vmem:[%s755 + $0x38] sm:$0xf] %v671
        %771 = vst [vmem:[%s755 + $0x3c] sm:$0xf] %v674
        %772 = vst [vmem:[%s755 + $0x40] sm:$0xf] %v677
        %773 = vst [vmem:[%s755 + $0x44] sm:$0xf] %v680
        %774 = vst [vmem:[%s755 + $0x48] sm:$0xf] %v683
        %775 = vst [vmem:[%s755 + $0x4c] sm:$0xf] %v686
        %776 = vst [vmem:[%s755 + $0x50] sm:$0xf] %v689
        %777 = vst [vmem:[%s755 + $0x54] sm:$0xf] %v692
        %778 = vst [vmem:[%s755 + $0x58] sm:$0xf] %v695
        %779 = vst [vmem:[%s755 + $0x5c] sm:$0xf] %v698
        %780 = vst [vmem:[%s755 + $0x60] sm:$0xf] %v701
        %781 = vst [vmem:[%s755 + $0x64] sm:$0xf] %v704
        %782 = vst [vmem:[%s755 + $0x68] sm:$0xf] %v707
        %783 = vst [vmem:[%s755 + $0x6c] sm:$0xf] %v710
        %784 = vst [vmem:[%s755 + $0x70] sm:$0xf] %v713
        %785 = vst [vmem:[%s755 + $0x74] sm:$0xf] %v716
        %786 = vst [vmem:[%s755 + $0x78] sm:$0xf] %v719
        %787 = vst [vmem:[%s755 + $0x7c] sm:$0xf] %v722
        %vm788 = vcmask 1041408
        %vm789 = vcmask 1045508
        %vm790 = vmor %vm788, %vm789
        %v791 = vrot.slane %v524, 6
        %v792 = vrot.slane %v791, 4
        %v793 = vrot.slane %v525, 6
        %v794 = vsel %vm790, %v792, %v793
        %v795 = vrot.slane %v793, 4
        %v796 = vrot.slane %v526, 6
        %v797 = vsel %vm790, %v795, %v796
        %v798 = vrot.slane %v796, 4
        %v799 = vrot.slane %v527, 6
        %v800 = vsel %vm790, %v798, %v799
        %v801 = vrot.slane %v799, 4
        %v802 = vrot.slane %v528, 6
        %v803 = vsel %vm790, %v801, %v802
        %v804 = vrot.slane %v802, 4
        %v805 = vrot.slane %v529, 6
        %v806 = vsel %vm790, %v804, %v805
        %v807 = vrot.slane %v805, 4
        %v808 = vrot.slane %v530, 6
        %v809 = vsel %vm790, %v807, %v808
        %v810 = vrot.slane %v808, 4
        %v811 = vrot.slane %v531, 6
        %v812 = vsel %vm790, %v810, %v811
        %v813 = vrot.slane %v811, 4
        %v814 = vrot.slane %v532, 6
        %v815 = vsel %vm790, %v813, %v814
        %v816 = vrot.slane %v814, 4
        %v817 = vrot.slane %v533, 6
        %v818 = vsel %vm790, %v816, %v817
        %v819 = vrot.slane %v817, 4
        %v820 = vrot.slane %v534, 6
        %v821 = vsel %vm790, %v819, %v820
        %v822 = vrot.slane %v820, 4
        %v823 = vrot.slane %v535, 6
        %v824 = vsel %vm790, %v822, %v823
        %v825 = vrot.slane %v823, 4
        %v826 = vrot.slane %v536, 6
        %v827 = vsel %vm790, %v825, %v826
        %v828 = vrot.slane %v826, 4
        %v829 = vrot.slane %v537, 6
        %v830 = vsel %vm790, %v828, %v829
        %v831 = vrot.slane %v829, 4
        %v832 = vrot.slane %v538, 6
        %v833 = vsel %vm790, %v831, %v832
        %v834 = vrot.slane %v832, 4
        %v835 = vrot.slane %v539, 6
        %v836 = vsel %vm790, %v834, %v835
        %v837 = vrot.slane %v835, 4
        %v838 = vrot.slane %v540, 6
        %v839 = vsel %vm790, %v837, %v838
        %v840 = vrot.slane %v838, 4
        %v841 = vrot.slane %v541, 6
        %v842 = vsel %vm790, %v840, %v841
        %v843 = vrot.slane %v841, 4
        %v844 = vrot.slane %v542, 6
        %v845 = vsel %vm790, %v843, %v844
        %v846 = vrot.slane %v844, 4
        %v847 = vrot.slane %v543, 6
        %v848 = vsel %vm790, %v846, %v847
        %v849 = vrot.slane %v847, 4
        %v850 = vrot.slane %v544, 6
        %v851 = vsel %vm790, %v849, %v850
        %v852 = vrot.slane %v850, 4
        %v853 = vrot.slane %v545, 6
        %v854 = vsel %vm790, %v852, %v853
        %v855 = vrot.slane %v853, 4
        %v856 = vrot.slane %v546, 6
        %v857 = vsel %vm790, %v855, %v856
        %v858 = vrot.slane %v856, 4
        %v859 = vrot.slane %v547, 6
        %v860 = vsel %vm790, %v858, %v859
        %v861 = vrot.slane %v859, 4
        %v862 = vrot.slane %v548, 6
        %v863 = vsel %vm790, %v861, %v862
        %v864 = vrot.slane %v862, 4
        %v865 = vrot.slane %v549, 6
        %v866 = vsel %vm790, %v864, %v865
        %v867 = vrot.slane %v865, 4
        %v868 = vrot.slane %v550, 6
        %v869 = vsel %vm790, %v867, %v868
        %v870 = vrot.slane %v868, 4
        %v871 = vrot.slane %v551, 6
        %v872 = vsel %vm790, %v870, %v871
        %v873 = vrot.slane %v871, 4
        %v874 = vrot.slane %v552, 6
        %v875 = vsel %vm790, %v873, %v874
        %v876 = vrot.slane %v874, 4
        %v877 = vrot.slane %v553, 6
        %v878 = vsel %vm790, %v876, %v877
        %v879 = vrot.slane %v877, 4
        %v880 = vrot.slane %v554, 6
        %v881 = vsel %vm790, %v879, %v880
        %v882 = vrot.slane %v880, 4
        %v883 = vrot.slane %v555, 6
        %v884 = vsel %vm790, %v882, %v883
        %v885 = vrot.slane %v883, 4
        %v886 = vrot.slane %v622, 6
        %v887 = vsel %vm790, %v885, %v886
        %s920 = scalar_lea.vmem [#allocation2], 256
        %921 = vst [vmem:[%s920] sm:$0xf] %v794
        %922 = vst [vmem:[%s920 + $0x4] sm:$0xf] %v797
        %923 = vst [vmem:[%s920 + $0x8] sm:$0xf] %v800
        %924 = vst [vmem:[%s920 + $0xc] sm:$0xf] %v803
        %925 = vst [vmem:[%s920 + $0x10] sm:$0xf] %v806
        %926 = vst [vmem:[%s920 + $0x14] sm:$0xf] %v809
        %927 = vst [vmem:[%s920 + $0x18] sm:$0xf] %v812
        %928 = vst [vmem:[%s920 + $0x1c] sm:$0xf] %v815
        %929 = vst [vmem:[%s920 + $0x20] sm:$0xf] %v818
        %930 = vst [vmem:[%s920 + $0x24] sm:$0xf] %v821
        %931 = vst [vmem:[%s920 + $0x28] sm:$0xf] %v824
        %932 = vst [vmem:[%s920 + $0x2c] sm:$0xf] %v827
        %933 = vst [vmem:[%s920 + $0x30] sm:$0xf] %v830
        %934 = vst [vmem:[%s920 + $0x34] sm:$0xf] %v833
        %935 = vst [vmem:[%s920 + $0x38] sm:$0xf] %v836
        %936 = vst [vmem:[%s920 + $0x3c] sm:$0xf] %v839
        %937 = vst [vmem:[%s920 + $0x40] sm:$0xf] %v842
        %938 = vst [vmem:[%s920 + $0x44] sm:$0xf] %v845
        %939 = vst [vmem:[%s920 + $0x48] sm:$0xf] %v848
        %940 = vst [vmem:[%s920 + $0x4c] sm:$0xf] %v851
        %941 = vst [vmem:[%s920 + $0x50] sm:$0xf] %v854
        %942 = vst [vmem:[%s920 + $0x54] sm:$0xf] %v857
        %943 = vst [vmem:[%s920 + $0x58] sm:$0xf] %v860
        %944 = vst [vmem:[%s920 + $0x5c] sm:$0xf] %v863
        %945 = vst [vmem:[%s920 + $0x60] sm:$0xf] %v866
        %946 = vst [vmem:[%s920 + $0x64] sm:$0xf] %v869
        %947 = vst [vmem:[%s920 + $0x68] sm:$0xf] %v872
        %948 = vst [vmem:[%s920 + $0x6c] sm:$0xf] %v875
        %949 = vst [vmem:[%s920 + $0x70] sm:$0xf] %v878
        %950 = vst [vmem:[%s920 + $0x74] sm:$0xf] %v881
        %951 = vst [vmem:[%s920 + $0x78] sm:$0xf] %v884
        %952 = vst [vmem:[%s920 + $0x7c] sm:$0xf] %v887
        %v953 = vld [vmem:[#allocation2] sm:$0xf]
        %v954 = vld [vmem:[#allocation2 + $0x4] sm:$0xf]
        %v955 = vld [vmem:[#allocation2 + $0x8] sm:$0xf]
        %v956 = vld [vmem:[#allocation2 + $0xc] sm:$0xf]
        %v957 = vld [vmem:[#allocation2 + $0x10] sm:$0xf]
        %v958 = vld [vmem:[#allocation2 + $0x14] sm:$0xf]
        %v959 = vld [vmem:[#allocation2 + $0x18] sm:$0xf]
        %v960 = vld [vmem:[#allocation2 + $0x1c] sm:$0xf]
        %v961 = vld [vmem:[#allocation2 + $0x20] sm:$0xf]
        %v962 = vld [vmem:[#allocation2 + $0x24] sm:$0xf]
        %v963 = vld [vmem:[#allocation2 + $0x28] sm:$0xf]
        %v964 = vld [vmem:[#allocation2 + $0x2c] sm:$0xf]
        %v965 = vld [vmem:[#allocation2 + $0x30] sm:$0xf]
        %v966 = vld [vmem:[#allocation2 + $0x34] sm:$0xf]
        %v967 = vld [vmem:[#allocation2 + $0x38] sm:$0xf]
        %v968 = vld [vmem:[#allocation2 + $0x3c] sm:$0xf]
        %v969 = vld [vmem:[#allocation2 + $0x40] sm:$0xf]
        %v970 = vld [vmem:[#allocation2 + $0x44] sm:$0xf]
        %v971 = vld [vmem:[#allocation2 + $0x48] sm:$0xf]
        %v972 = vld [vmem:[#allocation2 + $0x4c] sm:$0xf]
        %v973 = vld [vmem:[#allocation2 + $0x50] sm:$0xf]
        %v974 = vld [vmem:[#allocation2 + $0x54] sm:$0xf]
        %v975 = vld [vmem:[#allocation2 + $0x58] sm:$0xf]
        %v976 = vld [vmem:[#allocation2 + $0x5c] sm:$0xf]
        %v977 = vld [vmem:[#allocation2 + $0x60] sm:$0xf]
        %v978 = vld [vmem:[#allocation2 + $0x64] sm:$0xf]
        %v979 = vld [vmem:[#allocation2 + $0x68] sm:$0xf]
        %v980 = vld [vmem:[#allocation2 + $0x6c] sm:$0xf]
        %v981 = vld [vmem:[#allocation2 + $0x70] sm:$0xf]
        %v982 = vld [vmem:[#allocation2 + $0x74] sm:$0xf]
        %v983 = vld [vmem:[#allocation2 + $0x78] sm:$0xf]
        %v984 = vld [vmem:[#allocation2 + $0x7c] sm:$0xf]
        %v985 = vld [vmem:[#allocation8] sm:$0xff]
        %v986 = vld [vmem:[#allocation8 + $0x8] sm:$0xff]
        %v987 = vld [vmem:[#allocation8 + $0x10] sm:$0xff]
        %v988 = vld [vmem:[#allocation8 + $0x18] sm:$0xff]
        %v989 = vld [vmem:[#allocation8 + $0x20] sm:$0xff]
        %v990 = vld [vmem:[#allocation8 + $0x28] sm:$0xff]
        %v991 = vld [vmem:[#allocation8 + $0x30] sm:$0xff]
        %v992 = vld [vmem:[#allocation8 + $0x38] sm:$0xff]
        %v993 = vld [vmem:[#allocation8 + $0x40] sm:$0xff]
        %v994 = vld [vmem:[#allocation8 + $0x48] sm:$0xff]
        %v995 = vld [vmem:[#allocation8 + $0x50] sm:$0xff]
        %v996 = vld [vmem:[#allocation8 + $0x58] sm:$0xff]
        %v997 = vld [vmem:[#allocation8 + $0x60] sm:$0xff]
        %v998 = vld [vmem:[#allocation8 + $0x68] sm:$0xff]
        %v999 = vld [vmem:[#allocation8 + $0x70] sm:$0xff]
        %v1000 = vld [vmem:[#allocation8 + $0x78] sm:$0xff]
        %v1001 = vld [vmem:[%s755] sm:$0xf]
        %v1002 = vld [vmem:[%s755 + $0x4] sm:$0xf]
        %v1003 = vld [vmem:[%s755 + $0x8] sm:$0xf]
        %v1004 = vld [vmem:[%s755 + $0xc] sm:$0xf]
        %v1005 = vld [vmem:[%s755 + $0x10] sm:$0xf]
        %v1006 = vld [vmem:[%s755 + $0x14] sm:$0xf]
        %v1007 = vld [vmem:[%s755 + $0x18] sm:$0xf]
        %v1008 = vld [vmem:[%s755 + $0x1c] sm:$0xf]
        %v1009 = vld [vmem:[%s755 + $0x20] sm:$0xf]
        %v1010 = vld [vmem:[%s755 + $0x24] sm:$0xf]
        %v1011 = vld [vmem:[%s755 + $0x28] sm:$0xf]
        %v1012 = vld [vmem:[%s755 + $0x2c] sm:$0xf]
        %v1013 = vld [vmem:[%s755 + $0x30] sm:$0xf]
        %v1014 = vld [vmem:[%s755 + $0x34] sm:$0xf]
        %v1015 = vld [vmem:[%s755 + $0x38] sm:$0xf]
        %v1016 = vld [vmem:[%s755 + $0x3c] sm:$0xf]
        %v1017 = vld [vmem:[%s755 + $0x40] sm:$0xf]
        %v1018 = vld [vmem:[%s755 + $0x44] sm:$0xf]
        %v1019 = vld [vmem:[%s755 + $0x48] sm:$0xf]
        %v1020 = vld [vmem:[%s755 + $0x4c] sm:$0xf]
        %v1021 = vld [vmem:[%s755 + $0x50] sm:$0xf]
        %v1022 = vld [vmem:[%s755 + $0x54] sm:$0xf]
        %v1023 = vld [vmem:[%s755 + $0x58] sm:$0xf]
        %v1024 = vld [vmem:[%s755 + $0x5c] sm:$0xf]
        %v1025 = vld [vmem:[%s755 + $0x60] sm:$0xf]
        %v1026 = vld [vmem:[%s755 + $0x64] sm:$0xf]
        %v1027 = vld [vmem:[%s755 + $0x68] sm:$0xf]
        %v1028 = vld [vmem:[%s755 + $0x6c] sm:$0xf]
        %v1029 = vld [vmem:[%s755 + $0x70] sm:$0xf]
        %v1030 = vld [vmem:[%s755 + $0x74] sm:$0xf]
        %v1031 = vld [vmem:[%s755 + $0x78] sm:$0xf]
        %v1032 = vld [vmem:[%s755 + $0x7c] sm:$0xf]
        %s1033 = scalar_lea.vmem [#allocation8], 128
        %v1034 = vld [vmem:[%s1033] sm:$0xff]
        %v1035 = vld [vmem:[%s1033 + $0x8] sm:$0xff]
        %v1036 = vld [vmem:[%s1033 + $0x10] sm:$0xff]
        %v1037 = vld [vmem:[%s1033 + $0x18] sm:$0xff]
        %v1038 = vld [vmem:[%s1033 + $0x20] sm:$0xff]
        %v1039 = vld [vmem:[%s1033 + $0x28] sm:$0xff]
        %v1040 = vld [vmem:[%s1033 + $0x30] sm:$0xff]
        %v1041 = vld [vmem:[%s1033 + $0x38] sm:$0xff]
        %v1042 = vld [vmem:[%s1033 + $0x40] sm:$0xff]
        %v1043 = vld [vmem:[%s1033 + $0x48] sm:$0xff]
        %v1044 = vld [vmem:[%s1033 + $0x50] sm:$0xff]
        %v1045 = vld [vmem:[%s1033 + $0x58] sm:$0xff]
        %v1046 = vld [vmem:[%s1033 + $0x60] sm:$0xff]
        %v1047 = vld [vmem:[%s1033 + $0x68] sm:$0xff]
        %v1048 = vld [vmem:[%s1033 + $0x70] sm:$0xff]
        %v1049 = vld [vmem:[%s1033 + $0x78] sm:$0xff]
        %v1082 = vunpack.c.l.b16 %v1001
        %v1083 = vunpack.c.l.b16 %v1002
        %v1084 = vunpack.c.l.b16 %v1003
        %v1085 = vunpack.c.l.b16 %v1004
        %v1086 = vunpack.c.l.b16 %v1005
        %v1087 = vunpack.c.l.b16 %v1006
        %v1088 = vunpack.c.l.b16 %v1007
        %v1089 = vunpack.c.l.b16 %v1008
        %v1090 = vunpack.c.l.b16 %v1009
        %v1091 = vunpack.c.l.b16 %v1010
        %v1092 = vunpack.c.l.b16 %v1011
        %v1093 = vunpack.c.l.b16 %v1012
        %v1094 = vunpack.c.l.b16 %v1013
        %v1095 = vunpack.c.l.b16 %v1014
        %v1096 = vunpack.c.l.b16 %v1015
        %v1097 = vunpack.c.l.b16 %v1016
        %v1098 = vunpack.c.l.b16 %v1017
        %v1099 = vunpack.c.l.b16 %v1018
        %v1100 = vunpack.c.l.b16 %v1019
        %v1101 = vunpack.c.l.b16 %v1020
        %v1102 = vunpack.c.l.b16 %v1021
        %v1103 = vunpack.c.l.b16 %v1022
        %v1104 = vunpack.c.l.b16 %v1023
        %v1105 = vunpack.c.l.b16 %v1024
        %v1106 = vunpack.c.l.b16 %v1025
        %v1107 = vunpack.c.l.b16 %v1026
        %v1108 = vunpack.c.l.b16 %v1027
        %v1109 = vunpack.c.l.b16 %v1028
        %v1110 = vunpack.c.l.b16 %v1029
        %v1111 = vunpack.c.l.b16 %v1030
        %v1112 = vunpack.c.l.b16 %v1031
        %v1113 = vunpack.c.l.b16 %v1032
        %v1114 = vpack.c.b16 %v1083, %v1082
        %v1115 = vpack.c.b16 %v1085, %v1084
        %v1116 = vpack.c.b16 %v1087, %v1086
        %v1117 = vpack.c.b16 %v1089, %v1088
        %v1118 = vpack.c.b16 %v1091, %v1090
        %v1119 = vpack.c.b16 %v1093, %v1092
        %v1120 = vpack.c.b16 %v1095, %v1094
        %v1121 = vpack.c.b16 %v1097, %v1096
        %v1122 = vpack.c.b16 %v1099, %v1098
        %v1123 = vpack.c.b16 %v1101, %v1100
        %v1124 = vpack.c.b16 %v1103, %v1102
        %v1125 = vpack.c.b16 %v1105, %v1104
        %v1126 = vpack.c.b16 %v1107, %v1106
        %v1127 = vpack.c.b16 %v1109, %v1108
        %v1128 = vpack.c.b16 %v1111, %v1110
        %v1129 = vpack.c.b16 %v1113, %v1112
        %v1162 = vunpack.c.l.b16 %v1034
        %v1163 = vunpack.c.h.b16 %v1034
        %v1164 = vunpack.c.l.b16 %v1035
        %v1165 = vunpack.c.h.b16 %v1035
        %v1166 = vunpack.c.l.b16 %v1036
        %v1167 = vunpack.c.h.b16 %v1036
        %v1168 = vunpack.c.l.b16 %v1037
        %v1169 = vunpack.c.h.b16 %v1037
        %v1170 = vunpack.c.l.b16 %v1038
        %v1171 = vunpack.c.h.b16 %v1038
        %v1172 = vunpack.c.l.b16 %v1039
        %v1173 = vunpack.c.h.b16 %v1039
        %v1174 = vunpack.c.l.b16 %v1040
        %v1175 = vunpack.c.h.b16 %v1040
        %v1176 = vunpack.c.l.b16 %v1041
        %v1177 = vunpack.c.h.b16 %v1041
        %v1178 = vunpack.c.l.b16 %v1042
        %v1179 = vunpack.c.h.b16 %v1042
        %v1180 = vunpack.c.l.b16 %v1043
        %v1181 = vunpack.c.h.b16 %v1043
        %v1182 = vunpack.c.l.b16 %v1044
        %v1183 = vunpack.c.h.b16 %v1044
        %v1184 = vunpack.c.l.b16 %v1045
        %v1185 = vunpack.c.h.b16 %v1045
        %v1186 = vunpack.c.l.b16 %v1046
        %v1187 = vunpack.c.h.b16 %v1046
        %v1188 = vunpack.c.l.b16 %v1047
        %v1189 = vunpack.c.h.b16 %v1047
        %v1190 = vunpack.c.l.b16 %v1048
        %v1191 = vunpack.c.h.b16 %v1048
        %v1192 = vunpack.c.l.b16 %v1049
        %v1193 = vunpack.c.h.b16 %v1049
        %v1194 = vpack.c.b16 %v1164, %v1162
        %v1195 = vpack.c.b16 %v1165, %v1163
        %v1196 = vpack.c.b16 %v1168, %v1166
        %v1197 = vpack.c.b16 %v1169, %v1167
        %v1198 = vpack.c.b16 %v1172, %v1170
        %v1199 = vpack.c.b16 %v1173, %v1171
        %v1200 = vpack.c.b16 %v1176, %v1174
        %v1201 = vpack.c.b16 %v1177, %v1175
        %v1202 = vpack.c.b16 %v1180, %v1178
        %v1203 = vpack.c.b16 %v1181, %v1179
        %v1204 = vpack.c.b16 %v1184, %v1182
        %v1205 = vpack.c.b16 %v1185, %v1183
        %v1206 = vpack.c.b16 %v1188, %v1186
        %v1207 = vpack.c.b16 %v1189, %v1187
        %v1208 = vpack.c.b16 %v1192, %v1190
        %v1209 = vpack.c.b16 %v1193, %v1191
        %1226 = vmatprep.subr.bf16.mxu0 %v1209
        %1227 = vmatpush1.bf16.msra.mxu0 %v1208
        %1228 = vmatprep.subr.bf16.mxu0 %v1207
        %1229 = vmatpush1.bf16.msra.mxu0 %v1206
        %1230 = vmatprep.subr.bf16.mxu0 %v1205
        %1231 = vmatpush1.bf16.msra.mxu0 %v1204
        %1232 = vmatprep.subr.bf16.mxu0 %v1203
        %1233 = vmatpush1.bf16.msra.mxu0 %v1202
        %1234 = vmatprep.subr.bf16.mxu0 %v1201
        %1235 = vmatpush1.bf16.msra.mxu0 %v1200
        %1236 = vmatprep.subr.bf16.mxu0 %v1199
        %1237 = vmatpush1.bf16.msra.mxu0 %v1198
        %1238 = vmatprep.subr.bf16.mxu0 %v1197
        %1239 = vmatpush1.bf16.msra.mxu0 %v1196
        %1240 = vmatprep.subr.bf16.mxu0 %v1195
        %1241 = vmatpush1.bf16.msra.mxu0 %v1194
        %1242 = vmatprep.subr.bf16.mxu0 0
        %1243 = vmatpush2.bf16.msra.mxu0 0
        %1244 = vmatprep.subr.bf16.mxu0 0
        %1245 = vmatpush2.bf16.msra.mxu0 0
        %1246 = vmatprep.subr.bf16.mxu0 0
        %1247 = vmatpush2.bf16.msra.mxu0 0
        %1248 = vmatprep.subr.bf16.mxu0 0
        %1249 = vmatpush2.bf16.msra.mxu0 0
        %1250 = vmatprep.subr.bf16.mxu0 0
        %1251 = vmatpush2.bf16.msra.mxu0 0
        %1252 = vmatprep.subr.bf16.mxu0 0
        %1253 = vmatpush2.bf16.msra.mxu0 0
        %1254 = vmatprep.subr.bf16.mxu0 0
        %1255 = vmatpush2.bf16.msra.mxu0 0
        %1256 = vmatprep.subr.bf16.mxu0 0
        %1257 = vmatpush2.bf16.msra.mxu0 0
        %1258 = vmatprep.mubr.bf16.mxu0 0
        %1259 = vmatmul.mubr.bf16.gmra.mxu0 %v1114
        %v1260 = vpop.f32.mrf.mxu0
        %v1261 = vadd.f32 0.0, %v1260
        %v1262 = vpop.f32.mrf.mxu0
        %v1263 = vadd.f32 0.0, %v1262
        %v1264 = vpop.f32.mrf.mxu0
        %v1265 = vadd.f32 0.0, %v1264
        %v1266 = vpop.f32.mrf.mxu0
        %v1267 = vadd.f32 0.0, %v1266
        %1268 = vmatprep.mubr.bf16.mxu0 0
        %1269 = vmatmul.mubr.bf16.gmra.mxu0 %v1115
        %v1270 = vpop.f32.mrf.mxu0
        %v1271 = vadd.f32 0.0, %v1270
        %v1272 = vpop.f32.mrf.mxu0
        %v1273 = vadd.f32 0.0, %v1272
        %v1274 = vpop.f32.mrf.mxu0
        %v1275 = vadd.f32 0.0, %v1274
        %v1276 = vpop.f32.mrf.mxu0
        %v1277 = vadd.f32 0.0, %v1276
        %1278 = vmatprep.mubr.bf16.mxu0 0
        %1279 = vmatmul.mubr.bf16.gmra.mxu0 %v1116
        %v1280 = vpop.f32.mrf.mxu0
        %v1281 = vadd.f32 0.0, %v1280
        %v1282 = vpop.f32.mrf.mxu0
        %v1283 = vadd.f32 0.0, %v1282
        %v1284 = vpop.f32.mrf.mxu0
        %v1285 = vadd.f32 0.0, %v1284
        %v1286 = vpop.f32.mrf.mxu0
        %v1287 = vadd.f32 0.0, %v1286
        %1288 = vmatprep.mubr.bf16.mxu0 0
        %1289 = vmatmul.mubr.bf16.gmra.mxu0 %v1117
        %v1290 = vpop.f32.mrf.mxu0
        %v1291 = vadd.f32 0.0, %v1290
        %v1292 = vpop.f32.mrf.mxu0
        %v1293 = vadd.f32 0.0, %v1292
        %v1294 = vpop.f32.mrf.mxu0
        %v1295 = vadd.f32 0.0, %v1294
        %v1296 = vpop.f32.mrf.mxu0
        %v1297 = vadd.f32 0.0, %v1296
        %1298 = vmatprep.mubr.bf16.mxu0 0
        %1299 = vmatmul.mubr.bf16.gmra.mxu0 %v1118
        %v1300 = vpop.f32.mrf.mxu0
        %v1301 = vadd.f32 0.0, %v1300
        %v1302 = vpop.f32.mrf.mxu0
        %v1303 = vadd.f32 0.0, %v1302
        %v1304 = vpop.f32.mrf.mxu0
        %v1305 = vadd.f32 0.0, %v1304
        %v1306 = vpop.f32.mrf.mxu0
        %v1307 = vadd.f32 0.0, %v1306
        %1308 = vmatprep.mubr.bf16.mxu0 0
        %1309 = vmatmul.mubr.bf16.gmra.mxu0 %v1119
        %v1310 = vpop.f32.mrf.mxu0
        %v1311 = vadd.f32 0.0, %v1310
        %v1312 = vpop.f32.mrf.mxu0
        %v1313 = vadd.f32 0.0, %v1312
        %v1314 = vpop.f32.mrf.mxu0
        %v1315 = vadd.f32 0.0, %v1314
        %v1316 = vpop.f32.mrf.mxu0
        %v1317 = vadd.f32 0.0, %v1316
        %1318 = vmatprep.mubr.bf16.mxu0 0
        %1319 = vmatmul.mubr.bf16.gmra.mxu0 %v1120
        %v1320 = vpop.f32.mrf.mxu0
        %v1321 = vadd.f32 0.0, %v1320
        %v1322 = vpop.f32.mrf.mxu0
        %v1323 = vadd.f32 0.0, %v1322
        %v1324 = vpop.f32.mrf.mxu0
        %v1325 = vadd.f32 0.0, %v1324
        %v1326 = vpop.f32.mrf.mxu0
        %v1327 = vadd.f32 0.0, %v1326
        %1328 = vmatprep.mubr.bf16.mxu0 0
        %1329 = vmatmul.mubr.bf16.gmra.mxu0 %v1121
        %v1330 = vpop.f32.mrf.mxu0
        %v1331 = vadd.f32 0.0, %v1330
        %v1332 = vpop.f32.mrf.mxu0
        %v1333 = vadd.f32 0.0, %v1332
        %v1334 = vpop.f32.mrf.mxu0
        %v1335 = vadd.f32 0.0, %v1334
        %v1336 = vpop.f32.mrf.mxu0
        %v1337 = vadd.f32 0.0, %v1336
        %1338 = vmatprep.mubr.bf16.mxu0 0
        %1339 = vmatmul.mubr.bf16.gmra.mxu0 %v1122
        %v1340 = vpop.f32.mrf.mxu0
        %v1341 = vadd.f32 0.0, %v1340
        %v1342 = vpop.f32.mrf.mxu0
        %v1343 = vadd.f32 0.0, %v1342
        %v1344 = vpop.f32.mrf.mxu0
        %v1345 = vadd.f32 0.0, %v1344
        %v1346 = vpop.f32.mrf.mxu0
        %v1347 = vadd.f32 0.0, %v1346
        %1348 = vmatprep.mubr.bf16.mxu0 0
        %1349 = vmatmul.mubr.bf16.gmra.mxu0 %v1123
        %v1350 = vpop.f32.mrf.mxu0
        %v1351 = vadd.f32 0.0, %v1350
        %v1352 = vpop.f32.mrf.mxu0
        %v1353 = vadd.f32 0.0, %v1352
        %v1354 = vpop.f32.mrf.mxu0
        %v1355 = vadd.f32 0.0, %v1354
        %v1356 = vpop.f32.mrf.mxu0
        %v1357 = vadd.f32 0.0, %v1356
        %1358 = vmatprep.mubr.bf16.mxu0 0
        %1359 = vmatmul.mubr.bf16.gmra.mxu0 %v1124
        %v1360 = vpop.f32.mrf.mxu0
        %v1361 = vadd.f32 0.0, %v1360
        %v1362 = vpop.f32.mrf.mxu0
        %v1363 = vadd.f32 0.0, %v1362
        %v1364 = vpop.f32.mrf.mxu0
        %v1365 = vadd.f32 0.0, %v1364
        %v1366 = vpop.f32.mrf.mxu0
        %v1367 = vadd.f32 0.0, %v1366
        %1368 = vmatprep.mubr.bf16.mxu0 0
        %1369 = vmatmul.mubr.bf16.gmra.mxu0 %v1125
        %v1370 = vpop.f32.mrf.mxu0
        %v1371 = vadd.f32 0.0, %v1370
        %v1372 = vpop.f32.mrf.mxu0
        %v1373 = vadd.f32 0.0, %v1372
        %v1374 = vpop.f32.mrf.mxu0
        %v1375 = vadd.f32 0.0, %v1374
        %v1376 = vpop.f32.mrf.mxu0
        %v1377 = vadd.f32 0.0, %v1376
        %1378 = vmatprep.mubr.bf16.mxu0 0
        %1379 = vmatmul.mubr.bf16.gmra.mxu0 %v1126
        %v1380 = vpop.f32.mrf.mxu0
        %v1381 = vadd.f32 0.0, %v1380
        %v1382 = vpop.f32.mrf.mxu0
        %v1383 = vadd.f32 0.0, %v1382
        %v1384 = vpop.f32.mrf.mxu0
        %v1385 = vadd.f32 0.0, %v1384
        %v1386 = vpop.f32.mrf.mxu0
        %v1387 = vadd.f32 0.0, %v1386
        %1388 = vmatprep.mubr.bf16.mxu0 0
        %1389 = vmatmul.mubr.bf16.gmra.mxu0 %v1127
        %v1390 = vpop.f32.mrf.mxu0
        %v1391 = vadd.f32 0.0, %v1390
        %v1392 = vpop.f32.mrf.mxu0
        %v1393 = vadd.f32 0.0, %v1392
        %v1394 = vpop.f32.mrf.mxu0
        %v1395 = vadd.f32 0.0, %v1394
        %v1396 = vpop.f32.mrf.mxu0
        %v1397 = vadd.f32 0.0, %v1396
        %1398 = vmatprep.mubr.bf16.mxu0 0
        %1399 = vmatmul.mubr.bf16.gmra.mxu0 %v1128
        %v1400 = vpop.f32.mrf.mxu0
        %v1401 = vadd.f32 0.0, %v1400
        %v1402 = vpop.f32.mrf.mxu0
        %v1403 = vadd.f32 0.0, %v1402
        %v1404 = vpop.f32.mrf.mxu0
        %v1405 = vadd.f32 0.0, %v1404
        %v1406 = vpop.f32.mrf.mxu0
        %v1407 = vadd.f32 0.0, %v1406
        %1408 = vmatprep.mubr.bf16.mxu0 0
        %1409 = vmatmul.mubr.bf16.gmra.mxu0 %v1129
        %v1410 = vpop.f32.mrf.mxu0
        %v1411 = vadd.f32 0.0, %v1410
        %v1412 = vpop.f32.mrf.mxu0
        %v1413 = vadd.f32 0.0, %v1412
        %v1414 = vpop.f32.mrf.mxu0
        %v1415 = vadd.f32 0.0, %v1414
        %v1416 = vpop.f32.mrf.mxu0
        %v1417 = vadd.f32 0.0, %v1416
        %1418 = vdwg.mxu0
        %v1451 = vunpack.c.l.b16 %v953
        %v1452 = vunpack.c.l.b16 %v954
        %v1453 = vunpack.c.l.b16 %v955
        %v1454 = vunpack.c.l.b16 %v956
        %v1455 = vunpack.c.l.b16 %v957
        %v1456 = vunpack.c.l.b16 %v958
        %v1457 = vunpack.c.l.b16 %v959
        %v1458 = vunpack.c.l.b16 %v960
        %v1459 = vunpack.c.l.b16 %v961
        %v1460 = vunpack.c.l.b16 %v962
        %v1461 = vunpack.c.l.b16 %v963
        %v1462 = vunpack.c.l.b16 %v964
        %v1463 = vunpack.c.l.b16 %v965
        %v1464 = vunpack.c.l.b16 %v966
        %v1465 = vunpack.c.l.b16 %v967
        %v1466 = vunpack.c.l.b16 %v968
        %v1467 = vunpack.c.l.b16 %v969
        %v1468 = vunpack.c.l.b16 %v970
        %v1469 = vunpack.c.l.b16 %v971
        %v1470 = vunpack.c.l.b16 %v972
        %v1471 = vunpack.c.l.b16 %v973
        %v1472 = vunpack.c.l.b16 %v974
        %v1473 = vunpack.c.l.b16 %v975
        %v1474 = vunpack.c.l.b16 %v976
        %v1475 = vunpack.c.l.b16 %v977
        %v1476 = vunpack.c.l.b16 %v978
        %v1477 = vunpack.c.l.b16 %v979
        %v1478 = vunpack.c.l.b16 %v980
        %v1479 = vunpack.c.l.b16 %v981
        %v1480 = vunpack.c.l.b16 %v982
        %v1481 = vunpack.c.l.b16 %v983
        %v1482 = vunpack.c.l.b16 %v984
        %v1483 = vpack.c.b16 %v1452, %v1451
        %v1484 = vpack.c.b16 %v1454, %v1453
        %v1485 = vpack.c.b16 %v1456, %v1455
        %v1486 = vpack.c.b16 %v1458, %v1457
        %v1487 = vpack.c.b16 %v1460, %v1459
        %v1488 = vpack.c.b16 %v1462, %v1461
        %v1489 = vpack.c.b16 %v1464, %v1463
        %v1490 = vpack.c.b16 %v1466, %v1465
        %v1491 = vpack.c.b16 %v1468, %v1467
        %v1492 = vpack.c.b16 %v1470, %v1469
        %v1493 = vpack.c.b16 %v1472, %v1471
        %v1494 = vpack.c.b16 %v1474, %v1473
        %v1495 = vpack.c.b16 %v1476, %v1475
        %v1496 = vpack.c.b16 %v1478, %v1477
        %v1497 = vpack.c.b16 %v1480, %v1479
        %v1498 = vpack.c.b16 %v1482, %v1481
        %v1531 = vunpack.c.l.b16 %v985
        %v1532 = vunpack.c.h.b16 %v985
        %v1533 = vunpack.c.l.b16 %v986
        %v1534 = vunpack.c.h.b16 %v986
        %v1535 = vunpack.c.l.b16 %v987
        %v1536 = vunpack.c.h.b16 %v987
        %v1537 = vunpack.c.l.b16 %v988
        %v1538 = vunpack.c.h.b16 %v988
        %v1539 = vunpack.c.l.b16 %v989
        %v1540 = vunpack.c.h.b16 %v989
        %v1541 = vunpack.c.l.b16 %v990
        %v1542 = vunpack.c.h.b16 %v990
        %v1543 = vunpack.c.l.b16 %v991
        %v1544 = vunpack.c.h.b16 %v991
        %v1545 = vunpack.c.l.b16 %v992
        %v1546 = vunpack.c.h.b16 %v992
        %v1547 = vunpack.c.l.b16 %v993
        %v1548 = vunpack.c.h.b16 %v993
        %v1549 = vunpack.c.l.b16 %v994
        %v1550 = vunpack.c.h.b16 %v994
        %v1551 = vunpack.c.l.b16 %v995
        %v1552 = vunpack.c.h.b16 %v995
        %v1553 = vunpack.c.l.b16 %v996
        %v1554 = vunpack.c.h.b16 %v996
        %v1555 = vunpack.c.l.b16 %v997
        %v1556 = vunpack.c.h.b16 %v997
        %v1557 = vunpack.c.l.b16 %v998
        %v1558 = vunpack.c.h.b16 %v998
        %v1559 = vunpack.c.l.b16 %v999
        %v1560 = vunpack.c.h.b16 %v999
        %v1561 = vunpack.c.l.b16 %v1000
        %v1562 = vunpack.c.h.b16 %v1000
        %v1563 = vpack.c.b16 %v1533, %v1531
        %v1564 = vpack.c.b16 %v1534, %v1532
        %v1565 = vpack.c.b16 %v1537, %v1535
        %v1566 = vpack.c.b16 %v1538, %v1536
        %v1567 = vpack.c.b16 %v1541, %v1539
        %v1568 = vpack.c.b16 %v1542, %v1540
        %v1569 = vpack.c.b16 %v1545, %v1543
        %v1570 = vpack.c.b16 %v1546, %v1544
        %v1571 = vpack.c.b16 %v1549, %v1547
        %v1572 = vpack.c.b16 %v1550, %v1548
        %v1573 = vpack.c.b16 %v1553, %v1551
        %v1574 = vpack.c.b16 %v1554, %v1552
        %v1575 = vpack.c.b16 %v1557, %v1555
        %v1576 = vpack.c.b16 %v1558, %v1556
        %v1577 = vpack.c.b16 %v1561, %v1559
        %v1578 = vpack.c.b16 %v1562, %v1560
        %1595 = vmatprep.subr.bf16.mxu0 %v1578
        %1596 = vmatpush1.bf16.msra.mxu0 %v1577
        %1597 = vmatprep.subr.bf16.mxu0 %v1576
        %1598 = vmatpush1.bf16.msra.mxu0 %v1575
        %1599 = vmatprep.subr.bf16.mxu0 %v1574
        %1600 = vmatpush1.bf16.msra.mxu0 %v1573
        %1601 = vmatprep.subr.bf16.mxu0 %v1572
        %1602 = vmatpush1.bf16.msra.mxu0 %v1571
        %1603 = vmatprep.subr.bf16.mxu0 %v1570
        %1604 = vmatpush1.bf16.msra.mxu0 %v1569
        %1605 = vmatprep.subr.bf16.mxu0 %v1568
        %1606 = vmatpush1.bf16.msra.mxu0 %v1567
        %1607 = vmatprep.subr.bf16.mxu0 %v1566
        %1608 = vmatpush1.bf16.msra.mxu0 %v1565
        %1609 = vmatprep.subr.bf16.mxu0 %v1564
        %1610 = vmatpush1.bf16.msra.mxu0 %v1563
        %1611 = vmatprep.subr.bf16.mxu0 0
        %1612 = vmatpush2.bf16.msra.mxu0 0
        %1613 = vmatprep.subr.bf16.mxu0 0
        %1614 = vmatpush2.bf16.msra.mxu0 0
        %1615 = vmatprep.subr.bf16.mxu0 0
        %1616 = vmatpush2.bf16.msra.mxu0 0
        %1617 = vmatprep.subr.bf16.mxu0 0
        %1618 = vmatpush2.bf16.msra.mxu0 0
        %1619 = vmatprep.subr.bf16.mxu0 0
        %1620 = vmatpush2.bf16.msra.mxu0 0
        %1621 = vmatprep.subr.bf16.mxu0 0
        %1622 = vmatpush2.bf16.msra.mxu0 0
        %1623 = vmatprep.subr.bf16.mxu0 0
        %1624 = vmatpush2.bf16.msra.mxu0 0
        %1625 = vmatprep.subr.bf16.mxu0 0
        %1626 = vmatpush2.bf16.msra.mxu0 0
        %1627 = vmatprep.mubr.bf16.mxu0 0
        %1628 = vmatmul.mubr.bf16.gmra.mxu0 %v1483
        %v1629 = vpop.f32.mrf.mxu0
        %v1630 = vadd.f32 %v1261, %v1629
        %v1631 = vpop.f32.mrf.mxu0
        %v1632 = vadd.f32 %v1263, %v1631
        %v1633 = vpop.f32.mrf.mxu0
        %v1634 = vadd.f32 %v1265, %v1633
        %v1635 = vpop.f32.mrf.mxu0
        %v1636 = vadd.f32 %v1267, %v1635
        %1637 = vmatprep.mubr.bf16.mxu0 0
        %1638 = vmatmul.mubr.bf16.gmra.mxu0 %v1484
        %v1639 = vpop.f32.mrf.mxu0
        %v1640 = vadd.f32 %v1271, %v1639
        %v1641 = vpop.f32.mrf.mxu0
        %v1642 = vadd.f32 %v1273, %v1641
        %v1643 = vpop.f32.mrf.mxu0
        %v1644 = vadd.f32 %v1275, %v1643
        %v1645 = vpop.f32.mrf.mxu0
        %v1646 = vadd.f32 %v1277, %v1645
        %1647 = vmatprep.mubr.bf16.mxu0 0
        %1648 = vmatmul.mubr.bf16.gmra.mxu0 %v1485
        %v1649 = vpop.f32.mrf.mxu0
        %v1650 = vadd.f32 %v1281, %v1649
        %v1651 = vpop.f32.mrf.mxu0
        %v1652 = vadd.f32 %v1283, %v1651
        %v1653 = vpop.f32.mrf.mxu0
        %v1654 = vadd.f32 %v1285, %v1653
        %v1655 = vpop.f32.mrf.mxu0
        %v1656 = vadd.f32 %v1287, %v1655
        %1657 = vmatprep.mubr.bf16.mxu0 0
        %1658 = vmatmul.mubr.bf16.gmra.mxu0 %v1486
        %v1659 = vpop.f32.mrf.mxu0
        %v1660 = vadd.f32 %v1291, %v1659
        %v1661 = vpop.f32.mrf.mxu0
        %v1662 = vadd.f32 %v1293, %v1661
        %v1663 = vpop.f32.mrf.mxu0
        %v1664 = vadd.f32 %v1295, %v1663
        %v1665 = vpop.f32.mrf.mxu0
        %v1666 = vadd.f32 %v1297, %v1665
        %1667 = vmatprep.mubr.bf16.mxu0 0
        %1668 = vmatmul.mubr.bf16.gmra.mxu0 %v1487
        %v1669 = vpop.f32.mrf.mxu0
        %v1670 = vadd.f32 %v1301, %v1669
        %v1671 = vpop.f32.mrf.mxu0
        %v1672 = vadd.f32 %v1303, %v1671
        %v1673 = vpop.f32.mrf.mxu0
        %v1674 = vadd.f32 %v1305, %v1673
        %v1675 = vpop.f32.mrf.mxu0
        %v1676 = vadd.f32 %v1307, %v1675
        %1677 = vmatprep.mubr.bf16.mxu0 0
        %1678 = vmatmul.mubr.bf16.gmra.mxu0 %v1488
        %v1679 = vpop.f32.mrf.mxu0
        %v1680 = vadd.f32 %v1311, %v1679
        %v1681 = vpop.f32.mrf.mxu0
        %v1682 = vadd.f32 %v1313, %v1681
        %v1683 = vpop.f32.mrf.mxu0
        %v1684 = vadd.f32 %v1315, %v1683
        %v1685 = vpop.f32.mrf.mxu0
        %v1686 = vadd.f32 %v1317, %v1685
        %1687 = vmatprep.mubr.bf16.mxu0 0
        %1688 = vmatmul.mubr.bf16.gmra.mxu0 %v1489
        %v1689 = vpop.f32.mrf.mxu0
        %v1690 = vadd.f32 %v1321, %v1689
        %v1691 = vpop.f32.mrf.mxu0
        %v1692 = vadd.f32 %v1323, %v1691
        %v1693 = vpop.f32.mrf.mxu0
        %v1694 = vadd.f32 %v1325, %v1693
        %v1695 = vpop.f32.mrf.mxu0
        %v1696 = vadd.f32 %v1327, %v1695
        %1697 = vmatprep.mubr.bf16.mxu0 0
        %1698 = vmatmul.mubr.bf16.gmra.mxu0 %v1490
        %v1699 = vpop.f32.mrf.mxu0
        %v1700 = vadd.f32 %v1331, %v1699
        %v1701 = vpop.f32.mrf.mxu0
        %v1702 = vadd.f32 %v1333, %v1701
        %v1703 = vpop.f32.mrf.mxu0
        %v1704 = vadd.f32 %v1335, %v1703
        %v1705 = vpop.f32.mrf.mxu0
        %v1706 = vadd.f32 %v1337, %v1705
        %1707 = vmatprep.mubr.bf16.mxu0 0
        %1708 = vmatmul.mubr.bf16.gmra.mxu0 %v1491
        %v1709 = vpop.f32.mrf.mxu0
        %v1710 = vadd.f32 %v1341, %v1709
        %v1711 = vpop.f32.mrf.mxu0
        %v1712 = vadd.f32 %v1343, %v1711
        %v1713 = vpop.f32.mrf.mxu0
        %v1714 = vadd.f32 %v1345, %v1713
        %v1715 = vpop.f32.mrf.mxu0
        %v1716 = vadd.f32 %v1347, %v1715
        %1717 = vmatprep.mubr.bf16.mxu0 0
        %1718 = vmatmul.mubr.bf16.gmra.mxu0 %v1492
        %v1719 = vpop.f32.mrf.mxu0
        %v1720 = vadd.f32 %v1351, %v1719
        %v1721 = vpop.f32.mrf.mxu0
        %v1722 = vadd.f32 %v1353, %v1721
        %v1723 = vpop.f32.mrf.mxu0
        %v1724 = vadd.f32 %v1355, %v1723
        %v1725 = vpop.f32.mrf.mxu0
        %v1726 = vadd.f32 %v1357, %v1725
        %1727 = vmatprep.mubr.bf16.mxu0 0
        %1728 = vmatmul.mubr.bf16.gmra.mxu0 %v1493
        %v1729 = vpop.f32.mrf.mxu0
        %v1730 = vadd.f32 %v1361, %v1729
        %v1731 = vpop.f32.mrf.mxu0
        %v1732 = vadd.f32 %v1363, %v1731
        %v1733 = vpop.f32.mrf.mxu0
        %v1734 = vadd.f32 %v1365, %v1733
        %v1735 = vpop.f32.mrf.mxu0
        %v1736 = vadd.f32 %v1367, %v1735
        %1737 = vmatprep.mubr.bf16.mxu0 0
        %1738 = vmatmul.mubr.bf16.gmra.mxu0 %v1494
        %v1739 = vpop.f32.mrf.mxu0
        %v1740 = vadd.f32 %v1371, %v1739
        %v1741 = vpop.f32.mrf.mxu0
        %v1742 = vadd.f32 %v1373, %v1741
        %v1743 = vpop.f32.mrf.mxu0
        %v1744 = vadd.f32 %v1375, %v1743
        %v1745 = vpop.f32.mrf.mxu0
        %v1746 = vadd.f32 %v1377, %v1745
        %1747 = vmatprep.mubr.bf16.mxu0 0
        %1748 = vmatmul.mubr.bf16.gmra.mxu0 %v1495
        %v1749 = vpop.f32.mrf.mxu0
        %v1750 = vadd.f32 %v1381, %v1749
        %v1751 = vpop.f32.mrf.mxu0
        %v1752 = vadd.f32 %v1383, %v1751
        %v1753 = vpop.f32.mrf.mxu0
        %v1754 = vadd.f32 %v1385, %v1753
        %v1755 = vpop.f32.mrf.mxu0
        %v1756 = vadd.f32 %v1387, %v1755
        %1757 = vmatprep.mubr.bf16.mxu0 0
        %1758 = vmatmul.mubr.bf16.gmra.mxu0 %v1496
        %v1759 = vpop.f32.mrf.mxu0
        %v1760 = vadd.f32 %v1391, %v1759
        %v1761 = vpop.f32.mrf.mxu0
        %v1762 = vadd.f32 %v1393, %v1761
        %v1763 = vpop.f32.mrf.mxu0
        %v1764 = vadd.f32 %v1395, %v1763
        %v1765 = vpop.f32.mrf.mxu0
        %v1766 = vadd.f32 %v1397, %v1765
        %1767 = vmatprep.mubr.bf16.mxu0 0
        %1768 = vmatmul.mubr.bf16.gmra.mxu0 %v1497
        %v1769 = vpop.f32.mrf.mxu0
        %v1770 = vadd.f32 %v1401, %v1769
        %v1771 = vpop.f32.mrf.mxu0
        %v1772 = vadd.f32 %v1403, %v1771
        %v1773 = vpop.f32.mrf.mxu0
        %v1774 = vadd.f32 %v1405, %v1773
        %v1775 = vpop.f32.mrf.mxu0
        %v1776 = vadd.f32 %v1407, %v1775
        %1777 = vmatprep.mubr.bf16.mxu0 0
        %1778 = vmatmul.mubr.bf16.gmra.mxu0 %v1498
        %v1779 = vpop.f32.mrf.mxu0
        %v1780 = vadd.f32 %v1411, %v1779
        %v1781 = vpop.f32.mrf.mxu0
        %v1782 = vadd.f32 %v1413, %v1781
        %v1783 = vpop.f32.mrf.mxu0
        %v1784 = vadd.f32 %v1415, %v1783
        %v1785 = vpop.f32.mrf.mxu0
        %v1786 = vadd.f32 %v1417, %v1785
        %1787 = vdwg.mxu0
        %v1788 = vld [vmem:[%s920] sm:$0xf]
        %v1789 = vld [vmem:[%s920 + $0x4] sm:$0xf]
        %v1790 = vld [vmem:[%s920 + $0x8] sm:$0xf]
        %v1791 = vld [vmem:[%s920 + $0xc] sm:$0xf]
        %v1792 = vld [vmem:[%s920 + $0x10] sm:$0xf]
        %v1793 = vld [vmem:[%s920 + $0x14] sm:$0xf]
        %v1794 = vld [vmem:[%s920 + $0x18] sm:$0xf]
        %v1795 = vld [vmem:[%s920 + $0x1c] sm:$0xf]
        %v1796 = vld [vmem:[%s920 + $0x20] sm:$0xf]
        %v1797 = vld [vmem:[%s920 + $0x24] sm:$0xf]
        %v1798 = vld [vmem:[%s920 + $0x28] sm:$0xf]
        %v1799 = vld [vmem:[%s920 + $0x2c] sm:$0xf]
        %v1800 = vld [vmem:[%s920 + $0x30] sm:$0xf]
        %v1801 = vld [vmem:[%s920 + $0x34] sm:$0xf]
        %v1802 = vld [vmem:[%s920 + $0x38] sm:$0xf]
        %v1803 = vld [vmem:[%s920 + $0x3c] sm:$0xf]
        %v1804 = vld [vmem:[%s920 + $0x40] sm:$0xf]
        %v1805 = vld [vmem:[%s920 + $0x44] sm:$0xf]
        %v1806 = vld [vmem:[%s920 + $0x48] sm:$0xf]
        %v1807 = vld [vmem:[%s920 + $0x4c] sm:$0xf]
        %v1808 = vld [vmem:[%s920 + $0x50] sm:$0xf]
        %v1809 = vld [vmem:[%s920 + $0x54] sm:$0xf]
        %v1810 = vld [vmem:[%s920 + $0x58] sm:$0xf]
        %v1811 = vld [vmem:[%s920 + $0x5c] sm:$0xf]
        %v1812 = vld [vmem:[%s920 + $0x60] sm:$0xf]
        %v1813 = vld [vmem:[%s920 + $0x64] sm:$0xf]
        %v1814 = vld [vmem:[%s920 + $0x68] sm:$0xf]
        %v1815 = vld [vmem:[%s920 + $0x6c] sm:$0xf]
        %v1816 = vld [vmem:[%s920 + $0x70] sm:$0xf]
        %v1817 = vld [vmem:[%s920 + $0x74] sm:$0xf]
        %v1818 = vld [vmem:[%s920 + $0x78] sm:$0xf]
        %v1819 = vld [vmem:[%s920 + $0x7c] sm:$0xf]
        %s1820 = scalar_lea.vmem [#allocation8], 256
        %v1821 = vld [vmem:[%s1820] sm:$0xff]
        %v1822 = vld [vmem:[%s1820 + $0x8] sm:$0xff]
        %v1823 = vld [vmem:[%s1820 + $0x10] sm:$0xff]
        %v1824 = vld [vmem:[%s1820 + $0x18] sm:$0xff]
        %v1825 = vld [vmem:[%s1820 + $0x20] sm:$0xff]
        %v1826 = vld [vmem:[%s1820 + $0x28] sm:$0xff]
        %v1827 = vld [vmem:[%s1820 + $0x30] sm:$0xff]
        %v1828 = vld [vmem:[%s1820 + $0x38] sm:$0xff]
        %v1829 = vld [vmem:[%s1820 + $0x40] sm:$0xff]
        %v1830 = vld [vmem:[%s1820 + $0x48] sm:$0xff]
        %v1831 = vld [vmem:[%s1820 + $0x50] sm:$0xff]
        %v1832 = vld [vmem:[%s1820 + $0x58] sm:$0xff]
        %v1833 = vld [vmem:[%s1820 + $0x60] sm:$0xff]
        %v1834 = vld [vmem:[%s1820 + $0x68] sm:$0xff]
        %v1835 = vld [vmem:[%s1820 + $0x70] sm:$0xff]
        %v1836 = vld [vmem:[%s1820 + $0x78] sm:$0xff]
        %v1869 = vunpack.c.l.b16 %v1788
        %v1870 = vunpack.c.l.b16 %v1789
        %v1871 = vunpack.c.l.b16 %v1790
        %v1872 = vunpack.c.l.b16 %v1791
        %v1873 = vunpack.c.l.b16 %v1792
        %v1874 = vunpack.c.l.b16 %v1793
        %v1875 = vunpack.c.l.b16 %v1794
        %v1876 = vunpack.c.l.b16 %v1795
        %v1877 = vunpack.c.l.b16 %v1796
        %v1878 = vunpack.c.l.b16 %v1797
        %v1879 = vunpack.c.l.b16 %v1798
        %v1880 = vunpack.c.l.b16 %v1799
        %v1881 = vunpack.c.l.b16 %v1800
        %v1882 = vunpack.c.l.b16 %v1801
        %v1883 = vunpack.c.l.b16 %v1802
        %v1884 = vunpack.c.l.b16 %v1803
        %v1885 = vunpack.c.l.b16 %v1804
        %v1886 = vunpack.c.l.b16 %v1805
        %v1887 = vunpack.c.l.b16 %v1806
        %v1888 = vunpack.c.l.b16 %v1807
        %v1889 = vunpack.c.l.b16 %v1808
        %v1890 = vunpack.c.l.b16 %v1809
        %v1891 = vunpack.c.l.b16 %v1810
        %v1892 = vunpack.c.l.b16 %v1811
        %v1893 = vunpack.c.l.b16 %v1812
        %v1894 = vunpack.c.l.b16 %v1813
        %v1895 = vunpack.c.l.b16 %v1814
        %v1896 = vunpack.c.l.b16 %v1815
        %v1897 = vunpack.c.l.b16 %v1816
        %v1898 = vunpack.c.l.b16 %v1817
        %v1899 = vunpack.c.l.b16 %v1818
        %v1900 = vunpack.c.l.b16 %v1819
        %v1901 = vpack.c.b16 %v1870, %v1869
        %v1902 = vpack.c.b16 %v1872, %v1871
        %v1903 = vpack.c.b16 %v1874, %v1873
        %v1904 = vpack.c.b16 %v1876, %v1875
        %v1905 = vpack.c.b16 %v1878, %v1877
        %v1906 = vpack.c.b16 %v1880, %v1879
        %v1907 = vpack.c.b16 %v1882, %v1881
        %v1908 = vpack.c.b16 %v1884, %v1883
        %v1909 = vpack.c.b16 %v1886, %v1885
        %v1910 = vpack.c.b16 %v1888, %v1887
        %v1911 = vpack.c.b16 %v1890, %v1889
        %v1912 = vpack.c.b16 %v1892, %v1891
        %v1913 = vpack.c.b16 %v1894, %v1893
        %v1914 = vpack.c.b16 %v1896, %v1895
        %v1915 = vpack.c.b16 %v1898, %v1897
        %v1916 = vpack.c.b16 %v1900, %v1899
        %v1949 = vunpack.c.l.b16 %v1821
        %v1950 = vunpack.c.h.b16 %v1821
        %v1951 = vunpack.c.l.b16 %v1822
        %v1952 = vunpack.c.h.b16 %v1822
        %v1953 = vunpack.c.l.b16 %v1823
        %v1954 = vunpack.c.h.b16 %v1823
        %v1955 = vunpack.c.l.b16 %v1824
        %v1956 = vunpack.c.h.b16 %v1824
        %v1957 = vunpack.c.l.b16 %v1825
        %v1958 = vunpack.c.h.b16 %v1825
        %v1959 = vunpack.c.l.b16 %v1826
        %v1960 = vunpack.c.h.b16 %v1826
        %v1961 = vunpack.c.l.b16 %v1827
        %v1962 = vunpack.c.h.b16 %v1827
        %v1963 = vunpack.c.l.b16 %v1828
        %v1964 = vunpack.c.h.b16 %v1828
        %v1965 = vunpack.c.l.b16 %v1829
        %v1966 = vunpack.c.h.b16 %v1829
        %v1967 = vunpack.c.l.b16 %v1830
        %v1968 = vunpack.c.h.b16 %v1830
        %v1969 = vunpack.c.l.b16 %v1831
        %v1970 = vunpack.c.h.b16 %v1831
        %v1971 = vunpack.c.l.b16 %v1832
        %v1972 = vunpack.c.h.b16 %v1832
        %v1973 = vunpack.c.l.b16 %v1833
        %v1974 = vunpack.c.h.b16 %v1833
        %v1975 = vunpack.c.l.b16 %v1834
        %v1976 = vunpack.c.h.b16 %v1834
        %v1977 = vunpack.c.l.b16 %v1835
        %v1978 = vunpack.c.h.b16 %v1835
        %v1979 = vunpack.c.l.b16 %v1836
        %v1980 = vunpack.c.h.b16 %v1836
        %v1981 = vpack.c.b16 %v1951, %v1949
        %v1982 = vpack.c.b16 %v1952, %v1950
        %v1983 = vpack.c.b16 %v1955, %v1953
        %v1984 = vpack.c.b16 %v1956, %v1954
        %v1985 = vpack.c.b16 %v1959, %v1957
        %v1986 = vpack.c.b16 %v1960, %v1958
        %v1987 = vpack.c.b16 %v1963, %v1961
        %v1988 = vpack.c.b16 %v1964, %v1962
        %v1989 = vpack.c.b16 %v1967, %v1965
        %v1990 = vpack.c.b16 %v1968, %v1966
        %v1991 = vpack.c.b16 %v1971, %v1969
        %v1992 = vpack.c.b16 %v1972, %v1970
        %v1993 = vpack.c.b16 %v1975, %v1973
        %v1994 = vpack.c.b16 %v1976, %v1974
        %v1995 = vpack.c.b16 %v1979, %v1977
        %v1996 = vpack.c.b16 %v1980, %v1978
        %2013 = vmatprep.subr.bf16.mxu0 %v1996
        %2014 = vmatpush1.bf16.msra.mxu0 %v1995
        %2015 = vmatprep.subr.bf16.mxu0 %v1994
        %2016 = vmatpush1.bf16.msra.mxu0 %v1993
        %2017 = vmatprep.subr.bf16.mxu0 %v1992
        %2018 = vmatpush1.bf16.msra.mxu0 %v1991
        %2019 = vmatprep.subr.bf16.mxu0 %v1990
        %2020 = vmatpush1.bf16.msra.mxu0 %v1989
        %2021 = vmatprep.subr.bf16.mxu0 %v1988
        %2022 = vmatpush1.bf16.msra.mxu0 %v1987
        %2023 = vmatprep.subr.bf16.mxu0 %v1986
        %2024 = vmatpush1.bf16.msra.mxu0 %v1985
        %2025 = vmatprep.subr.bf16.mxu0 %v1984
        %2026 = vmatpush1.bf16.msra.mxu0 %v1983
        %2027 = vmatprep.subr.bf16.mxu0 %v1982
        %2028 = vmatpush1.bf16.msra.mxu0 %v1981
        %2029 = vmatprep.subr.bf16.mxu0 0
        %2030 = vmatpush2.bf16.msra.mxu0 0
        %2031 = vmatprep.subr.bf16.mxu0 0
        %2032 = vmatpush2.bf16.msra.mxu0 0
        %2033 = vmatprep.subr.bf16.mxu0 0
        %2034 = vmatpush2.bf16.msra.mxu0 0
        %2035 = vmatprep.subr.bf16.mxu0 0
        %2036 = vmatpush2.bf16.msra.mxu0 0
        %2037 = vmatprep.subr.bf16.mxu0 0
        %2038 = vmatpush2.bf16.msra.mxu0 0
        %2039 = vmatprep.subr.bf16.mxu0 0
        %2040 = vmatpush2.bf16.msra.mxu0 0
        %2041 = vmatprep.subr.bf16.mxu0 0
        %2042 = vmatpush2.bf16.msra.mxu0 0
        %2043 = vmatprep.subr.bf16.mxu0 0
        %2044 = vmatpush2.bf16.msra.mxu0 0
        %2045 = vmatprep.mubr.bf16.mxu0 0
        %2046 = vmatmul.mubr.bf16.gmra.mxu0 %v1901
        %v2047 = vpop.f32.mrf.mxu0
        %v2048 = vadd.f32 0.0, %v2047
        %v2049 = vpop.f32.mrf.mxu0
        %v2050 = vadd.f32 0.0, %v2049
        %v2051 = vpop.f32.mrf.mxu0
        %v2052 = vadd.f32 0.0, %v2051
        %v2053 = vpop.f32.mrf.mxu0
        %v2054 = vadd.f32 0.0, %v2053
        %2055 = vmatprep.mubr.bf16.mxu0 0
        %2056 = vmatmul.mubr.bf16.gmra.mxu0 %v1902
        %v2057 = vpop.f32.mrf.mxu0
        %v2058 = vadd.f32 0.0, %v2057
        %v2059 = vpop.f32.mrf.mxu0
        %v2060 = vadd.f32 0.0, %v2059
        %v2061 = vpop.f32.mrf.mxu0
        %v2062 = vadd.f32 0.0, %v2061
        %v2063 = vpop.f32.mrf.mxu0
        %v2064 = vadd.f32 0.0, %v2063
        %2065 = vmatprep.mubr.bf16.mxu0 0
        %2066 = vmatmul.mubr.bf16.gmra.mxu0 %v1903
        %v2067 = vpop.f32.mrf.mxu0
        %v2068 = vadd.f32 0.0, %v2067
        %v2069 = vpop.f32.mrf.mxu0
        %v2070 = vadd.f32 0.0, %v2069
        %v2071 = vpop.f32.mrf.mxu0
        %v2072 = vadd.f32 0.0, %v2071
        %v2073 = vpop.f32.mrf.mxu0
        %v2074 = vadd.f32 0.0, %v2073
        %2075 = vmatprep.mubr.bf16.mxu0 0
        %2076 = vmatmul.mubr.bf16.gmra.mxu0 %v1904
        %v2077 = vpop.f32.mrf.mxu0
        %v2078 = vadd.f32 0.0, %v2077
        %v2079 = vpop.f32.mrf.mxu0
        %v2080 = vadd.f32 0.0, %v2079
        %v2081 = vpop.f32.mrf.mxu0
        %v2082 = vadd.f32 0.0, %v2081
        %v2083 = vpop.f32.mrf.mxu0
        %v2084 = vadd.f32 0.0, %v2083
        %2085 = vmatprep.mubr.bf16.mxu0 0
        %2086 = vmatmul.mubr.bf16.gmra.mxu0 %v1905
        %v2087 = vpop.f32.mrf.mxu0
        %v2088 = vadd.f32 0.0, %v2087
        %v2089 = vpop.f32.mrf.mxu0
        %v2090 = vadd.f32 0.0, %v2089
        %v2091 = vpop.f32.mrf.mxu0
        %v2092 = vadd.f32 0.0, %v2091
        %v2093 = vpop.f32.mrf.mxu0
        %v2094 = vadd.f32 0.0, %v2093
        %2095 = vmatprep.mubr.bf16.mxu0 0
        %2096 = vmatmul.mubr.bf16.gmra.mxu0 %v1906
        %v2097 = vpop.f32.mrf.mxu0
        %v2098 = vadd.f32 0.0, %v2097
        %v2099 = vpop.f32.mrf.mxu0
        %v2100 = vadd.f32 0.0, %v2099
        %v2101 = vpop.f32.mrf.mxu0
        %v2102 = vadd.f32 0.0, %v2101
        %v2103 = vpop.f32.mrf.mxu0
        %v2104 = vadd.f32 0.0, %v2103
        %2105 = vmatprep.mubr.bf16.mxu0 0
        %2106 = vmatmul.mubr.bf16.gmra.mxu0 %v1907
        %v2107 = vpop.f32.mrf.mxu0
        %v2108 = vadd.f32 0.0, %v2107
        %v2109 = vpop.f32.mrf.mxu0
        %v2110 = vadd.f32 0.0, %v2109
        %v2111 = vpop.f32.mrf.mxu0
        %v2112 = vadd.f32 0.0, %v2111
        %v2113 = vpop.f32.mrf.mxu0
        %v2114 = vadd.f32 0.0, %v2113
        %2115 = vmatprep.mubr.bf16.mxu0 0
        %2116 = vmatmul.mubr.bf16.gmra.mxu0 %v1908
        %v2117 = vpop.f32.mrf.mxu0
        %v2118 = vadd.f32 0.0, %v2117
        %v2119 = vpop.f32.mrf.mxu0
        %v2120 = vadd.f32 0.0, %v2119
        %v2121 = vpop.f32.mrf.mxu0
        %v2122 = vadd.f32 0.0, %v2121
        %v2123 = vpop.f32.mrf.mxu0
        %v2124 = vadd.f32 0.0, %v2123
        %2125 = vmatprep.mubr.bf16.mxu0 0
        %2126 = vmatmul.mubr.bf16.gmra.mxu0 %v1909
        %v2127 = vpop.f32.mrf.mxu0
        %v2128 = vadd.f32 0.0, %v2127
        %v2129 = vpop.f32.mrf.mxu0
        %v2130 = vadd.f32 0.0, %v2129
        %v2131 = vpop.f32.mrf.mxu0
        %v2132 = vadd.f32 0.0, %v2131
        %v2133 = vpop.f32.mrf.mxu0
        %v2134 = vadd.f32 0.0, %v2133
        %2135 = vmatprep.mubr.bf16.mxu0 0
        %2136 = vmatmul.mubr.bf16.gmra.mxu0 %v1910
        %v2137 = vpop.f32.mrf.mxu0
        %v2138 = vadd.f32 0.0, %v2137
        %v2139 = vpop.f32.mrf.mxu0
        %v2140 = vadd.f32 0.0, %v2139
        %v2141 = vpop.f32.mrf.mxu0
        %v2142 = vadd.f32 0.0, %v2141
        %v2143 = vpop.f32.mrf.mxu0
        %v2144 = vadd.f32 0.0, %v2143
        %2145 = vmatprep.mubr.bf16.mxu0 0
        %2146 = vmatmul.mubr.bf16.gmra.mxu0 %v1911
        %v2147 = vpop.f32.mrf.mxu0
        %v2148 = vadd.f32 0.0, %v2147
        %v2149 = vpop.f32.mrf.mxu0
        %v2150 = vadd.f32 0.0, %v2149
        %v2151 = vpop.f32.mrf.mxu0
        %v2152 = vadd.f32 0.0, %v2151
        %v2153 = vpop.f32.mrf.mxu0
        %v2154 = vadd.f32 0.0, %v2153
        %2155 = vmatprep.mubr.bf16.mxu0 0
        %2156 = vmatmul.mubr.bf16.gmra.mxu0 %v1912
        %v2157 = vpop.f32.mrf.mxu0
        %v2158 = vadd.f32 0.0, %v2157
        %v2159 = vpop.f32.mrf.mxu0
        %v2160 = vadd.f32 0.0, %v2159
        %v2161 = vpop.f32.mrf.mxu0
        %v2162 = vadd.f32 0.0, %v2161
        %v2163 = vpop.f32.mrf.mxu0
        %v2164 = vadd.f32 0.0, %v2163
        %2165 = vmatprep.mubr.bf16.mxu0 0
        %2166 = vmatmul.mubr.bf16.gmra.mxu0 %v1913
        %v2167 = vpop.f32.mrf.mxu0
        %v2168 = vadd.f32 0.0, %v2167
        %v2169 = vpop.f32.mrf.mxu0
        %v2170 = vadd.f32 0.0, %v2169
        %v2171 = vpop.f32.mrf.mxu0
        %v2172 = vadd.f32 0.0, %v2171
        %v2173 = vpop.f32.mrf.mxu0
        %v2174 = vadd.f32 0.0, %v2173
        %2175 = vmatprep.mubr.bf16.mxu0 0
        %2176 = vmatmul.mubr.bf16.gmra.mxu0 %v1914
        %v2177 = vpop.f32.mrf.mxu0
        %v2178 = vadd.f32 0.0, %v2177
        %v2179 = vpop.f32.mrf.mxu0
        %v2180 = vadd.f32 0.0, %v2179
        %v2181 = vpop.f32.mrf.mxu0
        %v2182 = vadd.f32 0.0, %v2181
        %v2183 = vpop.f32.mrf.mxu0
        %v2184 = vadd.f32 0.0, %v2183
        %2185 = vmatprep.mubr.bf16.mxu0 0
        %2186 = vmatmul.mubr.bf16.gmra.mxu0 %v1915
        %v2187 = vpop.f32.mrf.mxu0
        %v2188 = vadd.f32 0.0, %v2187
        %v2189 = vpop.f32.mrf.mxu0
        %v2190 = vadd.f32 0.0, %v2189
        %v2191 = vpop.f32.mrf.mxu0
        %v2192 = vadd.f32 0.0, %v2191
        %v2193 = vpop.f32.mrf.mxu0
        %v2194 = vadd.f32 0.0, %v2193
        %2195 = vmatprep.mubr.bf16.mxu0 0
        %2196 = vmatmul.mubr.bf16.gmra.mxu0 %v1916
        %v2197 = vpop.f32.mrf.mxu0
        %v2198 = vadd.f32 0.0, %v2197
        %v2199 = vpop.f32.mrf.mxu0
        %v2200 = vadd.f32 0.0, %v2199
        %v2201 = vpop.f32.mrf.mxu0
        %v2202 = vadd.f32 0.0, %v2201
        %v2203 = vpop.f32.mrf.mxu0
        %v2204 = vadd.f32 0.0, %v2203
        %2205 = vdwg.mxu0
        %v2206 = vadd.f32 %v1630, %v2048
        %v2207 = vadd.f32 %v1632, %v2050
        %v2208 = vadd.f32 %v1634, %v2052
        %v2209 = vadd.f32 %v1636, %v2054
        %v2210 = vadd.f32 %v1640, %v2058
        %v2211 = vadd.f32 %v1642, %v2060
        %v2212 = vadd.f32 %v1644, %v2062
        %v2213 = vadd.f32 %v1646, %v2064
        %v2214 = vadd.f32 %v1650, %v2068
        %v2215 = vadd.f32 %v1652, %v2070
        %v2216 = vadd.f32 %v1654, %v2072
        %v2217 = vadd.f32 %v1656, %v2074
        %v2218 = vadd.f32 %v1660, %v2078
        %v2219 = vadd.f32 %v1662, %v2080
        %v2220 = vadd.f32 %v1664, %v2082
        %v2221 = vadd.f32 %v1666, %v2084
        %v2222 = vadd.f32 %v1670, %v2088
        %v2223 = vadd.f32 %v1672, %v2090
        %v2224 = vadd.f32 %v1674, %v2092
        %v2225 = vadd.f32 %v1676, %v2094
        %v2226 = vadd.f32 %v1680, %v2098
        %v2227 = vadd.f32 %v1682, %v2100
        %v2228 = vadd.f32 %v1684, %v2102
        %v2229 = vadd.f32 %v1686, %v2104
        %v2230 = vadd.f32 %v1690, %v2108
        %v2231 = vadd.f32 %v1692, %v2110
        %v2232 = vadd.f32 %v1694, %v2112
        %v2233 = vadd.f32 %v1696, %v2114
        %v2234 = vadd.f32 %v1700, %v2118
        %v2235 = vadd.f32 %v1702, %v2120
        %v2236 = vadd.f32 %v1704, %v2122
        %v2237 = vadd.f32 %v1706, %v2124
        %v2238 = vadd.f32 %v1710, %v2128
        %v2239 = vadd.f32 %v1712, %v2130
        %v2240 = vadd.f32 %v1714, %v2132
        %v2241 = vadd.f32 %v1716, %v2134
        %v2242 = vadd.f32 %v1720, %v2138
        %v2243 = vadd.f32 %v1722, %v2140
        %v2244 = vadd.f32 %v1724, %v2142
        %v2245 = vadd.f32 %v1726, %v2144
        %v2246 = vadd.f32 %v1730, %v2148
        %v2247 = vadd.f32 %v1732, %v2150
        %v2248 = vadd.f32 %v1734, %v2152
        %v2249 = vadd.f32 %v1736, %v2154
        %v2250 = vadd.f32 %v1740, %v2158
        %v2251 = vadd.f32 %v1742, %v2160
        %v2252 = vadd.f32 %v1744, %v2162
        %v2253 = vadd.f32 %v1746, %v2164
        %v2254 = vadd.f32 %v1750, %v2168
        %v2255 = vadd.f32 %v1752, %v2170
        %v2256 = vadd.f32 %v1754, %v2172
        %v2257 = vadd.f32 %v1756, %v2174
        %v2258 = vadd.f32 %v1760, %v2178
        %v2259 = vadd.f32 %v1762, %v2180
        %v2260 = vadd.f32 %v1764, %v2182
        %v2261 = vadd.f32 %v1766, %v2184
        %v2262 = vadd.f32 %v1770, %v2188
        %v2263 = vadd.f32 %v1772, %v2190
        %v2264 = vadd.f32 %v1774, %v2192
        %v2265 = vadd.f32 %v1776, %v2194
        %v2266 = vadd.f32 %v1780, %v2198
        %v2267 = vadd.f32 %v1782, %v2200
        %v2268 = vadd.f32 %v1784, %v2202
        %v2269 = vadd.f32 %v1786, %v2204
        %v2270 = vld [vmem:[%s383] sm:$0x3]
        %v2272 = vlaneseq
        %v2273 = vshrl.u32 %v2272, 7
        %v2274 = vsub.s32 0, %v2273
        %v2275 = vrot.slane %v2270, %v2274
        %v2276 = vlaneseq
        %v2277 = vshrl.u32 %v2276, 7
        %v2278 = vsub.s32 1, %v2277
        %v2279 = vrot.slane %v2270, %v2278
        %v2282 = vadd.f32 %v2206, %v2275
        %v2283 = vadd.f32 %v2207, %v2279
        %v2284 = vadd.f32 %v2208, %v2275
        %v2285 = vadd.f32 %v2209, %v2279
        %v2286 = vadd.f32 %v2210, %v2275
        %v2287 = vadd.f32 %v2211, %v2279
        %v2288 = vadd.f32 %v2212, %v2275
        %v2289 = vadd.f32 %v2213, %v2279
        %v2290 = vadd.f32 %v2214, %v2275
        %v2291 = vadd.f32 %v2215, %v2279
        %v2292 = vadd.f32 %v2216, %v2275
        %v2293 = vadd.f32 %v2217, %v2279
        %v2294 = vadd.f32 %v2218, %v2275
        %v2295 = vadd.f32 %v2219, %v2279
        %v2296 = vadd.f32 %v2220, %v2275
        %v2297 = vadd.f32 %v2221, %v2279
        %v2298 = vadd.f32 %v2222, %v2275
        %v2299 = vadd.f32 %v2223, %v2279
        %v2300 = vadd.f32 %v2224, %v2275
        %v2301 = vadd.f32 %v2225, %v2279
        %v2302 = vadd.f32 %v2226, %v2275
        %v2303 = vadd.f32 %v2227, %v2279
        %v2304 = vadd.f32 %v2228, %v2275
        %v2305 = vadd.f32 %v2229, %v2279
        %v2306 = vadd.f32 %v2230, %v2275
        %v2307 = vadd.f32 %v2231, %v2279
        %v2308 = vadd.f32 %v2232, %v2275
        %v2309 = vadd.f32 %v2233, %v2279
        %v2310 = vadd.f32 %v2234, %v2275
        %v2311 = vadd.f32 %v2235, %v2279
        %v2312 = vadd.f32 %v2236, %v2275
        %v2313 = vadd.f32 %v2237, %v2279
        %v2314 = vadd.f32 %v2238, %v2275
        %v2315 = vadd.f32 %v2239, %v2279
        %v2316 = vadd.f32 %v2240, %v2275
        %v2317 = vadd.f32 %v2241, %v2279
        %v2318 = vadd.f32 %v2242, %v2275
        %v2319 = vadd.f32 %v2243, %v2279
        %v2320 = vadd.f32 %v2244, %v2275
        %v2321 = vadd.f32 %v2245, %v2279
        %v2322 = vadd.f32 %v2246, %v2275
        %v2323 = vadd.f32 %v2247, %v2279
        %v2324 = vadd.f32 %v2248, %v2275
        %v2325 = vadd.f32 %v2249, %v2279
        %v2326 = vadd.f32 %v2250, %v2275
        %v2327 = vadd.f32 %v2251, %v2279
        %v2328 = vadd.f32 %v2252, %v2275
        %v2329 = vadd.f32 %v2253, %v2279
        %v2330 = vadd.f32 %v2254, %v2275
        %v2331 = vadd.f32 %v2255, %v2279
        %v2332 = vadd.f32 %v2256, %v2275
        %v2333 = vadd.f32 %v2257, %v2279
        %v2334 = vadd.f32 %v2258, %v2275
        %v2335 = vadd.f32 %v2259, %v2279
        %v2336 = vadd.f32 %v2260, %v2275
        %v2337 = vadd.f32 %v2261, %v2279
        %v2338 = vadd.f32 %v2262, %v2275
        %v2339 = vadd.f32 %v2263, %v2279
        %v2340 = vadd.f32 %v2264, %v2275
        %v2341 = vadd.f32 %v2265, %v2279
        %v2342 = vadd.f32 %v2266, %v2275
        %v2343 = vadd.f32 %v2267, %v2279
        %v2344 = vadd.f32 %v2268, %v2275
        %v2345 = vadd.f32 %v2269, %v2279
        %v2346 = vmul.f32 %v2282, 0.5
        %v2347 = vmul.f32 %v2283, 0.5
        %v2348 = vmul.f32 %v2284, 0.5
        %v2349 = vmul.f32 %v2285, 0.5
        %v2350 = vmul.f32 %v2286, 0.5
        %v2351 = vmul.f32 %v2287, 0.5
        %v2352 = vmul.f32 %v2288, 0.5
        %v2353 = vmul.f32 %v2289, 0.5
        %v2354 = vmul.f32 %v2290, 0.5
        %v2355 = vmul.f32 %v2291, 0.5
        %v2356 = vmul.f32 %v2292, 0.5
        %v2357 = vmul.f32 %v2293, 0.5
        %v2358 = vmul.f32 %v2294, 0.5
        %v2359 = vmul.f32 %v2295, 0.5
        %v2360 = vmul.f32 %v2296, 0.5
        %v2361 = vmul.f32 %v2297, 0.5
        %v2362 = vmul.f32 %v2298, 0.5
        %v2363 = vmul.f32 %v2299, 0.5
        %v2364 = vmul.f32 %v2300, 0.5
        %v2365 = vmul.f32 %v2301, 0.5
        %v2366 = vmul.f32 %v2302, 0.5
        %v2367 = vmul.f32 %v2303, 0.5
        %v2368 = vmul.f32 %v2304, 0.5
        %v2369 = vmul.f32 %v2305, 0.5
        %v2370 = vmul.f32 %v2306, 0.5
        %v2371 = vmul.f32 %v2307, 0.5
        %v2372 = vmul.f32 %v2308, 0.5
        %v2373 = vmul.f32 %v2309, 0.5
        %v2374 = vmul.f32 %v2310, 0.5
        %v2375 = vmul.f32 %v2311, 0.5
        %v2376 = vmul.f32 %v2312, 0.5
        %v2377 = vmul.f32 %v2313, 0.5
        %v2378 = vmul.f32 %v2314, 0.5
        %v2379 = vmul.f32 %v2315, 0.5
        %v2380 = vmul.f32 %v2316, 0.5
        %v2381 = vmul.f32 %v2317, 0.5
        %v2382 = vmul.f32 %v2318, 0.5
        %v2383 = vmul.f32 %v2319, 0.5
        %v2384 = vmul.f32 %v2320, 0.5
        %v2385 = vmul.f32 %v2321, 0.5
        %v2386 = vmul.f32 %v2322, 0.5
        %v2387 = vmul.f32 %v2323, 0.5
        %v2388 = vmul.f32 %v2324, 0.5
        %v2389 = vmul.f32 %v2325, 0.5
        %v2390 = vmul.f32 %v2326, 0.5
        %v2391 = vmul.f32 %v2327, 0.5
        %v2392 = vmul.f32 %v2328, 0.5
        %v2393 = vmul.f32 %v2329, 0.5
        %v2394 = vmul.f32 %v2330, 0.5
        %v2395 = vmul.f32 %v2331, 0.5
        %v2396 = vmul.f32 %v2332, 0.5
        %v2397 = vmul.f32 %v2333, 0.5
        %v2398 = vmul.f32 %v2334, 0.5
        %v2399 = vmul.f32 %v2335, 0.5
        %v2400 = vmul.f32 %v2336, 0.5
        %v2401 = vmul.f32 %v2337, 0.5
        %v2402 = vmul.f32 %v2338, 0.5
        %v2403 = vmul.f32 %v2339, 0.5
        %v2404 = vmul.f32 %v2340, 0.5
        %v2405 = vmul.f32 %v2341, 0.5
        %v2406 = vmul.f32 %v2342, 0.5
        %v2407 = vmul.f32 %v2343, 0.5
        %v2408 = vmul.f32 %v2344, 0.5
        %v2409 = vmul.f32 %v2345, 0.5
        %v2410 = vmul.f32 %v2282, 0.70710677
        %v2411 = vmul.f32 %v2283, 0.70710677
        %v2412 = vmul.f32 %v2284, 0.70710677
        %v2413 = vmul.f32 %v2285, 0.70710677
        %v2414 = vmul.f32 %v2286, 0.70710677
        %v2415 = vmul.f32 %v2287, 0.70710677
        %v2416 = vmul.f32 %v2288, 0.70710677
        %v2417 = vmul.f32 %v2289, 0.70710677
        %v2418 = vmul.f32 %v2290, 0.70710677
        %v2419 = vmul.f32 %v2291, 0.70710677
        %v2420 = vmul.f32 %v2292, 0.70710677
        %v2421 = vmul.f32 %v2293, 0.70710677
        %v2422 = vmul.f32 %v2294, 0.70710677
        %v2423 = vmul.f32 %v2295, 0.70710677
        %v2424 = vmul.f32 %v2296, 0.70710677
        %v2425 = vmul.f32 %v2297, 0.70710677
        %v2426 = vmul.f32 %v2298, 0.70710677
        %v2427 = vmul.f32 %v2299, 0.70710677
        %v2428 = vmul.f32 %v2300, 0.70710677
        %v2429 = vmul.f32 %v2301, 0.70710677
        %v2430 = vmul.f32 %v2302, 0.70710677
        %v2431 = vmul.f32 %v2303, 0.70710677
        %v2432 = vmul.f32 %v2304, 0.70710677
        %v2433 = vmul.f32 %v2305, 0.70710677
        %v2434 = vmul.f32 %v2306, 0.70710677
        %v2435 = vmul.f32 %v2307, 0.70710677
        %v2436 = vmul.f32 %v2308, 0.70710677
        %v2437 = vmul.f32 %v2309, 0.70710677
        %v2438 = vmul.f32 %v2310, 0.70710677
        %v2439 = vmul.f32 %v2311, 0.70710677
        %v2440 = vmul.f32 %v2312, 0.70710677
        %v2441 = vmul.f32 %v2313, 0.70710677
        %v2442 = vmul.f32 %v2314, 0.70710677
        %v2443 = vmul.f32 %v2315, 0.70710677
        %v2444 = vmul.f32 %v2316, 0.70710677
        %v2445 = vmul.f32 %v2317, 0.70710677
        %v2446 = vmul.f32 %v2318, 0.70710677
        %v2447 = vmul.f32 %v2319, 0.70710677
        %v2448 = vmul.f32 %v2320, 0.70710677
        %v2449 = vmul.f32 %v2321, 0.70710677
        %v2450 = vmul.f32 %v2322, 0.70710677
        %v2451 = vmul.f32 %v2323, 0.70710677
        %v2452 = vmul.f32 %v2324, 0.70710677
        %v2453 = vmul.f32 %v2325, 0.70710677
        %v2454 = vmul.f32 %v2326, 0.70710677
        %v2455 = vmul.f32 %v2327, 0.70710677
        %v2456 = vmul.f32 %v2328, 0.70710677
        %v2457 = vmul.f32 %v2329, 0.70710677
        %v2458 = vmul.f32 %v2330, 0.70710677
        %v2459 = vmul.f32 %v2331, 0.70710677
        %v2460 = vmul.f32 %v2332, 0.70710677
        %v2461 = vmul.f32 %v2333, 0.70710677
        %v2462 = vmul.f32 %v2334, 0.70710677
        %v2463 = vmul.f32 %v2335, 0.70710677
        %v2464 = vmul.f32 %v2336, 0.70710677
        %v2465 = vmul.f32 %v2337, 0.70710677
        %v2466 = vmul.f32 %v2338, 0.70710677
        %v2467 = vmul.f32 %v2339, 0.70710677
        %v2468 = vmul.f32 %v2340, 0.70710677
        %v2469 = vmul.f32 %v2341, 0.70710677
        %v2470 = vmul.f32 %v2342, 0.70710677
        %v2471 = vmul.f32 %v2343, 0.70710677
        %v2472 = vmul.f32 %v2344, 0.70710677
        %v2473 = vmul.f32 %v2345, 0.70710677
        %v2474 = vand.u32 2147483647, %v2410
        %v2475 = vand.u32 2147483647, %v2411
        %v2476 = vand.u32 2147483647, %v2412
        %v2477 = vand.u32 2147483647, %v2413
        %v2478 = vand.u32 2147483647, %v2414
        %v2479 = vand.u32 2147483647, %v2415
        %v2480 = vand.u32 2147483647, %v2416
        %v2481 = vand.u32 2147483647, %v2417
        %v2482 = vand.u32 2147483647, %v2418
        %v2483 = vand.u32 2147483647, %v2419
        %v2484 = vand.u32 2147483647, %v2420
        %v2485 = vand.u32 2147483647, %v2421
        %v2486 = vand.u32 2147483647, %v2422
        %v2487 = vand.u32 2147483647, %v2423
        %v2488 = vand.u32 2147483647, %v2424
        %v2489 = vand.u32 2147483647, %v2425
        %v2490 = vand.u32 2147483647, %v2426
        %v2491 = vand.u32 2147483647, %v2427
        %v2492 = vand.u32 2147483647, %v2428
        %v2493 = vand.u32 2147483647, %v2429
        %v2494 = vand.u32 2147483647, %v2430
        %v2495 = vand.u32 2147483647, %v2431
        %v2496 = vand.u32 2147483647, %v2432
        %v2497 = vand.u32 2147483647, %v2433
        %v2498 = vand.u32 2147483647, %v2434
        %v2499 = vand.u32 2147483647, %v2435
        %v2500 = vand.u32 2147483647, %v2436
        %v2501 = vand.u32 2147483647, %v2437
        %v2502 = vand.u32 2147483647, %v2438
        %v2503 = vand.u32 2147483647, %v2439
        %v2504 = vand.u32 2147483647, %v2440
        %v2505 = vand.u32 2147483647, %v2441
        %v2506 = vand.u32 2147483647, %v2442
        %v2507 = vand.u32 2147483647, %v2443
        %v2508 = vand.u32 2147483647, %v2444
        %v2509 = vand.u32 2147483647, %v2445
        %v2510 = vand.u32 2147483647, %v2446
        %v2511 = vand.u32 2147483647, %v2447
        %v2512 = vand.u32 2147483647, %v2448
        %v2513 = vand.u32 2147483647, %v2449
        %v2514 = vand.u32 2147483647, %v2450
        %v2515 = vand.u32 2147483647, %v2451
        %v2516 = vand.u32 2147483647, %v2452
        %v2517 = vand.u32 2147483647, %v2453
        %v2518 = vand.u32 2147483647, %v2454
        %v2519 = vand.u32 2147483647, %v2455
        %v2520 = vand.u32 2147483647, %v2456
        %v2521 = vand.u32 2147483647, %v2457
        %v2522 = vand.u32 2147483647, %v2458
        %v2523 = vand.u32 2147483647, %v2459
        %v2524 = vand.u32 2147483647, %v2460
        %v2525 = vand.u32 2147483647, %v2461
        %v2526 = vand.u32 2147483647, %v2462
        %v2527 = vand.u32 2147483647, %v2463
        %v2528 = vand.u32 2147483647, %v2464
        %v2529 = vand.u32 2147483647, %v2465
        %v2530 = vand.u32 2147483647, %v2466
        %v2531 = vand.u32 2147483647, %v2467
        %v2532 = vand.u32 2147483647, %v2468
        %v2533 = vand.u32 2147483647, %v2469
        %v2534 = vand.u32 2147483647, %v2470
        %v2535 = vand.u32 2147483647, %v2471
        %v2536 = vand.u32 2147483647, %v2472
        %v2537 = vand.u32 2147483647, %v2473
        %v2538 = vmul.f32 %v2474, 0.3275911
        %v2539 = vmul.f32 %v2475, 0.3275911
        %v2540 = vmul.f32 %v2476, 0.3275911
        %v2541 = vmul.f32 %v2477, 0.3275911
        %v2542 = vmul.f32 %v2478, 0.3275911
        %v2543 = vmul.f32 %v2479, 0.3275911
        %v2544 = vmul.f32 %v2480, 0.3275911
        %v2545 = vmul.f32 %v2481, 0.3275911
        %v2546 = vmul.f32 %v2482, 0.3275911
        %v2547 = vmul.f32 %v2483, 0.3275911
        %v2548 = vmul.f32 %v2484, 0.3275911
        %v2549 = vmul.f32 %v2485, 0.3275911
        %v2550 = vmul.f32 %v2486, 0.3275911
        %v2551 = vmul.f32 %v2487, 0.3275911
        %v2552 = vmul.f32 %v2488, 0.3275911
        %v2553 = vmul.f32 %v2489, 0.3275911
        %v2554 = vmul.f32 %v2490, 0.3275911
        %v2555 = vmul.f32 %v2491, 0.3275911
        %v2556 = vmul.f32 %v2492, 0.3275911
        %v2557 = vmul.f32 %v2493, 0.3275911
        %v2558 = vmul.f32 %v2494, 0.3275911
        %v2559 = vmul.f32 %v2495, 0.3275911
        %v2560 = vmul.f32 %v2496, 0.3275911
        %v2561 = vmul.f32 %v2497, 0.3275911
        %v2562 = vmul.f32 %v2498, 0.3275911
        %v2563 = vmul.f32 %v2499, 0.3275911
        %v2564 = vmul.f32 %v2500, 0.3275911
        %v2565 = vmul.f32 %v2501, 0.3275911
        %v2566 = vmul.f32 %v2502, 0.3275911
        %v2567 = vmul.f32 %v2503, 0.3275911
        %v2568 = vmul.f32 %v2504, 0.3275911
        %v2569 = vmul.f32 %v2505, 0.3275911
        %v2570 = vmul.f32 %v2506, 0.3275911
        %v2571 = vmul.f32 %v2507, 0.3275911
        %v2572 = vmul.f32 %v2508, 0.3275911
        %v2573 = vmul.f32 %v2509, 0.3275911
        %v2574 = vmul.f32 %v2510, 0.3275911
        %v2575 = vmul.f32 %v2511, 0.3275911
        %v2576 = vmul.f32 %v2512, 0.3275911
        %v2577 = vmul.f32 %v2513, 0.3275911
        %v2578 = vmul.f32 %v2514, 0.3275911
        %v2579 = vmul.f32 %v2515, 0.3275911
        %v2580 = vmul.f32 %v2516, 0.3275911
        %v2581 = vmul.f32 %v2517, 0.3275911
        %v2582 = vmul.f32 %v2518, 0.3275911
        %v2583 = vmul.f32 %v2519, 0.3275911
        %v2584 = vmul.f32 %v2520, 0.3275911
        %v2585 = vmul.f32 %v2521, 0.3275911
        %v2586 = vmul.f32 %v2522, 0.3275911
        %v2587 = vmul.f32 %v2523, 0.3275911
        %v2588 = vmul.f32 %v2524, 0.3275911
        %v2589 = vmul.f32 %v2525, 0.3275911
        %v2590 = vmul.f32 %v2526, 0.3275911
        %v2591 = vmul.f32 %v2527, 0.3275911
        %v2592 = vmul.f32 %v2528, 0.3275911
        %v2593 = vmul.f32 %v2529, 0.3275911
        %v2594 = vmul.f32 %v2530, 0.3275911
        %v2595 = vmul.f32 %v2531, 0.3275911
        %v2596 = vmul.f32 %v2532, 0.3275911
        %v2597 = vmul.f32 %v2533, 0.3275911
        %v2598 = vmul.f32 %v2534, 0.3275911
        %v2599 = vmul.f32 %v2535, 0.3275911
        %v2600 = vmul.f32 %v2536, 0.3275911
        %v2601 = vmul.f32 %v2537, 0.3275911
        %v2602 = vadd.f32 %v2538, 1.0
        %v2603 = vadd.f32 %v2539, 1.0
        %v2604 = vadd.f32 %v2540, 1.0
        %v2605 = vadd.f32 %v2541, 1.0
        %v2606 = vadd.f32 %v2542, 1.0
        %v2607 = vadd.f32 %v2543, 1.0
        %v2608 = vadd.f32 %v2544, 1.0
        %v2609 = vadd.f32 %v2545, 1.0
        %v2610 = vadd.f32 %v2546, 1.0
        %v2611 = vadd.f32 %v2547, 1.0
        %v2612 = vadd.f32 %v2548, 1.0
        %v2613 = vadd.f32 %v2549, 1.0
        %v2614 = vadd.f32 %v2550, 1.0
        %v2615 = vadd.f32 %v2551, 1.0
        %v2616 = vadd.f32 %v2552, 1.0
        %v2617 = vadd.f32 %v2553, 1.0
        %v2618 = vadd.f32 %v2554, 1.0
        %v2619 = vadd.f32 %v2555, 1.0
        %v2620 = vadd.f32 %v2556, 1.0
        %v2621 = vadd.f32 %v2557, 1.0
        %v2622 = vadd.f32 %v2558, 1.0
        %v2623 = vadd.f32 %v2559, 1.0
        %v2624 = vadd.f32 %v2560, 1.0
        %v2625 = vadd.f32 %v2561, 1.0
        %v2626 = vadd.f32 %v2562, 1.0
        %v2627 = vadd.f32 %v2563, 1.0
        %v2628 = vadd.f32 %v2564, 1.0
        %v2629 = vadd.f32 %v2565, 1.0
        %v2630 = vadd.f32 %v2566, 1.0
        %v2631 = vadd.f32 %v2567, 1.0
        %v2632 = vadd.f32 %v2568, 1.0
        %v2633 = vadd.f32 %v2569, 1.0
        %v2634 = vadd.f32 %v2570, 1.0
        %v2635 = vadd.f32 %v2571, 1.0
        %v2636 = vadd.f32 %v2572, 1.0
        %v2637 = vadd.f32 %v2573, 1.0
        %v2638 = vadd.f32 %v2574, 1.0
        %v2639 = vadd.f32 %v2575, 1.0
        %v2640 = vadd.f32 %v2576, 1.0
        %v2641 = vadd.f32 %v2577, 1.0
        %v2642 = vadd.f32 %v2578, 1.0
        %v2643 = vadd.f32 %v2579, 1.0
        %v2644 = vadd.f32 %v2580, 1.0
        %v2645 = vadd.f32 %v2581, 1.0
        %v2646 = vadd.f32 %v2582, 1.0
        %v2647 = vadd.f32 %v2583, 1.0
        %v2648 = vadd.f32 %v2584, 1.0
        %v2649 = vadd.f32 %v2585, 1.0
        %v2650 = vadd.f32 %v2586, 1.0
        %v2651 = vadd.f32 %v2587, 1.0
        %v2652 = vadd.f32 %v2588, 1.0
        %v2653 = vadd.f32 %v2589, 1.0
        %v2654 = vadd.f32 %v2590, 1.0
        %v2655 = vadd.f32 %v2591, 1.0
        %v2656 = vadd.f32 %v2592, 1.0
        %v2657 = vadd.f32 %v2593, 1.0
        %v2658 = vadd.f32 %v2594, 1.0
        %v2659 = vadd.f32 %v2595, 1.0
        %v2660 = vadd.f32 %v2596, 1.0
        %v2661 = vadd.f32 %v2597, 1.0
        %v2662 = vadd.f32 %v2598, 1.0
        %v2663 = vadd.f32 %v2599, 1.0
        %v2664 = vadd.f32 %v2600, 1.0
        %v2665 = vadd.f32 %v2601, 1.0
        %v2666 = vrcp.pop %v2602
        %v2667 = vrcp.pop %v2603
        %v2668 = vrcp.pop %v2604
        %v2669 = vrcp.pop %v2605
        %v2670 = vrcp.pop %v2606
        %v2671 = vrcp.pop %v2607
        %v2672 = vrcp.pop %v2608
        %v2673 = vrcp.pop %v2609
        %v2674 = vrcp.pop %v2610
        %v2675 = vrcp.pop %v2611
        %v2676 = vrcp.pop %v2612
        %v2677 = vrcp.pop %v2613
        %v2678 = vrcp.pop %v2614
        %v2679 = vrcp.pop %v2615
        %v2680 = vrcp.pop %v2616
        %v2681 = vrcp.pop %v2617
        %v2682 = vrcp.pop %v2618
        %v2683 = vrcp.pop %v2619
        %v2684 = vrcp.pop %v2620
        %v2685 = vrcp.pop %v2621
        %v2686 = vrcp.pop %v2622
        %v2687 = vrcp.pop %v2623
        %v2688 = vrcp.pop %v2624
        %v2689 = vrcp.pop %v2625
        %v2690 = vrcp.pop %v2626
        %v2691 = vrcp.pop %v2627
        %v2692 = vrcp.pop %v2628
        %v2693 = vrcp.pop %v2629
        %v2694 = vrcp.pop %v2630
        %v2695 = vrcp.pop %v2631
        %v2696 = vrcp.pop %v2632
        %v2697 = vrcp.pop %v2633
        %v2698 = vrcp.pop %v2634
        %v2699 = vrcp.pop %v2635
        %v2700 = vrcp.pop %v2636
        %v2701 = vrcp.pop %v2637
        %v2702 = vrcp.pop %v2638
        %v2703 = vrcp.pop %v2639
        %v2704 = vrcp.pop %v2640
        %v2705 = vrcp.pop %v2641
        %v2706 = vrcp.pop %v2642
        %v2707 = vrcp.pop %v2643
        %v2708 = vrcp.pop %v2644
        %v2709 = vrcp.pop %v2645
        %v2710 = vrcp.pop %v2646
        %v2711 = vrcp.pop %v2647
        %v2712 = vrcp.pop %v2648
        %v2713 = vrcp.pop %v2649
        %v2714 = vrcp.pop %v2650
        %v2715 = vrcp.pop %v2651
        %v2716 = vrcp.pop %v2652
        %v2717 = vrcp.pop %v2653
        %v2718 = vrcp.pop %v2654
        %v2719 = vrcp.pop %v2655
        %v2720 = vrcp.pop %v2656
        %v2721 = vrcp.pop %v2657
        %v2722 = vrcp.pop %v2658
        %v2723 = vrcp.pop %v2659
        %v2724 = vrcp.pop %v2660
        %v2725 = vrcp.pop %v2661
        %v2726 = vrcp.pop %v2662
        %v2727 = vrcp.pop %v2663
        %v2728 = vrcp.pop %v2664
        %v2729 = vrcp.pop %v2665
        %v2730 = vmul.f32 %v2666, 1.0614054
        %v2731 = vmul.f32 %v2667, 1.0614054
        %v2732 = vmul.f32 %v2668, 1.0614054
        %v2733 = vmul.f32 %v2669, 1.0614054
        %v2734 = vmul.f32 %v2670, 1.0614054
        %v2735 = vmul.f32 %v2671, 1.0614054
        %v2736 = vmul.f32 %v2672, 1.0614054
        %v2737 = vmul.f32 %v2673, 1.0614054
        %v2738 = vmul.f32 %v2674, 1.0614054
        %v2739 = vmul.f32 %v2675, 1.0614054
        %v2740 = vmul.f32 %v2676, 1.0614054
        %v2741 = vmul.f32 %v2677, 1.0614054
        %v2742 = vmul.f32 %v2678, 1.0614054
        %v2743 = vmul.f32 %v2679, 1.0614054
        %v2744 = vmul.f32 %v2680, 1.0614054
        %v2745 = vmul.f32 %v2681, 1.0614054
        %v2746 = vmul.f32 %v2682, 1.0614054
        %v2747 = vmul.f32 %v2683, 1.0614054
        %v2748 = vmul.f32 %v2684, 1.0614054
        %v2749 = vmul.f32 %v2685, 1.0614054
        %v2750 = vmul.f32 %v2686, 1.0614054
        %v2751 = vmul.f32 %v2687, 1.0614054
        %v2752 = vmul.f32 %v2688, 1.0614054
        %v2753 = vmul.f32 %v2689, 1.0614054
        %v2754 = vmul.f32 %v2690, 1.0614054
        %v2755 = vmul.f32 %v2691, 1.0614054
        %v2756 = vmul.f32 %v2692, 1.0614054
        %v2757 = vmul.f32 %v2693, 1.0614054
        %v2758 = vmul.f32 %v2694, 1.0614054
        %v2759 = vmul.f32 %v2695, 1.0614054
        %v2760 = vmul.f32 %v2696, 1.0614054
        %v2761 = vmul.f32 %v2697, 1.0614054
        %v2762 = vmul.f32 %v2698, 1.0614054
        %v2763 = vmul.f32 %v2699, 1.0614054
        %v2764 = vmul.f32 %v2700, 1.0614054
        %v2765 = vmul.f32 %v2701, 1.0614054
        %v2766 = vmul.f32 %v2702, 1.0614054
        %v2767 = vmul.f32 %v2703, 1.0614054
        %v2768 = vmul.f32 %v2704, 1.0614054
        %v2769 = vmul.f32 %v2705, 1.0614054
        %v2770 = vmul.f32 %v2706, 1.0614054
        %v2771 = vmul.f32 %v2707, 1.0614054
        %v2772 = vmul.f32 %v2708, 1.0614054
        %v2773 = vmul.f32 %v2709, 1.0614054
        %v2774 = vmul.f32 %v2710, 1.0614054
        %v2775 = vmul.f32 %v2711, 1.0614054
        %v2776 = vmul.f32 %v2712, 1.0614054
        %v2777 = vmul.f32 %v2713, 1.0614054
        %v2778 = vmul.f32 %v2714, 1.0614054
        %v2779 = vmul.f32 %v2715, 1.0614054
        %v2780 = vmul.f32 %v2716, 1.0614054
        %v2781 = vmul.f32 %v2717, 1.0614054
        %v2782 = vmul.f32 %v2718, 1.0614054
        %v2783 = vmul.f32 %v2719, 1.0614054
        %v2784 = vmul.f32 %v2720, 1.0614054
        %v2785 = vmul.f32 %v2721, 1.0614054
        %v2786 = vmul.f32 %v2722, 1.0614054
        %v2787 = vmul.f32 %v2723, 1.0614054
        %v2788 = vmul.f32 %v2724, 1.0614054
        %v2789 = vmul.f32 %v2725, 1.0614054
        %v2790 = vmul.f32 %v2726, 1.0614054
        %v2791 = vmul.f32 %v2727, 1.0614054
        %v2792 = vmul.f32 %v2728, 1.0614054
        %v2793 = vmul.f32 %v2729, 1.0614054
        %v2794 = vadd.f32 %v2730, -1.4531521
        %v2795 = vadd.f32 %v2731, -1.4531521
        %v2796 = vadd.f32 %v2732, -1.4531521
        %v2797 = vadd.f32 %v2733, -1.4531521
        %v2798 = vadd.f32 %v2734, -1.4531521
        %v2799 = vadd.f32 %v2735, -1.4531521
        %v2800 = vadd.f32 %v2736, -1.4531521
        %v2801 = vadd.f32 %v2737, -1.4531521
        %v2802 = vadd.f32 %v2738, -1.4531521
        %v2803 = vadd.f32 %v2739, -1.4531521
        %v2804 = vadd.f32 %v2740, -1.4531521
        %v2805 = vadd.f32 %v2741, -1.4531521
        %v2806 = vadd.f32 %v2742, -1.4531521
        %v2807 = vadd.f32 %v2743, -1.4531521
        %v2808 = vadd.f32 %v2744, -1.4531521
        %v2809 = vadd.f32 %v2745, -1.4531521
        %v2810 = vadd.f32 %v2746, -1.4531521
        %v2811 = vadd.f32 %v2747, -1.4531521
        %v2812 = vadd.f32 %v2748, -1.4531521
        %v2813 = vadd.f32 %v2749, -1.4531521
        %v2814 = vadd.f32 %v2750, -1.4531521
        %v2815 = vadd.f32 %v2751, -1.4531521
        %v2816 = vadd.f32 %v2752, -1.4531521
        %v2817 = vadd.f32 %v2753, -1.4531521
        %v2818 = vadd.f32 %v2754, -1.4531521
        %v2819 = vadd.f32 %v2755, -1.4531521
        %v2820 = vadd.f32 %v2756, -1.4531521
        %v2821 = vadd.f32 %v2757, -1.4531521
        %v2822 = vadd.f32 %v2758, -1.4531521
        %v2823 = vadd.f32 %v2759, -1.4531521
        %v2824 = vadd.f32 %v2760, -1.4531521
        %v2825 = vadd.f32 %v2761, -1.4531521
        %v2826 = vadd.f32 %v2762, -1.4531521
        %v2827 = vadd.f32 %v2763, -1.4531521
        %v2828 = vadd.f32 %v2764, -1.4531521
        %v2829 = vadd.f32 %v2765, -1.4531521
        %v2830 = vadd.f32 %v2766, -1.4531521
        %v2831 = vadd.f32 %v2767, -1.4531521
        %v2832 = vadd.f32 %v2768, -1.4531521
        %v2833 = vadd.f32 %v2769, -1.4531521
        %v2834 = vadd.f32 %v2770, -1.4531521
        %v2835 = vadd.f32 %v2771, -1.4531521
        %v2836 = vadd.f32 %v2772, -1.4531521
        %v2837 = vadd.f32 %v2773, -1.4531521
        %v2838 = vadd.f32 %v2774, -1.4531521
        %v2839 = vadd.f32 %v2775, -1.4531521
        %v2840 = vadd.f32 %v2776, -1.4531521
        %v2841 = vadd.f32 %v2777, -1.4531521
        %v2842 = vadd.f32 %v2778, -1.4531521
        %v2843 = vadd.f32 %v2779, -1.4531521
        %v2844 = vadd.f32 %v2780, -1.4531521
        %v2845 = vadd.f32 %v2781, -1.4531521
        %v2846 = vadd.f32 %v2782, -1.4531521
        %v2847 = vadd.f32 %v2783, -1.4531521
        %v2848 = vadd.f32 %v2784, -1.4531521
        %v2849 = vadd.f32 %v2785, -1.4531521
        %v2850 = vadd.f32 %v2786, -1.4531521
        %v2851 = vadd.f32 %v2787, -1.4531521
        %v2852 = vadd.f32 %v2788, -1.4531521
        %v2853 = vadd.f32 %v2789, -1.4531521
        %v2854 = vadd.f32 %v2790, -1.4531521
        %v2855 = vadd.f32 %v2791, -1.4531521
        %v2856 = vadd.f32 %v2792, -1.4531521
        %v2857 = vadd.f32 %v2793, -1.4531521
        %v2858 = vmul.f32 %v2794, %v2666
        %v2859 = vmul.f32 %v2795, %v2667
        %v2860 = vmul.f32 %v2796, %v2668
        %v2861 = vmul.f32 %v2797, %v2669
        %v2862 = vmul.f32 %v2798, %v2670
        %v2863 = vmul.f32 %v2799, %v2671
        %v2864 = vmul.f32 %v2800, %v2672
        %v2865 = vmul.f32 %v2801, %v2673
        %v2866 = vmul.f32 %v2802, %v2674
        %v2867 = vmul.f32 %v2803, %v2675
        %v2868 = vmul.f32 %v2804, %v2676
        %v2869 = vmul.f32 %v2805, %v2677
        %v2870 = vmul.f32 %v2806, %v2678
        %v2871 = vmul.f32 %v2807, %v2679
        %v2872 = vmul.f32 %v2808, %v2680
        %v2873 = vmul.f32 %v2809, %v2681
        %v2874 = vmul.f32 %v2810, %v2682
        %v2875 = vmul.f32 %v2811, %v2683
        %v2876 = vmul.f32 %v2812, %v2684
        %v2877 = vmul.f32 %v2813, %v2685
        %v2878 = vmul.f32 %v2814, %v2686
        %v2879 = vmul.f32 %v2815, %v2687
        %v2880 = vmul.f32 %v2816, %v2688
        %v2881 = vmul.f32 %v2817, %v2689
        %v2882 = vmul.f32 %v2818, %v2690
        %v2883 = vmul.f32 %v2819, %v2691
        %v2884 = vmul.f32 %v2820, %v2692
        %v2885 = vmul.f32 %v2821, %v2693
        %v2886 = vmul.f32 %v2822, %v2694
        %v2887 = vmul.f32 %v2823, %v2695
        %v2888 = vmul.f32 %v2824, %v2696
        %v2889 = vmul.f32 %v2825, %v2697
        %v2890 = vmul.f32 %v2826, %v2698
        %v2891 = vmul.f32 %v2827, %v2699
        %v2892 = vmul.f32 %v2828, %v2700
        %v2893 = vmul.f32 %v2829, %v2701
        %v2894 = vmul.f32 %v2830, %v2702
        %v2895 = vmul.f32 %v2831, %v2703
        %v2896 = vmul.f32 %v2832, %v2704
        %v2897 = vmul.f32 %v2833, %v2705
        %v2898 = vmul.f32 %v2834, %v2706
        %v2899 = vmul.f32 %v2835, %v2707
        %v2900 = vmul.f32 %v2836, %v2708
        %v2901 = vmul.f32 %v2837, %v2709
        %v2902 = vmul.f32 %v2838, %v2710
        %v2903 = vmul.f32 %v2839, %v2711
        %v2904 = vmul.f32 %v2840, %v2712
        %v2905 = vmul.f32 %v2841, %v2713
        %v2906 = vmul.f32 %v2842, %v2714
        %v2907 = vmul.f32 %v2843, %v2715
        %v2908 = vmul.f32 %v2844, %v2716
        %v2909 = vmul.f32 %v2845, %v2717
        %v2910 = vmul.f32 %v2846, %v2718
        %v2911 = vmul.f32 %v2847, %v2719
        %v2912 = vmul.f32 %v2848, %v2720
        %v2913 = vmul.f32 %v2849, %v2721
        %v2914 = vmul.f32 %v2850, %v2722
        %v2915 = vmul.f32 %v2851, %v2723
        %v2916 = vmul.f32 %v2852, %v2724
        %v2917 = vmul.f32 %v2853, %v2725
        %v2918 = vmul.f32 %v2854, %v2726
        %v2919 = vmul.f32 %v2855, %v2727
        %v2920 = vmul.f32 %v2856, %v2728
        %v2921 = vmul.f32 %v2857, %v2729
        %v2922 = vadd.f32 %v2858, 1.4214138
        %v2923 = vadd.f32 %v2859, 1.4214138
        %v2924 = vadd.f32 %v2860, 1.4214138
        %v2925 = vadd.f32 %v2861, 1.4214138
        %v2926 = vadd.f32 %v2862, 1.4214138
        %v2927 = vadd.f32 %v2863, 1.4214138
        %v2928 = vadd.f32 %v2864, 1.4214138
        %v2929 = vadd.f32 %v2865, 1.4214138
        %v2930 = vadd.f32 %v2866, 1.4214138
        %v2931 = vadd.f32 %v2867, 1.4214138
        %v2932 = vadd.f32 %v2868, 1.4214138
        %v2933 = vadd.f32 %v2869, 1.4214138
        %v2934 = vadd.f32 %v2870, 1.4214138
        %v2935 = vadd.f32 %v2871, 1.4214138
        %v2936 = vadd.f32 %v2872, 1.4214138
        %v2937 = vadd.f32 %v2873, 1.4214138
        %v2938 = vadd.f32 %v2874, 1.4214138
        %v2939 = vadd.f32 %v2875, 1.4214138
        %v2940 = vadd.f32 %v2876, 1.4214138
        %v2941 = vadd.f32 %v2877, 1.4214138
        %v2942 = vadd.f32 %v2878, 1.4214138
        %v2943 = vadd.f32 %v2879, 1.4214138
        %v2944 = vadd.f32 %v2880, 1.4214138
        %v2945 = vadd.f32 %v2881, 1.4214138
        %v2946 = vadd.f32 %v2882, 1.4214138
        %v2947 = vadd.f32 %v2883, 1.4214138
        %v2948 = vadd.f32 %v2884, 1.4214138
        %v2949 = vadd.f32 %v2885, 1.4214138
        %v2950 = vadd.f32 %v2886, 1.4214138
        %v2951 = vadd.f32 %v2887, 1.4214138
        %v2952 = vadd.f32 %v2888, 1.4214138
        %v2953 = vadd.f32 %v2889, 1.4214138
        %v2954 = vadd.f32 %v2890, 1.4214138
        %v2955 = vadd.f32 %v2891, 1.4214138
        %v2956 = vadd.f32 %v2892, 1.4214138
        %v2957 = vadd.f32 %v2893, 1.4214138
        %v2958 = vadd.f32 %v2894, 1.4214138
        %v2959 = vadd.f32 %v2895, 1.4214138
        %v2960 = vadd.f32 %v2896, 1.4214138
        %v2961 = vadd.f32 %v2897, 1.4214138
        %v2962 = vadd.f32 %v2898, 1.4214138
        %v2963 = vadd.f32 %v2899, 1.4214138
        %v2964 = vadd.f32 %v2900, 1.4214138
        %v2965 = vadd.f32 %v2901, 1.4214138
        %v2966 = vadd.f32 %v2902, 1.4214138
        %v2967 = vadd.f32 %v2903, 1.4214138
        %v2968 = vadd.f32 %v2904, 1.4214138
        %v2969 = vadd.f32 %v2905, 1.4214138
        %v2970 = vadd.f32 %v2906, 1.4214138
        %v2971 = vadd.f32 %v2907, 1.4214138
        %v2972 = vadd.f32 %v2908, 1.4214138
        %v2973 = vadd.f32 %v2909, 1.4214138
        %v2974 = vadd.f32 %v2910, 1.4214138
        %v2975 = vadd.f32 %v2911, 1.4214138
        %v2976 = vadd.f32 %v2912, 1.4214138
        %v2977 = vadd.f32 %v2913, 1.4214138
        %v2978 = vadd.f32 %v2914, 1.4214138
        %v2979 = vadd.f32 %v2915, 1.4214138
        %v2980 = vadd.f32 %v2916, 1.4214138
        %v2981 = vadd.f32 %v2917, 1.4214138
        %v2982 = vadd.f32 %v2918, 1.4214138
        %v2983 = vadd.f32 %v2919, 1.4214138
        %v2984 = vadd.f32 %v2920, 1.4214138
        %v2985 = vadd.f32 %v2921, 1.4214138
        %v2986 = vmul.f32 %v2922, %v2666
        %v2987 = vmul.f32 %v2923, %v2667
        %v2988 = vmul.f32 %v2924, %v2668
        %v2989 = vmul.f32 %v2925, %v2669
        %v2990 = vmul.f32 %v2926, %v2670
        %v2991 = vmul.f32 %v2927, %v2671
        %v2992 = vmul.f32 %v2928, %v2672
        %v2993 = vmul.f32 %v2929, %v2673
        %v2994 = vmul.f32 %v2930, %v2674
        %v2995 = vmul.f32 %v2931, %v2675
        %v2996 = vmul.f32 %v2932, %v2676
        %v2997 = vmul.f32 %v2933, %v2677
        %v2998 = vmul.f32 %v2934, %v2678
        %v2999 = vmul.f32 %v2935, %v2679
        %v3000 = vmul.f32 %v2936, %v2680
        %v3001 = vmul.f32 %v2937, %v2681
        %v3002 = vmul.f32 %v2938, %v2682
        %v3003 = vmul.f32 %v2939, %v2683
        %v3004 = vmul.f32 %v2940, %v2684
        %v3005 = vmul.f32 %v2941, %v2685
        %v3006 = vmul.f32 %v2942, %v2686
        %v3007 = vmul.f32 %v2943, %v2687
        %v3008 = vmul.f32 %v2944, %v2688
        %v3009 = vmul.f32 %v2945, %v2689
        %v3010 = vmul.f32 %v2946, %v2690
        %v3011 = vmul.f32 %v2947, %v2691
        %v3012 = vmul.f32 %v2948, %v2692
        %v3013 = vmul.f32 %v2949, %v2693
        %v3014 = vmul.f32 %v2950, %v2694
        %v3015 = vmul.f32 %v2951, %v2695
        %v3016 = vmul.f32 %v2952, %v2696
        %v3017 = vmul.f32 %v2953, %v2697
        %v3018 = vmul.f32 %v2954, %v2698
        %v3019 = vmul.f32 %v2955, %v2699
        %v3020 = vmul.f32 %v2956, %v2700
        %v3021 = vmul.f32 %v2957, %v2701
        %v3022 = vmul.f32 %v2958, %v2702
        %v3023 = vmul.f32 %v2959, %v2703
        %v3024 = vmul.f32 %v2960, %v2704
        %v3025 = vmul.f32 %v2961, %v2705
        %v3026 = vmul.f32 %v2962, %v2706
        %v3027 = vmul.f32 %v2963, %v2707
        %v3028 = vmul.f32 %v2964, %v2708
        %v3029 = vmul.f32 %v2965, %v2709
        %v3030 = vmul.f32 %v2966, %v2710
        %v3031 = vmul.f32 %v2967, %v2711
        %v3032 = vmul.f32 %v2968, %v2712
        %v3033 = vmul.f32 %v2969, %v2713
        %v3034 = vmul.f32 %v2970, %v2714
        %v3035 = vmul.f32 %v2971, %v2715
        %v3036 = vmul.f32 %v2972, %v2716
        %v3037 = vmul.f32 %v2973, %v2717
        %v3038 = vmul.f32 %v2974, %v2718
        %v3039 = vmul.f32 %v2975, %v2719
        %v3040 = vmul.f32 %v2976, %v2720
        %v3041 = vmul.f32 %v2977, %v2721
        %v3042 = vmul.f32 %v2978, %v2722
        %v3043 = vmul.f32 %v2979, %v2723
        %v3044 = vmul.f32 %v2980, %v2724
        %v3045 = vmul.f32 %v2981, %v2725
        %v3046 = vmul.f32 %v2982, %v2726
        %v3047 = vmul.f32 %v2983, %v2727
        %v3048 = vmul.f32 %v2984, %v2728
        %v3049 = vmul.f32 %v2985, %v2729
        %v3050 = vadd.f32 %v2986, -0.28449672
        %v3051 = vadd.f32 %v2987, -0.28449672
        %v3052 = vadd.f32 %v2988, -0.28449672
        %v3053 = vadd.f32 %v2989, -0.28449672
        %v3054 = vadd.f32 %v2990, -0.28449672
        %v3055 = vadd.f32 %v2991, -0.28449672
        %v3056 = vadd.f32 %v2992, -0.28449672
        %v3057 = vadd.f32 %v2993, -0.28449672
        %v3058 = vadd.f32 %v2994, -0.28449672
        %v3059 = vadd.f32 %v2995, -0.28449672
        %v3060 = vadd.f32 %v2996, -0.28449672
        %v3061 = vadd.f32 %v2997, -0.28449672
        %v3062 = vadd.f32 %v2998, -0.28449672
        %v3063 = vadd.f32 %v2999, -0.28449672
        %v3064 = vadd.f32 %v3000, -0.28449672
        %v3065 = vadd.f32 %v3001, -0.28449672
        %v3066 = vadd.f32 %v3002, -0.28449672
        %v3067 = vadd.f32 %v3003, -0.28449672
        %v3068 = vadd.f32 %v3004, -0.28449672
        %v3069 = vadd.f32 %v3005, -0.28449672
        %v3070 = vadd.f32 %v3006, -0.28449672
        %v3071 = vadd.f32 %v3007, -0.28449672
        %v3072 = vadd.f32 %v3008, -0.28449672
        %v3073 = vadd.f32 %v3009, -0.28449672
        %v3074 = vadd.f32 %v3010, -0.28449672
        %v3075 = vadd.f32 %v3011, -0.28449672
        %v3076 = vadd.f32 %v3012, -0.28449672
        %v3077 = vadd.f32 %v3013, -0.28449672
        %v3078 = vadd.f32 %v3014, -0.28449672
        %v3079 = vadd.f32 %v3015, -0.28449672
        %v3080 = vadd.f32 %v3016, -0.28449672
        %v3081 = vadd.f32 %v3017, -0.28449672
        %v3082 = vadd.f32 %v3018, -0.28449672
        %v3083 = vadd.f32 %v3019, -0.28449672
        %v3084 = vadd.f32 %v3020, -0.28449672
        %v3085 = vadd.f32 %v3021, -0.28449672
        %v3086 = vadd.f32 %v3022, -0.28449672
        %v3087 = vadd.f32 %v3023, -0.28449672
        %v3088 = vadd.f32 %v3024, -0.28449672
        %v3089 = vadd.f32 %v3025, -0.28449672
        %v3090 = vadd.f32 %v3026, -0.28449672
        %v3091 = vadd.f32 %v3027, -0.28449672
        %v3092 = vadd.f32 %v3028, -0.28449672
        %v3093 = vadd.f32 %v3029, -0.28449672
        %v3094 = vadd.f32 %v3030, -0.28449672
        %v3095 = vadd.f32 %v3031, -0.28449672
        %v3096 = vadd.f32 %v3032, -0.28449672
        %v3097 = vadd.f32 %v3033, -0.28449672
        %v3098 = vadd.f32 %v3034, -0.28449672
        %v3099 = vadd.f32 %v3035, -0.28449672
        %v3100 = vadd.f32 %v3036, -0.28449672
        %v3101 = vadd.f32 %v3037, -0.28449672
        %v3102 = vadd.f32 %v3038, -0.28449672
        %v3103 = vadd.f32 %v3039, -0.28449672
        %v3104 = vadd.f32 %v3040, -0.28449672
        %v3105 = vadd.f32 %v3041, -0.28449672
        %v3106 = vadd.f32 %v3042, -0.28449672
        %v3107 = vadd.f32 %v3043, -0.28449672
        %v3108 = vadd.f32 %v3044, -0.28449672
        %v3109 = vadd.f32 %v3045, -0.28449672
        %v3110 = vadd.f32 %v3046, -0.28449672
        %v3111 = vadd.f32 %v3047, -0.28449672
        %v3112 = vadd.f32 %v3048, -0.28449672
        %v3113 = vadd.f32 %v3049, -0.28449672
        %v3114 = vmul.f32 %v3050, %v2666
        %v3115 = vmul.f32 %v3051, %v2667
        %v3116 = vmul.f32 %v3052, %v2668
        %v3117 = vmul.f32 %v3053, %v2669
        %v3118 = vmul.f32 %v3054, %v2670
        %v3119 = vmul.f32 %v3055, %v2671
        %v3120 = vmul.f32 %v3056, %v2672
        %v3121 = vmul.f32 %v3057, %v2673
        %v3122 = vmul.f32 %v3058, %v2674
        %v3123 = vmul.f32 %v3059, %v2675
        %v3124 = vmul.f32 %v3060, %v2676
        %v3125 = vmul.f32 %v3061, %v2677
        %v3126 = vmul.f32 %v3062, %v2678
        %v3127 = vmul.f32 %v3063, %v2679
        %v3128 = vmul.f32 %v3064, %v2680
        %v3129 = vmul.f32 %v3065, %v2681
        %v3130 = vmul.f32 %v3066, %v2682
        %v3131 = vmul.f32 %v3067, %v2683
        %v3132 = vmul.f32 %v3068, %v2684
        %v3133 = vmul.f32 %v3069, %v2685
        %v3134 = vmul.f32 %v3070, %v2686
        %v3135 = vmul.f32 %v3071, %v2687
        %v3136 = vmul.f32 %v3072, %v2688
        %v3137 = vmul.f32 %v3073, %v2689
        %v3138 = vmul.f32 %v3074, %v2690
        %v3139 = vmul.f32 %v3075, %v2691
        %v3140 = vmul.f32 %v3076, %v2692
        %v3141 = vmul.f32 %v3077, %v2693
        %v3142 = vmul.f32 %v3078, %v2694
        %v3143 = vmul.f32 %v3079, %v2695
        %v3144 = vmul.f32 %v3080, %v2696
        %v3145 = vmul.f32 %v3081, %v2697
        %v3146 = vmul.f32 %v3082, %v2698
        %v3147 = vmul.f32 %v3083, %v2699
        %v3148 = vmul.f32 %v3084, %v2700
        %v3149 = vmul.f32 %v3085, %v2701
        %v3150 = vmul.f32 %v3086, %v2702
        %v3151 = vmul.f32 %v3087, %v2703
        %v3152 = vmul.f32 %v3088, %v2704
        %v3153 = vmul.f32 %v3089, %v2705
        %v3154 = vmul.f32 %v3090, %v2706
        %v3155 = vmul.f32 %v3091, %v2707
        %v3156 = vmul.f32 %v3092, %v2708
        %v3157 = vmul.f32 %v3093, %v2709
        %v3158 = vmul.f32 %v3094, %v2710
        %v3159 = vmul.f32 %v3095, %v2711
        %v3160 = vmul.f32 %v3096, %v2712
        %v3161 = vmul.f32 %v3097, %v2713
        %v3162 = vmul.f32 %v3098, %v2714
        %v3163 = vmul.f32 %v3099, %v2715
        %v3164 = vmul.f32 %v3100, %v2716
        %v3165 = vmul.f32 %v3101, %v2717
        %v3166 = vmul.f32 %v3102, %v2718
        %v3167 = vmul.f32 %v3103, %v2719
        %v3168 = vmul.f32 %v3104, %v2720
        %v3169 = vmul.f32 %v3105, %v2721
        %v3170 = vmul.f32 %v3106, %v2722
        %v3171 = vmul.f32 %v3107, %v2723
        %v3172 = vmul.f32 %v3108, %v2724
        %v3173 = vmul.f32 %v3109, %v2725
        %v3174 = vmul.f32 %v3110, %v2726
        %v3175 = vmul.f32 %v3111, %v2727
        %v3176 = vmul.f32 %v3112, %v2728
        %v3177 = vmul.f32 %v3113, %v2729
        %v3178 = vadd.f32 %v3114, 0.2548296
        %v3179 = vadd.f32 %v3115, 0.2548296
        %v3180 = vadd.f32 %v3116, 0.2548296
        %v3181 = vadd.f32 %v3117, 0.2548296
        %v3182 = vadd.f32 %v3118, 0.2548296
        %v3183 = vadd.f32 %v3119, 0.2548296
        %v3184 = vadd.f32 %v3120, 0.2548296
        %v3185 = vadd.f32 %v3121, 0.2548296
        %v3186 = vadd.f32 %v3122, 0.2548296
        %v3187 = vadd.f32 %v3123, 0.2548296
        %v3188 = vadd.f32 %v3124, 0.2548296
        %v3189 = vadd.f32 %v3125, 0.2548296
        %v3190 = vadd.f32 %v3126, 0.2548296
        %v3191 = vadd.f32 %v3127, 0.2548296
        %v3192 = vadd.f32 %v3128, 0.2548296
        %v3193 = vadd.f32 %v3129, 0.2548296
        %v3194 = vadd.f32 %v3130, 0.2548296
        %v3195 = vadd.f32 %v3131, 0.2548296
        %v3196 = vadd.f32 %v3132, 0.2548296
        %v3197 = vadd.f32 %v3133, 0.2548296
        %v3198 = vadd.f32 %v3134, 0.2548296
        %v3199 = vadd.f32 %v3135, 0.2548296
        %v3200 = vadd.f32 %v3136, 0.2548296
        %v3201 = vadd.f32 %v3137, 0.2548296
        %v3202 = vadd.f32 %v3138, 0.2548296
        %v3203 = vadd.f32 %v3139, 0.2548296
        %v3204 = vadd.f32 %v3140, 0.2548296
        %v3205 = vadd.f32 %v3141, 0.2548296
        %v3206 = vadd.f32 %v3142, 0.2548296
        %v3207 = vadd.f32 %v3143, 0.2548296
        %v3208 = vadd.f32 %v3144, 0.2548296
        %v3209 = vadd.f32 %v3145, 0.2548296
        %v3210 = vadd.f32 %v3146, 0.2548296
        %v3211 = vadd.f32 %v3147, 0.2548296
        %v3212 = vadd.f32 %v3148, 0.2548296
        %v3213 = vadd.f32 %v3149, 0.2548296
        %v3214 = vadd.f32 %v3150, 0.2548296
        %v3215 = vadd.f32 %v3151, 0.2548296
        %v3216 = vadd.f32 %v3152, 0.2548296
        %v3217 = vadd.f32 %v3153, 0.2548296
        %v3218 = vadd.f32 %v3154, 0.2548296
        %v3219 = vadd.f32 %v3155, 0.2548296
        %v3220 = vadd.f32 %v3156, 0.2548296
        %v3221 = vadd.f32 %v3157, 0.2548296
        %v3222 = vadd.f32 %v3158, 0.2548296
        %v3223 = vadd.f32 %v3159, 0.2548296
        %v3224 = vadd.f32 %v3160, 0.2548296
        %v3225 = vadd.f32 %v3161, 0.2548296
        %v3226 = vadd.f32 %v3162, 0.2548296
        %v3227 = vadd.f32 %v3163, 0.2548296
        %v3228 = vadd.f32 %v3164, 0.2548296
        %v3229 = vadd.f32 %v3165, 0.2548296
        %v3230 = vadd.f32 %v3166, 0.2548296
        %v3231 = vadd.f32 %v3167, 0.2548296
        %v3232 = vadd.f32 %v3168, 0.2548296
        %v3233 = vadd.f32 %v3169, 0.2548296
        %v3234 = vadd.f32 %v3170, 0.2548296
        %v3235 = vadd.f32 %v3171, 0.2548296
        %v3236 = vadd.f32 %v3172, 0.2548296
        %v3237 = vadd.f32 %v3173, 0.2548296
        %v3238 = vadd.f32 %v3174, 0.2548296
        %v3239 = vadd.f32 %v3175, 0.2548296
        %v3240 = vadd.f32 %v3176, 0.2548296
        %v3241 = vadd.f32 %v3177, 0.2548296
        %v3242 = vmul.f32 %v3178, %v2666
        %v3243 = vmul.f32 %v3179, %v2667
        %v3244 = vmul.f32 %v3180, %v2668
        %v3245 = vmul.f32 %v3181, %v2669
        %v3246 = vmul.f32 %v3182, %v2670
        %v3247 = vmul.f32 %v3183, %v2671
        %v3248 = vmul.f32 %v3184, %v2672
        %v3249 = vmul.f32 %v3185, %v2673
        %v3250 = vmul.f32 %v3186, %v2674
        %v3251 = vmul.f32 %v3187, %v2675
        %v3252 = vmul.f32 %v3188, %v2676
        %v3253 = vmul.f32 %v3189, %v2677
        %v3254 = vmul.f32 %v3190, %v2678
        %v3255 = vmul.f32 %v3191, %v2679
        %v3256 = vmul.f32 %v3192, %v2680
        %v3257 = vmul.f32 %v3193, %v2681
        %v3258 = vmul.f32 %v3194, %v2682
        %v3259 = vmul.f32 %v3195, %v2683
        %v3260 = vmul.f32 %v3196, %v2684
        %v3261 = vmul.f32 %v3197, %v2685
        %v3262 = vmul.f32 %v3198, %v2686
        %v3263 = vmul.f32 %v3199, %v2687
        %v3264 = vmul.f32 %v3200, %v2688
        %v3265 = vmul.f32 %v3201, %v2689
        %v3266 = vmul.f32 %v3202, %v2690
        %v3267 = vmul.f32 %v3203, %v2691
        %v3268 = vmul.f32 %v3204, %v2692
        %v3269 = vmul.f32 %v3205, %v2693
        %v3270 = vmul.f32 %v3206, %v2694
        %v3271 = vmul.f32 %v3207, %v2695
        %v3272 = vmul.f32 %v3208, %v2696
        %v3273 = vmul.f32 %v3209, %v2697
        %v3274 = vmul.f32 %v3210, %v2698
        %v3275 = vmul.f32 %v3211, %v2699
        %v3276 = vmul.f32 %v3212, %v2700
        %v3277 = vmul.f32 %v3213, %v2701
        %v3278 = vmul.f32 %v3214, %v2702
        %v3279 = vmul.f32 %v3215, %v2703
        %v3280 = vmul.f32 %v3216, %v2704
        %v3281 = vmul.f32 %v3217, %v2705
        %v3282 = vmul.f32 %v3218, %v2706
        %v3283 = vmul.f32 %v3219, %v2707
        %v3284 = vmul.f32 %v3220, %v2708
        %v3285 = vmul.f32 %v3221, %v2709
        %v3286 = vmul.f32 %v3222, %v2710
        %v3287 = vmul.f32 %v3223, %v2711
        %v3288 = vmul.f32 %v3224, %v2712
        %v3289 = vmul.f32 %v3225, %v2713
        %v3290 = vmul.f32 %v3226, %v2714
        %v3291 = vmul.f32 %v3227, %v2715
        %v3292 = vmul.f32 %v3228, %v2716
        %v3293 = vmul.f32 %v3229, %v2717
        %v3294 = vmul.f32 %v3230, %v2718
        %v3295 = vmul.f32 %v3231, %v2719
        %v3296 = vmul.f32 %v3232, %v2720
        %v3297 = vmul.f32 %v3233, %v2721
        %v3298 = vmul.f32 %v3234, %v2722
        %v3299 = vmul.f32 %v3235, %v2723
        %v3300 = vmul.f32 %v3236, %v2724
        %v3301 = vmul.f32 %v3237, %v2725
        %v3302 = vmul.f32 %v3238, %v2726
        %v3303 = vmul.f32 %v3239, %v2727
        %v3304 = vmul.f32 %v3240, %v2728
        %v3305 = vmul.f32 %v3241, %v2729
        %v3306 = vsub.f32 0.0, %v2474
        %v3307 = vsub.f32 0.0, %v2475
        %v3308 = vsub.f32 0.0, %v2476
        %v3309 = vsub.f32 0.0, %v2477
        %v3310 = vsub.f32 0.0, %v2478
        %v3311 = vsub.f32 0.0, %v2479
        %v3312 = vsub.f32 0.0, %v2480
        %v3313 = vsub.f32 0.0, %v2481
        %v3314 = vsub.f32 0.0, %v2482
        %v3315 = vsub.f32 0.0, %v2483
        %v3316 = vsub.f32 0.0, %v2484
        %v3317 = vsub.f32 0.0, %v2485
        %v3318 = vsub.f32 0.0, %v2486
        %v3319 = vsub.f32 0.0, %v2487
        %v3320 = vsub.f32 0.0, %v2488
        %v3321 = vsub.f32 0.0, %v2489
        %v3322 = vsub.f32 0.0, %v2490
        %v3323 = vsub.f32 0.0, %v2491
        %v3324 = vsub.f32 0.0, %v2492
        %v3325 = vsub.f32 0.0, %v2493
        %v3326 = vsub.f32 0.0, %v2494
        %v3327 = vsub.f32 0.0, %v2495
        %v3328 = vsub.f32 0.0, %v2496
        %v3329 = vsub.f32 0.0, %v2497
        %v3330 = vsub.f32 0.0, %v2498
        %v3331 = vsub.f32 0.0, %v2499
        %v3332 = vsub.f32 0.0, %v2500
        %v3333 = vsub.f32 0.0, %v2501
        %v3334 = vsub.f32 0.0, %v2502
        %v3335 = vsub.f32 0.0, %v2503
        %v3336 = vsub.f32 0.0, %v2504
        %v3337 = vsub.f32 0.0, %v2505
        %v3338 = vsub.f32 0.0, %v2506
        %v3339 = vsub.f32 0.0, %v2507
        %v3340 = vsub.f32 0.0, %v2508
        %v3341 = vsub.f32 0.0, %v2509
        %v3342 = vsub.f32 0.0, %v2510
        %v3343 = vsub.f32 0.0, %v2511
        %v3344 = vsub.f32 0.0, %v2512
        %v3345 = vsub.f32 0.0, %v2513
        %v3346 = vsub.f32 0.0, %v2514
        %v3347 = vsub.f32 0.0, %v2515
        %v3348 = vsub.f32 0.0, %v2516
        %v3349 = vsub.f32 0.0, %v2517
        %v3350 = vsub.f32 0.0, %v2518
        %v3351 = vsub.f32 0.0, %v2519
        %v3352 = vsub.f32 0.0, %v2520
        %v3353 = vsub.f32 0.0, %v2521
        %v3354 = vsub.f32 0.0, %v2522
        %v3355 = vsub.f32 0.0, %v2523
        %v3356 = vsub.f32 0.0, %v2524
        %v3357 = vsub.f32 0.0, %v2525
        %v3358 = vsub.f32 0.0, %v2526
        %v3359 = vsub.f32 0.0, %v2527
        %v3360 = vsub.f32 0.0, %v2528
        %v3361 = vsub.f32 0.0, %v2529
        %v3362 = vsub.f32 0.0, %v2530
        %v3363 = vsub.f32 0.0, %v2531
        %v3364 = vsub.f32 0.0, %v2532
        %v3365 = vsub.f32 0.0, %v2533
        %v3366 = vsub.f32 0.0, %v2534
        %v3367 = vsub.f32 0.0, %v2535
        %v3368 = vsub.f32 0.0, %v2536
        %v3369 = vsub.f32 0.0, %v2537
        %v3370 = vmul.f32 %v3306, %v2474
        %v3371 = vmul.f32 %v3307, %v2475
        %v3372 = vmul.f32 %v3308, %v2476
        %v3373 = vmul.f32 %v3309, %v2477
        %v3374 = vmul.f32 %v3310, %v2478
        %v3375 = vmul.f32 %v3311, %v2479
        %v3376 = vmul.f32 %v3312, %v2480
        %v3377 = vmul.f32 %v3313, %v2481
        %v3378 = vmul.f32 %v3314, %v2482
        %v3379 = vmul.f32 %v3315, %v2483
        %v3380 = vmul.f32 %v3316, %v2484
        %v3381 = vmul.f32 %v3317, %v2485
        %v3382 = vmul.f32 %v3318, %v2486
        %v3383 = vmul.f32 %v3319, %v2487
        %v3384 = vmul.f32 %v3320, %v2488
        %v3385 = vmul.f32 %v3321, %v2489
        %v3386 = vmul.f32 %v3322, %v2490
        %v3387 = vmul.f32 %v3323, %v2491
        %v3388 = vmul.f32 %v3324, %v2492
        %v3389 = vmul.f32 %v3325, %v2493
        %v3390 = vmul.f32 %v3326, %v2494
        %v3391 = vmul.f32 %v3327, %v2495
        %v3392 = vmul.f32 %v3328, %v2496
        %v3393 = vmul.f32 %v3329, %v2497
        %v3394 = vmul.f32 %v3330, %v2498
        %v3395 = vmul.f32 %v3331, %v2499
        %v3396 = vmul.f32 %v3332, %v2500
        %v3397 = vmul.f32 %v3333, %v2501
        %v3398 = vmul.f32 %v3334, %v2502
        %v3399 = vmul.f32 %v3335, %v2503
        %v3400 = vmul.f32 %v3336, %v2504
        %v3401 = vmul.f32 %v3337, %v2505
        %v3402 = vmul.f32 %v3338, %v2506
        %v3403 = vmul.f32 %v3339, %v2507
        %v3404 = vmul.f32 %v3340, %v2508
        %v3405 = vmul.f32 %v3341, %v2509
        %v3406 = vmul.f32 %v3342, %v2510
        %v3407 = vmul.f32 %v3343, %v2511
        %v3408 = vmul.f32 %v3344, %v2512
        %v3409 = vmul.f32 %v3345, %v2513
        %v3410 = vmul.f32 %v3346, %v2514
        %v3411 = vmul.f32 %v3347, %v2515
        %v3412 = vmul.f32 %v3348, %v2516
        %v3413 = vmul.f32 %v3349, %v2517
        %v3414 = vmul.f32 %v3350, %v2518
        %v3415 = vmul.f32 %v3351, %v2519
        %v3416 = vmul.f32 %v3352, %v2520
        %v3417 = vmul.f32 %v3353, %v2521
        %v3418 = vmul.f32 %v3354, %v2522
        %v3419 = vmul.f32 %v3355, %v2523
        %v3420 = vmul.f32 %v3356, %v2524
        %v3421 = vmul.f32 %v3357, %v2525
        %v3422 = vmul.f32 %v3358, %v2526
        %v3423 = vmul.f32 %v3359, %v2527
        %v3424 = vmul.f32 %v3360, %v2528
        %v3425 = vmul.f32 %v3361, %v2529
        %v3426 = vmul.f32 %v3362, %v2530
        %v3427 = vmul.f32 %v3363, %v2531
        %v3428 = vmul.f32 %v3364, %v2532
        %v3429 = vmul.f32 %v3365, %v2533
        %v3430 = vmul.f32 %v3366, %v2534
        %v3431 = vmul.f32 %v3367, %v2535
        %v3432 = vmul.f32 %v3368, %v2536
        %v3433 = vmul.f32 %v3369, %v2537
        %v3434 = vmul.f32 %v3370, 1.442695
        %v3435 = vpow.pop %v3434
        %v3436 = vmul.f32 %v3371, 1.442695
        %v3437 = vpow.pop %v3436
        %v3438 = vmul.f32 %v3372, 1.442695
        %v3439 = vpow.pop %v3438
        %v3440 = vmul.f32 %v3373, 1.442695
        %v3441 = vpow.pop %v3440
        %v3442 = vmul.f32 %v3374, 1.442695
        %v3443 = vpow.pop %v3442
        %v3444 = vmul.f32 %v3375, 1.442695
        %v3445 = vpow.pop %v3444
        %v3446 = vmul.f32 %v3376, 1.442695
        %v3447 = vpow.pop %v3446
        %v3448 = vmul.f32 %v3377, 1.442695
        %v3449 = vpow.pop %v3448
        %v3450 = vmul.f32 %v3378, 1.442695
        %v3451 = vpow.pop %v3450
        %v3452 = vmul.f32 %v3379, 1.442695
        %v3453 = vpow.pop %v3452
        %v3454 = vmul.f32 %v3380, 1.442695
        %v3455 = vpow.pop %v3454
        %v3456 = vmul.f32 %v3381, 1.442695
        %v3457 = vpow.pop %v3456
        %v3458 = vmul.f32 %v3382, 1.442695
        %v3459 = vpow.pop %v3458
        %v3460 = vmul.f32 %v3383, 1.442695
        %v3461 = vpow.pop %v3460
        %v3462 = vmul.f32 %v3384, 1.442695
        %v3463 = vpow.pop %v3462
        %v3464 = vmul.f32 %v3385, 1.442695
        %v3465 = vpow.pop %v3464
        %v3466 = vmul.f32 %v3386, 1.442695
        %v3467 = vpow.pop %v3466
        %v3468 = vmul.f32 %v3387, 1.442695
        %v3469 = vpow.pop %v3468
        %v3470 = vmul.f32 %v3388, 1.442695
        %v3471 = vpow.pop %v3470
        %v3472 = vmul.f32 %v3389, 1.442695
        %v3473 = vpow.pop %v3472
        %v3474 = vmul.f32 %v3390, 1.442695
        %v3475 = vpow.pop %v3474
        %v3476 = vmul.f32 %v3391, 1.442695
        %v3477 = vpow.pop %v3476
        %v3478 = vmul.f32 %v3392, 1.442695
        %v3479 = vpow.pop %v3478
        %v3480 = vmul.f32 %v3393, 1.442695
        %v3481 = vpow.pop %v3480
        %v3482 = vmul.f32 %v3394, 1.442695
        %v3483 = vpow.pop %v3482
        %v3484 = vmul.f32 %v3395, 1.442695
        %v3485 = vpow.pop %v3484
        %v3486 = vmul.f32 %v3396, 1.442695
        %v3487 = vpow.pop %v3486
        %v3488 = vmul.f32 %v3397, 1.442695
        %v3489 = vpow.pop %v3488
        %v3490 = vmul.f32 %v3398, 1.442695
        %v3491 = vpow.pop %v3490
        %v3492 = vmul.f32 %v3399, 1.442695
        %v3493 = vpow.pop %v3492
        %v3494 = vmul.f32 %v3400, 1.442695
        %v3495 = vpow.pop %v3494
        %v3496 = vmul.f32 %v3401, 1.442695
        %v3497 = vpow.pop %v3496
        %v3498 = vmul.f32 %v3402, 1.442695
        %v3499 = vpow.pop %v3498
        %v3500 = vmul.f32 %v3403, 1.442695
        %v3501 = vpow.pop %v3500
        %v3502 = vmul.f32 %v3404, 1.442695
        %v3503 = vpow.pop %v3502
        %v3504 = vmul.f32 %v3405, 1.442695
        %v3505 = vpow.pop %v3504
        %v3506 = vmul.f32 %v3406, 1.442695
        %v3507 = vpow.pop %v3506
        %v3508 = vmul.f32 %v3407, 1.442695
        %v3509 = vpow.pop %v3508
        %v3510 = vmul.f32 %v3408, 1.442695
        %v3511 = vpow.pop %v3510
        %v3512 = vmul.f32 %v3409, 1.442695
        %v3513 = vpow.pop %v3512
        %v3514 = vmul.f32 %v3410, 1.442695
        %v3515 = vpow.pop %v3514
        %v3516 = vmul.f32 %v3411, 1.442695
        %v3517 = vpow.pop %v3516
        %v3518 = vmul.f32 %v3412, 1.442695
        %v3519 = vpow.pop %v3518
        %v3520 = vmul.f32 %v3413, 1.442695
        %v3521 = vpow.pop %v3520
        %v3522 = vmul.f32 %v3414, 1.442695
        %v3523 = vpow.pop %v3522
        %v3524 = vmul.f32 %v3415, 1.442695
        %v3525 = vpow.pop %v3524
        %v3526 = vmul.f32 %v3416, 1.442695
        %v3527 = vpow.pop %v3526
        %v3528 = vmul.f32 %v3417, 1.442695
        %v3529 = vpow.pop %v3528
        %v3530 = vmul.f32 %v3418, 1.442695
        %v3531 = vpow.pop %v3530
        %v3532 = vmul.f32 %v3419, 1.442695
        %v3533 = vpow.pop %v3532
        %v3534 = vmul.f32 %v3420, 1.442695
        %v3535 = vpow.pop %v3534
        %v3536 = vmul.f32 %v3421, 1.442695
        %v3537 = vpow.pop %v3536
        %v3538 = vmul.f32 %v3422, 1.442695
        %v3539 = vpow.pop %v3538
        %v3540 = vmul.f32 %v3423, 1.442695
        %v3541 = vpow.pop %v3540
        %v3542 = vmul.f32 %v3424, 1.442695
        %v3543 = vpow.pop %v3542
        %v3544 = vmul.f32 %v3425, 1.442695
        %v3545 = vpow.pop %v3544
        %v3546 = vmul.f32 %v3426, 1.442695
        %v3547 = vpow.pop %v3546
        %v3548 = vmul.f32 %v3427, 1.442695
        %v3549 = vpow.pop %v3548
        %v3550 = vmul.f32 %v3428, 1.442695
        %v3551 = vpow.pop %v3550
        %v3552 = vmul.f32 %v3429, 1.442695
        %v3553 = vpow.pop %v3552
        %v3554 = vmul.f32 %v3430, 1.442695
        %v3555 = vpow.pop %v3554
        %v3556 = vmul.f32 %v3431, 1.442695
        %v3557 = vpow.pop %v3556
        %v3558 = vmul.f32 %v3432, 1.442695
        %v3559 = vpow.pop %v3558
        %v3560 = vmul.f32 %v3433, 1.442695
        %v3561 = vpow.pop %v3560
        %v3562 = vmul.f32 %v3242, %v3435
        %v3563 = vmul.f32 %v3243, %v3437
        %v3564 = vmul.f32 %v3244, %v3439
        %v3565 = vmul.f32 %v3245, %v3441
        %v3566 = vmul.f32 %v3246, %v3443
        %v3567 = vmul.f32 %v3247, %v3445
        %v3568 = vmul.f32 %v3248, %v3447
        %v3569 = vmul.f32 %v3249, %v3449
        %v3570 = vmul.f32 %v3250, %v3451
        %v3571 = vmul.f32 %v3251, %v3453
        %v3572 = vmul.f32 %v3252, %v3455
        %v3573 = vmul.f32 %v3253, %v3457
        %v3574 = vmul.f32 %v3254, %v3459
        %v3575 = vmul.f32 %v3255, %v3461
        %v3576 = vmul.f32 %v3256, %v3463
        %v3577 = vmul.f32 %v3257, %v3465
        %v3578 = vmul.f32 %v3258, %v3467
        %v3579 = vmul.f32 %v3259, %v3469
        %v3580 = vmul.f32 %v3260, %v3471
        %v3581 = vmul.f32 %v3261, %v3473
        %v3582 = vmul.f32 %v3262, %v3475
        %v3583 = vmul.f32 %v3263, %v3477
        %v3584 = vmul.f32 %v3264, %v3479
        %v3585 = vmul.f32 %v3265, %v3481
        %v3586 = vmul.f32 %v3266, %v3483
        %v3587 = vmul.f32 %v3267, %v3485
        %v3588 = vmul.f32 %v3268, %v3487
        %v3589 = vmul.f32 %v3269, %v3489
        %v3590 = vmul.f32 %v3270, %v3491
        %v3591 = vmul.f32 %v3271, %v3493
        %v3592 = vmul.f32 %v3272, %v3495
        %v3593 = vmul.f32 %v3273, %v3497
        %v3594 = vmul.f32 %v3274, %v3499
        %v3595 = vmul.f32 %v3275, %v3501
        %v3596 = vmul.f32 %v3276, %v3503
        %v3597 = vmul.f32 %v3277, %v3505
        %v3598 = vmul.f32 %v3278, %v3507
        %v3599 = vmul.f32 %v3279, %v3509
        %v3600 = vmul.f32 %v3280, %v3511
        %v3601 = vmul.f32 %v3281, %v3513
        %v3602 = vmul.f32 %v3282, %v3515
        %v3603 = vmul.f32 %v3283, %v3517
        %v3604 = vmul.f32 %v3284, %v3519
        %v3605 = vmul.f32 %v3285, %v3521
        %v3606 = vmul.f32 %v3286, %v3523
        %v3607 = vmul.f32 %v3287, %v3525
        %v3608 = vmul.f32 %v3288, %v3527
        %v3609 = vmul.f32 %v3289, %v3529
        %v3610 = vmul.f32 %v3290, %v3531
        %v3611 = vmul.f32 %v3291, %v3533
        %v3612 = vmul.f32 %v3292, %v3535
        %v3613 = vmul.f32 %v3293, %v3537
        %v3614 = vmul.f32 %v3294, %v3539
        %v3615 = vmul.f32 %v3295, %v3541
        %v3616 = vmul.f32 %v3296, %v3543
        %v3617 = vmul.f32 %v3297, %v3545
        %v3618 = vmul.f32 %v3298, %v3547
        %v3619 = vmul.f32 %v3299, %v3549
        %v3620 = vmul.f32 %v3300, %v3551
        %v3621 = vmul.f32 %v3301, %v3553
        %v3622 = vmul.f32 %v3302, %v3555
        %v3623 = vmul.f32 %v3303, %v3557
        %v3624 = vmul.f32 %v3304, %v3559
        %v3625 = vmul.f32 %v3305, %v3561
        %v3626 = vsub.f32 1.0, %v3562
        %v3627 = vsub.f32 1.0, %v3563
        %v3628 = vsub.f32 1.0, %v3564
        %v3629 = vsub.f32 1.0, %v3565
        %v3630 = vsub.f32 1.0, %v3566
        %v3631 = vsub.f32 1.0, %v3567
        %v3632 = vsub.f32 1.0, %v3568
        %v3633 = vsub.f32 1.0, %v3569
        %v3634 = vsub.f32 1.0, %v3570
        %v3635 = vsub.f32 1.0, %v3571
        %v3636 = vsub.f32 1.0, %v3572
        %v3637 = vsub.f32 1.0, %v3573
        %v3638 = vsub.f32 1.0, %v3574
        %v3639 = vsub.f32 1.0, %v3575
        %v3640 = vsub.f32 1.0, %v3576
        %v3641 = vsub.f32 1.0, %v3577
        %v3642 = vsub.f32 1.0, %v3578
        %v3643 = vsub.f32 1.0, %v3579
        %v3644 = vsub.f32 1.0, %v3580
        %v3645 = vsub.f32 1.0, %v3581
        %v3646 = vsub.f32 1.0, %v3582
        %v3647 = vsub.f32 1.0, %v3583
        %v3648 = vsub.f32 1.0, %v3584
        %v3649 = vsub.f32 1.0, %v3585
        %v3650 = vsub.f32 1.0, %v3586
        %v3651 = vsub.f32 1.0, %v3587
        %v3652 = vsub.f32 1.0, %v3588
        %v3653 = vsub.f32 1.0, %v3589
        %v3654 = vsub.f32 1.0, %v3590
        %v3655 = vsub.f32 1.0, %v3591
        %v3656 = vsub.f32 1.0, %v3592
        %v3657 = vsub.f32 1.0, %v3593
        %v3658 = vsub.f32 1.0, %v3594
        %v3659 = vsub.f32 1.0, %v3595
        %v3660 = vsub.f32 1.0, %v3596
        %v3661 = vsub.f32 1.0, %v3597
        %v3662 = vsub.f32 1.0, %v3598
        %v3663 = vsub.f32 1.0, %v3599
        %v3664 = vsub.f32 1.0, %v3600
        %v3665 = vsub.f32 1.0, %v3601
        %v3666 = vsub.f32 1.0, %v3602
        %v3667 = vsub.f32 1.0, %v3603
        %v3668 = vsub.f32 1.0, %v3604
        %v3669 = vsub.f32 1.0, %v3605
        %v3670 = vsub.f32 1.0, %v3606
        %v3671 = vsub.f32 1.0, %v3607
        %v3672 = vsub.f32 1.0, %v3608
        %v3673 = vsub.f32 1.0, %v3609
        %v3674 = vsub.f32 1.0, %v3610
        %v3675 = vsub.f32 1.0, %v3611
        %v3676 = vsub.f32 1.0, %v3612
        %v3677 = vsub.f32 1.0, %v3613
        %v3678 = vsub.f32 1.0, %v3614
        %v3679 = vsub.f32 1.0, %v3615
        %v3680 = vsub.f32 1.0, %v3616
        %v3681 = vsub.f32 1.0, %v3617
        %v3682 = vsub.f32 1.0, %v3618
        %v3683 = vsub.f32 1.0, %v3619
        %v3684 = vsub.f32 1.0, %v3620
        %v3685 = vsub.f32 1.0, %v3621
        %v3686 = vsub.f32 1.0, %v3622
        %v3687 = vsub.f32 1.0, %v3623
        %v3688 = vsub.f32 1.0, %v3624
        %v3689 = vsub.f32 1.0, %v3625
        %vm3690 = vcmp.lt.f32.partialorder %v2410, 0.0
        %vm3691 = vcmp.lt.f32.partialorder %v2411, 0.0
        %vm3692 = vcmp.lt.f32.partialorder %v2412, 0.0
        %vm3693 = vcmp.lt.f32.partialorder %v2413, 0.0
        %vm3694 = vcmp.lt.f32.partialorder %v2414, 0.0
        %vm3695 = vcmp.lt.f32.partialorder %v2415, 0.0
        %vm3696 = vcmp.lt.f32.partialorder %v2416, 0.0
        %vm3697 = vcmp.lt.f32.partialorder %v2417, 0.0
        %vm3698 = vcmp.lt.f32.partialorder %v2418, 0.0
        %vm3699 = vcmp.lt.f32.partialorder %v2419, 0.0
        %vm3700 = vcmp.lt.f32.partialorder %v2420, 0.0
        %vm3701 = vcmp.lt.f32.partialorder %v2421, 0.0
        %vm3702 = vcmp.lt.f32.partialorder %v2422, 0.0
        %vm3703 = vcmp.lt.f32.partialorder %v2423, 0.0
        %vm3704 = vcmp.lt.f32.partialorder %v2424, 0.0
        %vm3705 = vcmp.lt.f32.partialorder %v2425, 0.0
        %vm3706 = vcmp.lt.f32.partialorder %v2426, 0.0
        %vm3707 = vcmp.lt.f32.partialorder %v2427, 0.0
        %vm3708 = vcmp.lt.f32.partialorder %v2428, 0.0
        %vm3709 = vcmp.lt.f32.partialorder %v2429, 0.0
        %vm3710 = vcmp.lt.f32.partialorder %v2430, 0.0
        %vm3711 = vcmp.lt.f32.partialorder %v2431, 0.0
        %vm3712 = vcmp.lt.f32.partialorder %v2432, 0.0
        %vm3713 = vcmp.lt.f32.partialorder %v2433, 0.0
        %vm3714 = vcmp.lt.f32.partialorder %v2434, 0.0
        %vm3715 = vcmp.lt.f32.partialorder %v2435, 0.0
        %vm3716 = vcmp.lt.f32.partialorder %v2436, 0.0
        %vm3717 = vcmp.lt.f32.partialorder %v2437, 0.0
        %vm3718 = vcmp.lt.f32.partialorder %v2438, 0.0
        %vm3719 = vcmp.lt.f32.partialorder %v2439, 0.0
        %vm3720 = vcmp.lt.f32.partialorder %v2440, 0.0
        %vm3721 = vcmp.lt.f32.partialorder %v2441, 0.0
        %vm3722 = vcmp.lt.f32.partialorder %v2442, 0.0
        %vm3723 = vcmp.lt.f32.partialorder %v2443, 0.0
        %vm3724 = vcmp.lt.f32.partialorder %v2444, 0.0
        %vm3725 = vcmp.lt.f32.partialorder %v2445, 0.0
        %vm3726 = vcmp.lt.f32.partialorder %v2446, 0.0
        %vm3727 = vcmp.lt.f32.partialorder %v2447, 0.0
        %vm3728 = vcmp.lt.f32.partialorder %v2448, 0.0
        %vm3729 = vcmp.lt.f32.partialorder %v2449, 0.0
        %vm3730 = vcmp.lt.f32.partialorder %v2450, 0.0
        %vm3731 = vcmp.lt.f32.partialorder %v2451, 0.0
        %vm3732 = vcmp.lt.f32.partialorder %v2452, 0.0
        %vm3733 = vcmp.lt.f32.partialorder %v2453, 0.0
        %vm3734 = vcmp.lt.f32.partialorder %v2454, 0.0
        %vm3735 = vcmp.lt.f32.partialorder %v2455, 0.0
        %vm3736 = vcmp.lt.f32.partialorder %v2456, 0.0
        %vm3737 = vcmp.lt.f32.partialorder %v2457, 0.0
        %vm3738 = vcmp.lt.f32.partialorder %v2458, 0.0
        %vm3739 = vcmp.lt.f32.partialorder %v2459, 0.0
        %vm3740 = vcmp.lt.f32.partialorder %v2460, 0.0
        %vm3741 = vcmp.lt.f32.partialorder %v2461, 0.0
        %vm3742 = vcmp.lt.f32.partialorder %v2462, 0.0
        %vm3743 = vcmp.lt.f32.partialorder %v2463, 0.0
        %vm3744 = vcmp.lt.f32.partialorder %v2464, 0.0
        %vm3745 = vcmp.lt.f32.partialorder %v2465, 0.0
        %vm3746 = vcmp.lt.f32.partialorder %v2466, 0.0
        %vm3747 = vcmp.lt.f32.partialorder %v2467, 0.0
        %vm3748 = vcmp.lt.f32.partialorder %v2468, 0.0
        %vm3749 = vcmp.lt.f32.partialorder %v2469, 0.0
        %vm3750 = vcmp.lt.f32.partialorder %v2470, 0.0
        %vm3751 = vcmp.lt.f32.partialorder %v2471, 0.0
        %vm3752 = vcmp.lt.f32.partialorder %v2472, 0.0
        %vm3753 = vcmp.lt.f32.partialorder %v2473, 0.0
        %v3754 = vsub.f32 0.0, %v3626
        %v3755 = vsub.f32 0.0, %v3627
        %v3756 = vsub.f32 0.0, %v3628
        %v3757 = vsub.f32 0.0, %v3629
        %v3758 = vsub.f32 0.0, %v3630
        %v3759 = vsub.f32 0.0, %v3631
        %v3760 = vsub.f32 0.0, %v3632
        %v3761 = vsub.f32 0.0, %v3633
        %v3762 = vsub.f32 0.0, %v3634
        %v3763 = vsub.f32 0.0, %v3635
        %v3764 = vsub.f32 0.0, %v3636
        %v3765 = vsub.f32 0.0, %v3637
        %v3766 = vsub.f32 0.0, %v3638
        %v3767 = vsub.f32 0.0, %v3639
        %v3768 = vsub.f32 0.0, %v3640
        %v3769 = vsub.f32 0.0, %v3641
        %v3770 = vsub.f32 0.0, %v3642
        %v3771 = vsub.f32 0.0, %v3643
        %v3772 = vsub.f32 0.0, %v3644
        %v3773 = vsub.f32 0.0, %v3645
        %v3774 = vsub.f32 0.0, %v3646
        %v3775 = vsub.f32 0.0, %v3647
        %v3776 = vsub.f32 0.0, %v3648
        %v3777 = vsub.f32 0.0, %v3649
        %v3778 = vsub.f32 0.0, %v3650
        %v3779 = vsub.f32 0.0, %v3651
        %v3780 = vsub.f32 0.0, %v3652
        %v3781 = vsub.f32 0.0, %v3653
        %v3782 = vsub.f32 0.0, %v3654
        %v3783 = vsub.f32 0.0, %v3655
        %v3784 = vsub.f32 0.0, %v3656
        %v3785 = vsub.f32 0.0, %v3657
        %v3786 = vsub.f32 0.0, %v3658
        %v3787 = vsub.f32 0.0, %v3659
        %v3788 = vsub.f32 0.0, %v3660
        %v3789 = vsub.f32 0.0, %v3661
        %v3790 = vsub.f32 0.0, %v3662
        %v3791 = vsub.f32 0.0, %v3663
        %v3792 = vsub.f32 0.0, %v3664
        %v3793 = vsub.f32 0.0, %v3665
        %v3794 = vsub.f32 0.0, %v3666
        %v3795 = vsub.f32 0.0, %v3667
        %v3796 = vsub.f32 0.0, %v3668
        %v3797 = vsub.f32 0.0, %v3669
        %v3798 = vsub.f32 0.0, %v3670
        %v3799 = vsub.f32 0.0, %v3671
        %v3800 = vsub.f32 0.0, %v3672
        %v3801 = vsub.f32 0.0, %v3673
        %v3802 = vsub.f32 0.0, %v3674
        %v3803 = vsub.f32 0.0, %v3675
        %v3804 = vsub.f32 0.0, %v3676
        %v3805 = vsub.f32 0.0, %v3677
        %v3806 = vsub.f32 0.0, %v3678
        %v3807 = vsub.f32 0.0, %v3679
        %v3808 = vsub.f32 0.0, %v3680
        %v3809 = vsub.f32 0.0, %v3681
        %v3810 = vsub.f32 0.0, %v3682
        %v3811 = vsub.f32 0.0, %v3683
        %v3812 = vsub.f32 0.0, %v3684
        %v3813 = vsub.f32 0.0, %v3685
        %v3814 = vsub.f32 0.0, %v3686
        %v3815 = vsub.f32 0.0, %v3687
        %v3816 = vsub.f32 0.0, %v3688
        %v3817 = vsub.f32 0.0, %v3689
        %v3818 = vsel %vm3690, %v3754, %v3626
        %v3819 = vsel %vm3691, %v3755, %v3627
        %v3820 = vsel %vm3692, %v3756, %v3628
        %v3821 = vsel %vm3693, %v3757, %v3629
        %v3822 = vsel %vm3694, %v3758, %v3630
        %v3823 = vsel %vm3695, %v3759, %v3631
        %v3824 = vsel %vm3696, %v3760, %v3632
        %v3825 = vsel %vm3697, %v3761, %v3633
        %v3826 = vsel %vm3698, %v3762, %v3634
        %v3827 = vsel %vm3699, %v3763, %v3635
        %v3828 = vsel %vm3700, %v3764, %v3636
        %v3829 = vsel %vm3701, %v3765, %v3637
        %v3830 = vsel %vm3702, %v3766, %v3638
        %v3831 = vsel %vm3703, %v3767, %v3639
        %v3832 = vsel %vm3704, %v3768, %v3640
        %v3833 = vsel %vm3705, %v3769, %v3641
        %v3834 = vsel %vm3706, %v3770, %v3642
        %v3835 = vsel %vm3707, %v3771, %v3643
        %v3836 = vsel %vm3708, %v3772, %v3644
        %v3837 = vsel %vm3709, %v3773, %v3645
        %v3838 = vsel %vm3710, %v3774, %v3646
        %v3839 = vsel %vm3711, %v3775, %v3647
        %v3840 = vsel %vm3712, %v3776, %v3648
        %v3841 = vsel %vm3713, %v3777, %v3649
        %v3842 = vsel %vm3714, %v3778, %v3650
        %v3843 = vsel %vm3715, %v3779, %v3651
        %v3844 = vsel %vm3716, %v3780, %v3652
        %v3845 = vsel %vm3717, %v3781, %v3653
        %v3846 = vsel %vm3718, %v3782, %v3654
        %v3847 = vsel %vm3719, %v3783, %v3655
        %v3848 = vsel %vm3720, %v3784, %v3656
        %v3849 = vsel %vm3721, %v3785, %v3657
        %v3850 = vsel %vm3722, %v3786, %v3658
        %v3851 = vsel %vm3723, %v3787, %v3659
        %v3852 = vsel %vm3724, %v3788, %v3660
        %v3853 = vsel %vm3725, %v3789, %v3661
        %v3854 = vsel %vm3726, %v3790, %v3662
        %v3855 = vsel %vm3727, %v3791, %v3663
        %v3856 = vsel %vm3728, %v3792, %v3664
        %v3857 = vsel %vm3729, %v3793, %v3665
        %v3858 = vsel %vm3730, %v3794, %v3666
        %v3859 = vsel %vm3731, %v3795, %v3667
        %v3860 = vsel %vm3732, %v3796, %v3668
        %v3861 = vsel %vm3733, %v3797, %v3669
        %v3862 = vsel %vm3734, %v3798, %v3670
        %v3863 = vsel %vm3735, %v3799, %v3671
        %v3864 = vsel %vm3736, %v3800, %v3672
        %v3865 = vsel %vm3737, %v3801, %v3673
        %v3866 = vsel %vm3738, %v3802, %v3674
        %v3867 = vsel %vm3739, %v3803, %v3675
        %v3868 = vsel %vm3740, %v3804, %v3676
        %v3869 = vsel %vm3741, %v3805, %v3677
        %v3870 = vsel %vm3742, %v3806, %v3678
        %v3871 = vsel %vm3743, %v3807, %v3679
        %v3872 = vsel %vm3744, %v3808, %v3680
        %v3873 = vsel %vm3745, %v3809, %v3681
        %v3874 = vsel %vm3746, %v3810, %v3682
        %v3875 = vsel %vm3747, %v3811, %v3683
        %v3876 = vsel %vm3748, %v3812, %v3684
        %v3877 = vsel %vm3749, %v3813, %v3685
        %v3878 = vsel %vm3750, %v3814, %v3686
        %v3879 = vsel %vm3751, %v3815, %v3687
        %v3880 = vsel %vm3752, %v3816, %v3688
        %v3881 = vsel %vm3753, %v3817, %v3689
        %v3882 = vadd.f32 %v3818, 1.0
        %v3883 = vadd.f32 %v3819, 1.0
        %v3884 = vadd.f32 %v3820, 1.0
        %v3885 = vadd.f32 %v3821, 1.0
        %v3886 = vadd.f32 %v3822, 1.0
        %v3887 = vadd.f32 %v3823, 1.0
        %v3888 = vadd.f32 %v3824, 1.0
        %v3889 = vadd.f32 %v3825, 1.0
        %v3890 = vadd.f32 %v3826, 1.0
        %v3891 = vadd.f32 %v3827, 1.0
        %v3892 = vadd.f32 %v3828, 1.0
        %v3893 = vadd.f32 %v3829, 1.0
        %v3894 = vadd.f32 %v3830, 1.0
        %v3895 = vadd.f32 %v3831, 1.0
        %v3896 = vadd.f32 %v3832, 1.0
        %v3897 = vadd.f32 %v3833, 1.0
        %v3898 = vadd.f32 %v3834, 1.0
        %v3899 = vadd.f32 %v3835, 1.0
        %v3900 = vadd.f32 %v3836, 1.0
        %v3901 = vadd.f32 %v3837, 1.0
        %v3902 = vadd.f32 %v3838, 1.0
        %v3903 = vadd.f32 %v3839, 1.0
        %v3904 = vadd.f32 %v3840, 1.0
        %v3905 = vadd.f32 %v3841, 1.0
        %v3906 = vadd.f32 %v3842, 1.0
        %v3907 = vadd.f32 %v3843, 1.0
        %v3908 = vadd.f32 %v3844, 1.0
        %v3909 = vadd.f32 %v3845, 1.0
        %v3910 = vadd.f32 %v3846, 1.0
        %v3911 = vadd.f32 %v3847, 1.0
        %v3912 = vadd.f32 %v3848, 1.0
        %v3913 = vadd.f32 %v3849, 1.0
        %v3914 = vadd.f32 %v3850, 1.0
        %v3915 = vadd.f32 %v3851, 1.0
        %v3916 = vadd.f32 %v3852, 1.0
        %v3917 = vadd.f32 %v3853, 1.0
        %v3918 = vadd.f32 %v3854, 1.0
        %v3919 = vadd.f32 %v3855, 1.0
        %v3920 = vadd.f32 %v3856, 1.0
        %v3921 = vadd.f32 %v3857, 1.0
        %v3922 = vadd.f32 %v3858, 1.0
        %v3923 = vadd.f32 %v3859, 1.0
        %v3924 = vadd.f32 %v3860, 1.0
        %v3925 = vadd.f32 %v3861, 1.0
        %v3926 = vadd.f32 %v3862, 1.0
        %v3927 = vadd.f32 %v3863, 1.0
        %v3928 = vadd.f32 %v3864, 1.0
        %v3929 = vadd.f32 %v3865, 1.0
        %v3930 = vadd.f32 %v3866, 1.0
        %v3931 = vadd.f32 %v3867, 1.0
        %v3932 = vadd.f32 %v3868, 1.0
        %v3933 = vadd.f32 %v3869, 1.0
        %v3934 = vadd.f32 %v3870, 1.0
        %v3935 = vadd.f32 %v3871, 1.0
        %v3936 = vadd.f32 %v3872, 1.0
        %v3937 = vadd.f32 %v3873, 1.0
        %v3938 = vadd.f32 %v3874, 1.0
        %v3939 = vadd.f32 %v3875, 1.0
        %v3940 = vadd.f32 %v3876, 1.0
        %v3941 = vadd.f32 %v3877, 1.0
        %v3942 = vadd.f32 %v3878, 1.0
        %v3943 = vadd.f32 %v3879, 1.0
        %v3944 = vadd.f32 %v3880, 1.0
        %v3945 = vadd.f32 %v3881, 1.0
        %v3946 = vmul.f32 %v2346, %v3882
        %v3947 = vmul.f32 %v2347, %v3883
        %v3948 = vmul.f32 %v2348, %v3884
        %v3949 = vmul.f32 %v2349, %v3885
        %v3950 = vmul.f32 %v2350, %v3886
        %v3951 = vmul.f32 %v2351, %v3887
        %v3952 = vmul.f32 %v2352, %v3888
        %v3953 = vmul.f32 %v2353, %v3889
        %v3954 = vmul.f32 %v2354, %v3890
        %v3955 = vmul.f32 %v2355, %v3891
        %v3956 = vmul.f32 %v2356, %v3892
        %v3957 = vmul.f32 %v2357, %v3893
        %v3958 = vmul.f32 %v2358, %v3894
        %v3959 = vmul.f32 %v2359, %v3895
        %v3960 = vmul.f32 %v2360, %v3896
        %v3961 = vmul.f32 %v2361, %v3897
        %v3962 = vmul.f32 %v2362, %v3898
        %v3963 = vmul.f32 %v2363, %v3899
        %v3964 = vmul.f32 %v2364, %v3900
        %v3965 = vmul.f32 %v2365, %v3901
        %v3966 = vmul.f32 %v2366, %v3902
        %v3967 = vmul.f32 %v2367, %v3903
        %v3968 = vmul.f32 %v2368, %v3904
        %v3969 = vmul.f32 %v2369, %v3905
        %v3970 = vmul.f32 %v2370, %v3906
        %v3971 = vmul.f32 %v2371, %v3907
        %v3972 = vmul.f32 %v2372, %v3908
        %v3973 = vmul.f32 %v2373, %v3909
        %v3974 = vmul.f32 %v2374, %v3910
        %v3975 = vmul.f32 %v2375, %v3911
        %v3976 = vmul.f32 %v2376, %v3912
        %v3977 = vmul.f32 %v2377, %v3913
        %v3978 = vmul.f32 %v2378, %v3914
        %v3979 = vmul.f32 %v2379, %v3915
        %v3980 = vmul.f32 %v2380, %v3916
        %v3981 = vmul.f32 %v2381, %v3917
        %v3982 = vmul.f32 %v2382, %v3918
        %v3983 = vmul.f32 %v2383, %v3919
        %v3984 = vmul.f32 %v2384, %v3920
        %v3985 = vmul.f32 %v2385, %v3921
        %v3986 = vmul.f32 %v2386, %v3922
        %v3987 = vmul.f32 %v2387, %v3923
        %v3988 = vmul.f32 %v2388, %v3924
        %v3989 = vmul.f32 %v2389, %v3925
        %v3990 = vmul.f32 %v2390, %v3926
        %v3991 = vmul.f32 %v2391, %v3927
        %v3992 = vmul.f32 %v2392, %v3928
        %v3993 = vmul.f32 %v2393, %v3929
        %v3994 = vmul.f32 %v2394, %v3930
        %v3995 = vmul.f32 %v2395, %v3931
        %v3996 = vmul.f32 %v2396, %v3932
        %v3997 = vmul.f32 %v2397, %v3933
        %v3998 = vmul.f32 %v2398, %v3934
        %v3999 = vmul.f32 %v2399, %v3935
        %v4000 = vmul.f32 %v2400, %v3936
        %v4001 = vmul.f32 %v2401, %v3937
        %v4002 = vmul.f32 %v2402, %v3938
        %v4003 = vmul.f32 %v2403, %v3939
        %v4004 = vmul.f32 %v2404, %v3940
        %v4005 = vmul.f32 %v2405, %v3941
        %v4006 = vmul.f32 %v2406, %v3942
        %v4007 = vmul.f32 %v2407, %v3943
        %v4008 = vmul.f32 %v2408, %v3944
        %v4009 = vmul.f32 %v2409, %v3945
        %v4010 = vpack.c.bf16 %v3948, %v3946
        %v4011 = vpack.c.bf16 %v3949, %v3947
        %v4012 = vpack.c.bf16 %v3952, %v3950
        %v4013 = vpack.c.bf16 %v3953, %v3951
        %v4014 = vpack.c.bf16 %v3956, %v3954
        %v4015 = vpack.c.bf16 %v3957, %v3955
        %v4016 = vpack.c.bf16 %v3960, %v3958
        %v4017 = vpack.c.bf16 %v3961, %v3959
        %v4018 = vpack.c.bf16 %v3964, %v3962
        %v4019 = vpack.c.bf16 %v3965, %v3963
        %v4020 = vpack.c.bf16 %v3968, %v3966
        %v4021 = vpack.c.bf16 %v3969, %v3967
        %v4022 = vpack.c.bf16 %v3972, %v3970
        %v4023 = vpack.c.bf16 %v3973, %v3971
        %v4024 = vpack.c.bf16 %v3976, %v3974
        %v4025 = vpack.c.bf16 %v3977, %v3975
        %v4026 = vpack.c.bf16 %v3980, %v3978
        %v4027 = vpack.c.bf16 %v3981, %v3979
        %v4028 = vpack.c.bf16 %v3984, %v3982
        %v4029 = vpack.c.bf16 %v3985, %v3983
        %v4030 = vpack.c.bf16 %v3988, %v3986
        %v4031 = vpack.c.bf16 %v3989, %v3987
        %v4032 = vpack.c.bf16 %v3992, %v3990
        %v4033 = vpack.c.bf16 %v3993, %v3991
        %v4034 = vpack.c.bf16 %v3996, %v3994
        %v4035 = vpack.c.bf16 %v3997, %v3995
        %v4036 = vpack.c.bf16 %v4000, %v3998
        %v4037 = vpack.c.bf16 %v4001, %v3999
        %v4038 = vpack.c.bf16 %v4004, %v4002
        %v4039 = vpack.c.bf16 %v4005, %v4003
        %v4040 = vpack.c.bf16 %v4008, %v4006
        %v4041 = vpack.c.bf16 %v4009, %v4007
        %v4042 = vld [vmem:[#allocation9] sm:$0xf]
        %v4043 = vld [vmem:[#allocation9 + $0x4] sm:$0xf]
        %v4044 = vld [vmem:[#allocation9 + $0x8] sm:$0xf]
        %v4045 = vld [vmem:[#allocation9 + $0xc] sm:$0xf]
        %v4046 = vld [vmem:[#allocation9 + $0x10] sm:$0xf]
        %v4047 = vld [vmem:[#allocation9 + $0x14] sm:$0xf]
        %v4048 = vld [vmem:[#allocation9 + $0x18] sm:$0xf]
        %v4049 = vld [vmem:[#allocation9 + $0x1c] sm:$0xf]
        %v4050 = vld [vmem:[#allocation9 + $0x20] sm:$0xf]
        %v4051 = vld [vmem:[#allocation9 + $0x24] sm:$0xf]
        %v4052 = vld [vmem:[#allocation9 + $0x28] sm:$0xf]
        %v4053 = vld [vmem:[#allocation9 + $0x2c] sm:$0xf]
        %v4054 = vld [vmem:[#allocation9 + $0x30] sm:$0xf]
        %v4055 = vld [vmem:[#allocation9 + $0x34] sm:$0xf]
        %v4056 = vld [vmem:[#allocation9 + $0x38] sm:$0xf]
        %v4057 = vld [vmem:[#allocation9 + $0x3c] sm:$0xf]
        %v4058 = vld [vmem:[#allocation9 + $0x40] sm:$0xf]
        %v4059 = vld [vmem:[#allocation9 + $0x44] sm:$0xf]
        %v4060 = vld [vmem:[#allocation9 + $0x48] sm:$0xf]
        %v4061 = vld [vmem:[#allocation9 + $0x4c] sm:$0xf]
        %v4062 = vld [vmem:[#allocation9 + $0x50] sm:$0xf]
        %v4063 = vld [vmem:[#allocation9 + $0x54] sm:$0xf]
        %v4064 = vld [vmem:[#allocation9 + $0x58] sm:$0xf]
        %v4065 = vld [vmem:[#allocation9 + $0x5c] sm:$0xf]
        %v4066 = vld [vmem:[#allocation9 + $0x60] sm:$0xf]
        %v4067 = vld [vmem:[#allocation9 + $0x64] sm:$0xf]
        %v4068 = vld [vmem:[#allocation9 + $0x68] sm:$0xf]
        %v4069 = vld [vmem:[#allocation9 + $0x6c] sm:$0xf]
        %v4070 = vld [vmem:[#allocation9 + $0x70] sm:$0xf]
        %v4071 = vld [vmem:[#allocation9 + $0x74] sm:$0xf]
        %v4072 = vld [vmem:[#allocation9 + $0x78] sm:$0xf]
        %v4073 = vld [vmem:[#allocation9 + $0x7c] sm:$0xf]
        %v4074 = vld [vmem:[%s5] sm:$0x1]
        %v4076 = vlaneseq
        %v4077 = vshrl.u32 %v4076, 7
        %v4078 = vsub.s32 0, %v4077
        %v4079 = vrot.slane %v4074, %v4078
        %v4113 = vunpack.c.l.b16 %v4042
        %v4114 = vunpack.c.l.b16 %v4043
        %v4115 = vunpack.c.l.b16 %v4044
        %v4116 = vunpack.c.l.b16 %v4045
        %v4117 = vunpack.c.l.b16 %v4046
        %v4118 = vunpack.c.l.b16 %v4047
        %v4119 = vunpack.c.l.b16 %v4048
        %v4120 = vunpack.c.l.b16 %v4049
        %v4121 = vunpack.c.l.b16 %v4050
        %v4122 = vunpack.c.l.b16 %v4051
        %v4123 = vunpack.c.l.b16 %v4052
        %v4124 = vunpack.c.l.b16 %v4053
        %v4125 = vunpack.c.l.b16 %v4054
        %v4126 = vunpack.c.l.b16 %v4055
        %v4127 = vunpack.c.l.b16 %v4056
        %v4128 = vunpack.c.l.b16 %v4057
        %v4129 = vunpack.c.l.b16 %v4058
        %v4130 = vunpack.c.l.b16 %v4059
        %v4131 = vunpack.c.l.b16 %v4060
        %v4132 = vunpack.c.l.b16 %v4061
        %v4133 = vunpack.c.l.b16 %v4062
        %v4134 = vunpack.c.l.b16 %v4063
        %v4135 = vunpack.c.l.b16 %v4064
        %v4136 = vunpack.c.l.b16 %v4065
        %v4137 = vunpack.c.l.b16 %v4066
        %v4138 = vunpack.c.l.b16 %v4067
        %v4139 = vunpack.c.l.b16 %v4068
        %v4140 = vunpack.c.l.b16 %v4069
        %v4141 = vunpack.c.l.b16 %v4070
        %v4142 = vunpack.c.l.b16 %v4071
        %v4143 = vunpack.c.l.b16 %v4072
        %v4144 = vunpack.c.l.b16 %v4073
        %v4145 = vpack.c.b16 %v4114, %v4113
        %v4146 = vpack.c.b16 %v4116, %v4115
        %v4147 = vpack.c.b16 %v4118, %v4117
        %v4148 = vpack.c.b16 %v4120, %v4119
        %v4149 = vpack.c.b16 %v4122, %v4121
        %v4150 = vpack.c.b16 %v4124, %v4123
        %v4151 = vpack.c.b16 %v4126, %v4125
        %v4152 = vpack.c.b16 %v4128, %v4127
        %v4153 = vpack.c.b16 %v4130, %v4129
        %v4154 = vpack.c.b16 %v4132, %v4131
        %v4155 = vpack.c.b16 %v4134, %v4133
        %v4156 = vpack.c.b16 %v4136, %v4135
        %v4157 = vpack.c.b16 %v4138, %v4137
        %v4158 = vpack.c.b16 %v4140, %v4139
        %v4159 = vpack.c.b16 %v4142, %v4141
        %v4160 = vpack.c.b16 %v4144, %v4143
        %4177 = vmatprep.subr.bf16.mxu0 0
        %4178 = vmatpush1.bf16.msra.mxu0 %v4152
        %4179 = vmatprep.subr.bf16.mxu0 0
        %4180 = vmatpush1.bf16.msra.mxu0 %v4151
        %4181 = vmatprep.subr.bf16.mxu0 0
        %4182 = vmatpush1.bf16.msra.mxu0 %v4150
        %4183 = vmatprep.subr.bf16.mxu0 0
        %4184 = vmatpush1.bf16.msra.mxu0 %v4149
        %4185 = vmatprep.subr.bf16.mxu0 0
        %4186 = vmatpush1.bf16.msra.mxu0 %v4148
        %4187 = vmatprep.subr.bf16.mxu0 0
        %4188 = vmatpush1.bf16.msra.mxu0 %v4147
        %4189 = vmatprep.subr.bf16.mxu0 0
        %4190 = vmatpush1.bf16.msra.mxu0 %v4146
        %4191 = vmatprep.subr.bf16.mxu0 0
        %4192 = vmatpush1.bf16.msra.mxu0 %v4145
        %4193 = vmatprep.subr.bf16.mxu0 0
        %4194 = vmatpush2.bf16.msra.mxu0 %v4160
        %4195 = vmatprep.subr.bf16.mxu0 0
        %4196 = vmatpush2.bf16.msra.mxu0 %v4159
        %4197 = vmatprep.subr.bf16.mxu0 0
        %4198 = vmatpush2.bf16.msra.mxu0 %v4158
        %4199 = vmatprep.subr.bf16.mxu0 0
        %4200 = vmatpush2.bf16.msra.mxu0 %v4157
        %4201 = vmatprep.subr.bf16.mxu0 0
        %4202 = vmatpush2.bf16.msra.mxu0 %v4156
        %4203 = vmatprep.subr.bf16.mxu0 0
        %4204 = vmatpush2.bf16.msra.mxu0 %v4155
        %4205 = vmatprep.subr.bf16.mxu0 0
        %4206 = vmatpush2.bf16.msra.mxu0 %v4154
        %4207 = vmatprep.subr.bf16.mxu0 0
        %4208 = vmatpush2.bf16.msra.mxu0 %v4153
        %4209 = vmatprep.mubr.bf16.mxu0 %v4011
        %4210 = vmatmul.mubr.bf16.gmra.mxu0 %v4010
        %v4211 = vpop.f32.mrf.mxu0
        %v4212 = vadd.f32 %v4079, %v4211
        %v4213 = vpop.f32.mrf.mxu0
        %v4214 = vpop.f32.mrf.mxu0
        %v4215 = vadd.f32 %v4079, %v4214
        %v4216 = vpop.f32.mrf.mxu0
        %4217 = vmatprep.mubr.bf16.mxu0 %v4013
        %4218 = vmatmul.mubr.bf16.gmra.mxu0 %v4012
        %v4219 = vpop.f32.mrf.mxu0
        %v4220 = vadd.f32 %v4079, %v4219
        %v4221 = vpop.f32.mrf.mxu0
        %v4222 = vpop.f32.mrf.mxu0
        %v4223 = vadd.f32 %v4079, %v4222
        %v4224 = vpop.f32.mrf.mxu0
        %4225 = vmatprep.mubr.bf16.mxu0 %v4015
        %4226 = vmatmul.mubr.bf16.gmra.mxu0 %v4014
        %v4227 = vpop.f32.mrf.mxu0
        %v4228 = vadd.f32 %v4079, %v4227
        %v4229 = vpop.f32.mrf.mxu0
        %v4230 = vpop.f32.mrf.mxu0
        %v4231 = vadd.f32 %v4079, %v4230
        %v4232 = vpop.f32.mrf.mxu0
        %4233 = vmatprep.mubr.bf16.mxu0 %v4017
        %4234 = vmatmul.mubr.bf16.gmra.mxu0 %v4016
        %v4235 = vpop.f32.mrf.mxu0
        %v4236 = vadd.f32 %v4079, %v4235
        %v4237 = vpop.f32.mrf.mxu0
        %v4238 = vpop.f32.mrf.mxu0
        %v4239 = vadd.f32 %v4079, %v4238
        %v4240 = vpop.f32.mrf.mxu0
        %4241 = vmatprep.mubr.bf16.mxu0 %v4019
        %4242 = vmatmul.mubr.bf16.gmra.mxu0 %v4018
        %v4243 = vpop.f32.mrf.mxu0
        %v4244 = vadd.f32 %v4079, %v4243
        %v4245 = vpop.f32.mrf.mxu0
        %v4246 = vpop.f32.mrf.mxu0
        %v4247 = vadd.f32 %v4079, %v4246
        %v4248 = vpop.f32.mrf.mxu0
        %4249 = vmatprep.mubr.bf16.mxu0 %v4021
        %4250 = vmatmul.mubr.bf16.gmra.mxu0 %v4020
        %v4251 = vpop.f32.mrf.mxu0
        %v4252 = vadd.f32 %v4079, %v4251
        %v4253 = vpop.f32.mrf.mxu0
        %v4254 = vpop.f32.mrf.mxu0
        %v4255 = vadd.f32 %v4079, %v4254
        %v4256 = vpop.f32.mrf.mxu0
        %4257 = vmatprep.mubr.bf16.mxu0 %v4023
        %4258 = vmatmul.mubr.bf16.gmra.mxu0 %v4022
        %v4259 = vpop.f32.mrf.mxu0
        %v4260 = vadd.f32 %v4079, %v4259
        %v4261 = vpop.f32.mrf.mxu0
        %v4262 = vpop.f32.mrf.mxu0
        %v4263 = vadd.f32 %v4079, %v4262
        %v4264 = vpop.f32.mrf.mxu0
        %4265 = vmatprep.mubr.bf16.mxu0 %v4025
        %4266 = vmatmul.mubr.bf16.gmra.mxu0 %v4024
        %v4267 = vpop.f32.mrf.mxu0
        %v4268 = vadd.f32 %v4079, %v4267
        %v4269 = vpop.f32.mrf.mxu0
        %v4270 = vpop.f32.mrf.mxu0
        %v4271 = vadd.f32 %v4079, %v4270
        %v4272 = vpop.f32.mrf.mxu0
        %4273 = vmatprep.mubr.bf16.mxu0 %v4027
        %4274 = vmatmul.mubr.bf16.gmra.mxu0 %v4026
        %v4275 = vpop.f32.mrf.mxu0
        %v4276 = vadd.f32 %v4079, %v4275
        %v4277 = vpop.f32.mrf.mxu0
        %v4278 = vpop.f32.mrf.mxu0
        %v4279 = vadd.f32 %v4079, %v4278
        %v4280 = vpop.f32.mrf.mxu0
        %4281 = vmatprep.mubr.bf16.mxu0 %v4029
        %4282 = vmatmul.mubr.bf16.gmra.mxu0 %v4028
        %v4283 = vpop.f32.mrf.mxu0
        %v4284 = vadd.f32 %v4079, %v4283
        %v4285 = vpop.f32.mrf.mxu0
        %v4286 = vpop.f32.mrf.mxu0
        %v4287 = vadd.f32 %v4079, %v4286
        %v4288 = vpop.f32.mrf.mxu0
        %4289 = vmatprep.mubr.bf16.mxu0 %v4031
        %4290 = vmatmul.mubr.bf16.gmra.mxu0 %v4030
        %v4291 = vpop.f32.mrf.mxu0
        %v4292 = vadd.f32 %v4079, %v4291
        %v4293 = vpop.f32.mrf.mxu0
        %v4294 = vpop.f32.mrf.mxu0
        %v4295 = vadd.f32 %v4079, %v4294
        %v4296 = vpop.f32.mrf.mxu0
        %4297 = vmatprep.mubr.bf16.mxu0 %v4033
        %4298 = vmatmul.mubr.bf16.gmra.mxu0 %v4032
        %v4299 = vpop.f32.mrf.mxu0
        %v4300 = vadd.f32 %v4079, %v4299
        %v4301 = vpop.f32.mrf.mxu0
        %v4302 = vpop.f32.mrf.mxu0
        %v4303 = vadd.f32 %v4079, %v4302
        %v4304 = vpop.f32.mrf.mxu0
        %4305 = vmatprep.mubr.bf16.mxu0 %v4035
        %4306 = vmatmul.mubr.bf16.gmra.mxu0 %v4034
        %v4307 = vpop.f32.mrf.mxu0
        %v4308 = vadd.f32 %v4079, %v4307
        %v4309 = vpop.f32.mrf.mxu0
        %v4310 = vpop.f32.mrf.mxu0
        %v4311 = vadd.f32 %v4079, %v4310
        %v4312 = vpop.f32.mrf.mxu0
        %4313 = vmatprep.mubr.bf16.mxu0 %v4037
        %4314 = vmatmul.mubr.bf16.gmra.mxu0 %v4036
        %v4315 = vpop.f32.mrf.mxu0
        %v4316 = vadd.f32 %v4079, %v4315
        %v4317 = vpop.f32.mrf.mxu0
        %v4318 = vpop.f32.mrf.mxu0
        %v4319 = vadd.f32 %v4079, %v4318
        %v4320 = vpop.f32.mrf.mxu0
        %4321 = vmatprep.mubr.bf16.mxu0 %v4039
        %4322 = vmatmul.mubr.bf16.gmra.mxu0 %v4038
        %v4323 = vpop.f32.mrf.mxu0
        %v4324 = vadd.f32 %v4079, %v4323
        %v4325 = vpop.f32.mrf.mxu0
        %v4326 = vpop.f32.mrf.mxu0
        %v4327 = vadd.f32 %v4079, %v4326
        %v4328 = vpop.f32.mrf.mxu0
        %4329 = vmatprep.mubr.bf16.mxu0 %v4041
        %4330 = vmatmul.mubr.bf16.gmra.mxu0 %v4040
        %v4331 = vpop.f32.mrf.mxu0
        %v4332 = vadd.f32 %v4079, %v4331
        %v4333 = vpop.f32.mrf.mxu0
        %v4334 = vpop.f32.mrf.mxu0
        %v4335 = vadd.f32 %v4079, %v4334
        %v4336 = vpop.f32.mrf.mxu0
        %4337 = vdwg.mxu0
        %4338 = vst [vmem:[%s377] sm:$0xff] %v4212
        %4339 = vst [vmem:[%s377 + $0x8] sm:$0xff] %v4215
        %4340 = vst [vmem:[%s377 + $0x10] sm:$0xff] %v4220
        %4341 = vst [vmem:[%s377 + $0x18] sm:$0xff] %v4223
        %4342 = vst [vmem:[%s377 + $0x20] sm:$0xff] %v4228
        %4343 = vst [vmem:[%s377 + $0x28] sm:$0xff] %v4231
        %4344 = vst [vmem:[%s377 + $0x30] sm:$0xff] %v4236
        %4345 = vst [vmem:[%s377 + $0x38] sm:$0xff] %v4239
        %4346 = vst [vmem:[%s377 + $0x40] sm:$0xff] %v4244
        %4347 = vst [vmem:[%s377 + $0x48] sm:$0xff] %v4247
        %4348 = vst [vmem:[%s377 + $0x50] sm:$0xff] %v4252
        %4349 = vst [vmem:[%s377 + $0x58] sm:$0xff] %v4255
        %4350 = vst [vmem:[%s377 + $0x60] sm:$0xff] %v4260
        %4351 = vst [vmem:[%s377 + $0x68] sm:$0xff] %v4263
        %4352 = vst [vmem:[%s377 + $0x70] sm:$0xff] %v4268
        %4353 = vst [vmem:[%s377 + $0x78] sm:$0xff] %v4271
        %4354 = vst [vmem:[%s377 + $0x80] sm:$0xff] %v4276
        %4355 = vst [vmem:[%s377 + $0x88] sm:$0xff] %v4279
        %4356 = vst [vmem:[%s377 + $0x90] sm:$0xff] %v4284
        %4357 = vst [vmem:[%s377 + $0x98] sm:$0xff] %v4287
        %4358 = vst [vmem:[%s377 + $0xa0] sm:$0xff] %v4292
        %4359 = vst [vmem:[%s377 + $0xa8] sm:$0xff] %v4295
        %4360 = vst [vmem:[%s377 + $0xb0] sm:$0xff] %v4300
        %4361 = vst [vmem:[%s377 + $0xb8] sm:$0xff] %v4303
        %4362 = vst [vmem:[%s377 + $0xc0] sm:$0xff] %v4308
        %4363 = vst [vmem:[%s377 + $0xc8] sm:$0xff] %v4311
        %4364 = vst [vmem:[%s377 + $0xd0] sm:$0xff] %v4316
        %4365 = vst [vmem:[%s377 + $0xd8] sm:$0xff] %v4319
        %4366 = vst [vmem:[%s377 + $0xe0] sm:$0xff] %v4324
        %4367 = vst [vmem:[%s377 + $0xe8] sm:$0xff] %v4327
        %4368 = vst [vmem:[%s377 + $0xf0] sm:$0xff] %v4332
        %4369 = vst [vmem:[%s377 + $0xf8] sm:$0xff] %v4335
        %s4370 = sand.u32 %s198, 1
        %s4371 = scalar_lea.sflag [#allocation5], %s4370
        %s4372 = sand.u32 %s198, 1
        %s4373 = smul.addr %s4372, 256
        %s4374 = scalar_lea.vmem [#allocation11], %s4373
        // Predicated region
        $region61: #{tpu_custom_call.1} parent=43 // pred_check
          %p4375 = pneg %p208
        $region62: #{tpu_custom_call.1} parent=43 // pred_check_branch
          %4377 = sbr.rel (%p4375) target = $region64
        $region63: #{tpu_custom_call.1} parent=43 // pred_region
          %s4378 = smul.u32 32, %s31
          %s4380 = ssub.s32 4096, 4096
          %4381 = vsyncadd %s4371, %s4380
          %s4382 = smul.addr %s4378, 128
          %s4383 = scalar_lea.hbm %s6, %s4382
          %s4384 = sshll.u32 %s4374, 4
          %s4385 = int_to_ptr.vmem [resolvable:$true] %s4384
          %4390 = dma.vmem_to_hbm [thread:$0]  %s4385, 4096, %s4383, %s4371, 128, 128, 8
        $region64: #{tpu_custom_call.1} parent=43 // pred_fallthru
          _
      $region44: #{tpu_custom_call.1} parent=5 // pred_fallthru
        _
      %p4391 = scmp.le.s32.totalorder 2, %s22
      // Predicated region
      $region65: #{tpu_custom_call.1} parent=5 // pred_check
        %p4392 = pneg %p4391
      $region66: #{tpu_custom_call.1} parent=5 // pred_check_branch
        %4394 = sbr.rel (%p4392) target = $region68
      $region67: #{tpu_custom_call.1} parent=5 // pred_region
        %s4395 = ssub.s32 %s22, 2
        // Predicated region
        $region69: #{tpu_custom_call.1} parent=67 // pred_check
          %p4396 = pneg %p214
        $region70: #{tpu_custom_call.1} parent=67 // pred_check_branch
          %4398 = sbr.rel (%p4396) target = $region72
        $region71: #{tpu_custom_call.1} parent=67 // pred_region
          %s4399 = sand.u32 %s199, 1
          %s4400 = scalar_lea.sflag [#allocation5], %s4399
          %s4401 = sand.u32 %s199, 1
          %s4402 = smul.addr %s4401, 256
          %s4403 = scalar_lea.vmem [#allocation11], %s4402
          %4404 = dma.done %s4400, 4096
        $region72: #{tpu_custom_call.1} parent=67 // pred_fallthru
          _
      $region68: #{tpu_custom_call.1} parent=5 // pred_fallthru
        _
    $region6: #{tpu_custom_call.1} parent=1 // loop_footer
      %s26 = sadd.s32 1, %s22
    $region7: #{tpu_custom_call.1} parent=1 // loop_footer_branch
      %21 = sbr.rel target = $region3
    $region8: #{tpu_custom_call.1} parent=1 // loop_exit
      _
    %4405 = vsyncpa [#allocation4], 1
    %s4406 = scalar_lea.sflag [#allocation4], 1
    %4407 = vsyncpa %s4406, 1
    %4408 = vsyncpa [#allocation7], 1
    %s4409 = scalar_lea.sflag [#allocation7], 1
    %4410 = vsyncpa %s4409, 1
    %4411 = vsyncpa [#allocation10], 1
    %4412 = vsyncpa [#allocation5], 1
    %s4413 = scalar_lea.sflag [#allocation5], 1
    %4414 = vsyncpa %s4413, 1

</llo_original>
